<compile_context>
chip_gen: v7x
topology: tpu7x:2x2x1
jax: 0.10.0
libtpu: 0.0.40
codegen_flags: <defaults>
</compile_context>

<pallas_src>
import math
import functools

import jax
import jax.numpy as jnp
from jax import lax
from jax.experimental import pallas as pl
from jax.experimental.pallas import tpu as pltpu

EPS = 1e-5  # torch.nn.LayerNorm default eps


# ----------------------------- in-kernel helpers -----------------------------

def _layer_norm(x, gamma, beta):
    mu = jnp.mean(x, axis=-1, keepdims=True)
    var = jnp.mean((x - mu) ** 2, axis=-1, keepdims=True)
    return (x - mu) * lax.rsqrt(var + EPS) * gamma + beta


def _mm(a, b):
    """(m, k) @ (k, n): bf16 operands on the MXU, f32 accumulation."""
    return lax.dot_general(a.astype(jnp.bfloat16), b.astype(jnp.bfloat16),
                           (((1,), (0,)), ((), ())),
                           preferred_element_type=jnp.float32)


def _mm_nt(a, b):
    """(m, k) x (n, k) -> (m, n): contract last dims of both (no transpose op)."""
    return lax.dot_general(a.astype(jnp.bfloat16), b.astype(jnp.bfloat16),
                           (((1,), (1,)), ((), ())),
                           preferred_element_type=jnp.float32)


def _rel_skew(c, seq_len):
    """Align relative-position scores.

    c: (T, 2T) with c[i, m] = q_i · pe_row[m], where the pe rows are ordered so that
    row m holds relative offset (-m) for m <= T and offset (2T - m) for m > T.
    Returns b: (T, T) with b[i, j] = q_i · pe[i - j]: circular right-roll of row i by
    exactly i (over width 2T), then keep the first T columns.
    """
    T = seq_len
    if T % 8 == 0 and (2 * T) % 128 == 0:
        # One strided XLU rotate: row i rolled by shift + i*stride = i.
        return pltpu.roll(c, 0, 1, stride=1, stride_axis=0)[:, :T]
    # Fallback (small / unaligned T): binary decomposition of the per-row right-roll.
    row = lax.broadcasted_iota(jnp.int32, (T, 1), 0)
    out = c
    for bit in range(max(1, (T - 1).bit_length())):
        amt = 1 << bit
        rolled = jnp.concatenate([out[:, -amt:], out[:, :-amt]], axis=-1)
        take = jnp.bitwise_and(jnp.right_shift(row, bit), 1) == 1
        out = jnp.where(take, rolled, out)
    return out[:, :T]


# ---------------------------------- kernel ----------------------------------

def encoder_kernel(x_ref, pe_ref,
                   wemb_ref, bemb_ref, gemb_ref, betaemb_ref,
                   gaft_ref, baft_ref,
                   ln1g_ref, ln1b_ref, wqkv_ref, bqkv_ref, wo_ref, bo_ref,
                   ln2g_ref, ln2b_ref, w1_ref, b1_ref, w2_ref, b2_ref,
                   o_ref, *, n_head):
    Nb, T, D = o_ref.shape
    d_k = D // n_head
    scale = 1.0 / math.sqrt(d_k)
    layer = pl.program_id(1)

    # ---- embed (first layer step only): Linear -> LayerNorm -> Dropout(id) -> ReLU ----
    @pl.when(layer == 0)
    def _embed():
        w = wemb_ref[...]
        bias = bemb_ref[0]
        g = gemb_ref[0]
        beta = betaemb_ref[0]
        for n in range(Nb):
            xe = _mm(x_ref[n], w) + bias
            xe = _layer_norm(xe, g, beta)
            o_ref[n] = jnp.maximum(xe, 0.0)

    pe = pe_ref[...]                                   # (2T, d_k) f32 (unique offsets)
    ln1_g, ln1_b = ln1g_ref[0, 0], ln1b_ref[0, 0]
    ln2_g, ln2_b = ln2g_ref[0, 0], ln2b_ref[0, 0]
    wqkv, bqkv = wqkv_ref[0], bqkv_ref[0, 0]
    wo, bo = wo_ref[0], bo_ref[0, 0]
    w1, b1 = w1_ref[0], b1_ref[0, 0]
    w2, b2 = w2_ref[0], b2_ref[0, 0]

    for n in range(Nb):
        # Activation stays resident in the output VMEM buffer across the layer axis.
        x = o_ref[n]                                   # (T, D) f32

        # ---------- self-attention sub-block (pre-LN, concat_after=False) ----------
        ln1 = _layer_norm(x, ln1_g, ln1_b)
        qkv = _mm(ln1, wqkv) + bqkv                    # fused QKV projection: (T, 3D)

        heads = []
        for h in range(n_head):                        # static head loop (unrolled)
            lo = h * d_k
            qh = qkv[:, lo:lo + d_k] * scale           # 1/sqrt(d_k) folded into q
            kh = qkv[:, D + lo:D + lo + d_k]
            vh = qkv[:, 2 * D + lo:2 * D + lo + d_k]
            # One fused MXU launch per head for both score terms: RHS = [k_h ; pe].
            rhs = jnp.concatenate([kh, pe], axis=0)    # (3T, d_k)
            s3 = _mm_nt(qh, rhs)                       # (T, 3T) = [ q k^T | q pe^T ]
            s = s3[:, :T] + _rel_skew(s3[:, T:], T)    # content + relative bias
            s = s - jnp.max(s, axis=-1, keepdims=True)
            e = jnp.exp(s)
            p = e * pl.reciprocal(jnp.sum(e, axis=-1, keepdims=True), approx=True)
            heads.append(_mm(p, vh))                   # (T, d_k)

        ctx = jnp.concatenate(heads, axis=-1)          # (T, D) head-context slab
        x = x + _mm(ctx, wo) + bo                      # single K=D output projection

        # ---------- position-wise feed-forward (pre-LN) ----------
        ln2 = _layer_norm(x, ln2_g, ln2_b)
        h1 = jnp.maximum(_mm(ln2, w1) + b1, 0.0)
        o_ref[n] = x + _mm(h1, w2) + b2

    # ---- after_norm only on the last layer step (normalize_before=True) ----
    @pl.when(layer == pl.num_programs(1) - 1)
    def _after():
        g = gaft_ref[0]
        b = baft_ref[0]
        for n in range(Nb):
            o_ref[n] = _layer_norm(o_ref[n], g, b)


# ------------------------------ wrapper / specs ------------------------------

def transformer_encoder_forward(xs, params, attention_heads, maxlen=1000,
                                batch_block=None):
    """xs: (N, T, idim) float32.  Returns (xs_out (N, T, D) float32, kd_values)."""
    N, T, _ = xs.shape
    D = params["embed_w"].shape[1]
    L = params["wqkv"].shape[0]

    # Batch block: amortizes per-layer weight DMA across Nb sequences (grid=(N//Nb, L)).
    if batch_block is None:
        batch_block = next(nb for nb in (4, 2, 1) if N % nb == 0)
    Nb = batch_block
    assert N % Nb == 0, "batch size must be divisible by the batch block"

    # Relative-position rows, ordered so the in-kernel skew is a right-roll of row i
    # by exactly i:  row m <-> offset -m for m <= T, offset 2T - m for m > T.
    # Only (2T, d_k) is materialized; the full (T, T, d_k) pos_k never is.
    m = jnp.arange(2 * T)
    off = jnp.where(m <= T, -m, 2 * T - m)
    idx = jnp.clip(off, -maxlen, maxlen - 1) + maxlen
    pe = params["pe_k"][idx]                            # (2T, d_k) f32

    def batch_spec(shape):
        n = len(shape) - 1
        return pl.BlockSpec((Nb,) + tuple(shape[1:]),
                            lambda b, l, _n=n: (b,) + (0,) * _n)

    def layer_spec(shape):
        n = len(shape) - 1
        return pl.BlockSpec((1,) + tuple(shape[1:]),
                            lambda b, l, _n=n: (l,) + (0,) * _n)

    def const_spec(shape):
        n = len(shape)
        return pl.BlockSpec(tuple(shape),
                            lambda b, l, _n=n: (0,) * _n)

    const_args = (pe, params["embed_w"], params["embed_b"], params["embed_g"],
                  params["embed_beta"], params["after_g"], params["after_b"])
    layer_args = (params["ln1_g"], params["ln1_b"], params["wqkv"], params["bqkv"],
                  params["wo"], params["bo"], params["ln2_g"], params["ln2_b"],
                  params["w1"], params["b1"], params["w2"], params["b2"])

    kern = functools.partial(encoder_kernel, n_head=attention_heads)
    out = pl.pallas_call(
        kern,
        out_shape=jax.ShapeDtypeStruct((N, T, D), jnp.float32),
        grid=(N // Nb, L),
        in_specs=[batch_spec(xs.shape)]
                 + [const_spec(a.shape) for a in const_args]
                 + [layer_spec(a.shape) for a in layer_args],
        out_specs=pl.BlockSpec((Nb, T, D), lambda b, l: (b, 0, 0)),
        compiler_params=pltpu.CompilerParams(
            dimension_semantics=("parallel", "arbitrary"),
            vmem_limit_bytes=48 * 1024 * 1024),
    )(xs, *const_args, *layer_args)
    return out, {"output": {}}


# ----------------------------- parameter construction -----------------------------

def init_params(key, idim, attention_dim, attention_heads, linear_units,
                num_blocks, maxlen=1000):
    D, F, L = attention_dim, linear_units, num_blocks
    d_k = D // attention_heads
    keys = jax.random.split(key, 8)

    def w(k, shape, fan_in):
        return (jax.random.normal(k, shape, jnp.float32)
                / math.sqrt(fan_in)).astype(jnp.bfloat16)

    return {
        # embed: Linear(idim, D) + LayerNorm(D)
        "embed_w": w(keys[0], (idim, D), idim),
        "embed_b": jnp.zeros((1, D), jnp.float32),
        "embed_g": jnp.ones((1, D), jnp.float32),
        "embed_beta": jnp.zeros((1, D), jnp.float32),
        # relative positional embedding table: Embedding(2*maxlen, d_k)
        "pe_k": 0.02 * jax.random.normal(keys[1], (2 * maxlen, d_k), jnp.float32),
        # after_norm
        "after_g": jnp.ones((1, D), jnp.float32),
        "after_b": jnp.zeros((1, D), jnp.float32),
        # per-layer weights, stacked along a leading layer axis
        "ln1_g": jnp.ones((L, 1, D), jnp.float32),
        "ln1_b": jnp.zeros((L, 1, D), jnp.float32),
        "wqkv": w(keys[2], (L, D, 3 * D), D),
        "bqkv": jnp.zeros((L, 1, 3 * D), jnp.float32),
        "wo": w(keys[3], (L, D, D), D),
        "bo": jnp.zeros((L, 1, D), jnp.float32),
        "ln2_g": jnp.ones((L, 1, D), jnp.float32),
        "ln2_b": jnp.zeros((L, 1, D), jnp.float32),
        "w1": w(keys[4], (L, D, F), D),
        "b1": jnp.zeros((L, 1, F), jnp.float32),
        "w2": w(keys[5], (L, F, D), F),
        "b2": jnp.zeros((L, 1, D), jnp.float32),
    }


# ------------------------------------ main ------------------------------------

if __name__ == "__main__":
    # Small configuration consistent with the module defaults (scaled down).
    # T=8 is below the (8,128) alignment threshold, so the skew uses the fallback
    # path; the single-rotate path activates automatically for aligned T (e.g. 128).
    N, T = 2, 8
    idim = 16
    attention_dim = 32
    attention_heads = 4
    linear_units = 64
    num_blocks = 2

    key = jax.random.PRNGKey(0)
    k_x, k_p = jax.random.split(key)
    xs = jax.random.normal(k_x, (N, T, idim), jnp.float32)

    params = init_params(k_p, idim, attention_dim, attention_heads,
                         linear_units, num_blocks)

    out, kd = transformer_encoder_forward(xs, params, attention_heads)
    out = jax.block_until_ready(out)

    assert out.shape == (N, T, attention_dim)
    assert out.dtype == jnp.float32
    assert bool(jnp.all(jnp.isfinite(out)))
    print("KERNEL_OK")
</pallas_src>

<mosaic_0001>
module attributes {stable_mosaic.version = 11 : i64} {
  func.func @encoder_kernel(%arg0: i32, %arg1: i32, %arg2: memref<2x8x16xf32, #tpu.memory_space<vmem>>, %arg3: memref<16x8xf32, #tpu.memory_space<vmem>>, %arg4: memref<16x32xbf16, #tpu.memory_space<vmem>>, %arg5: memref<1x32xf32, #tpu.memory_space<vmem>>, %arg6: memref<1x32xf32, #tpu.memory_space<vmem>>, %arg7: memref<1x32xf32, #tpu.memory_space<vmem>>, %arg8: memref<1x32xf32, #tpu.memory_space<vmem>>, %arg9: memref<1x32xf32, #tpu.memory_space<vmem>>, %arg10: memref<1x1x32xf32, #tpu.memory_space<vmem>>, %arg11: memref<1x1x32xf32, #tpu.memory_space<vmem>>, %arg12: memref<1x32x96xbf16, #tpu.memory_space<vmem>>, %arg13: memref<1x1x96xf32, #tpu.memory_space<vmem>>, %arg14: memref<1x32x32xbf16, #tpu.memory_space<vmem>>, %arg15: memref<1x1x32xf32, #tpu.memory_space<vmem>>, %arg16: memref<1x1x32xf32, #tpu.memory_space<vmem>>, %arg17: memref<1x1x32xf32, #tpu.memory_space<vmem>>, %arg18: memref<1x32x64xbf16, #tpu.memory_space<vmem>>, %arg19: memref<1x1x64xf32, #tpu.memory_space<vmem>>, %arg20: memref<1x64x32xbf16, #tpu.memory_space<vmem>>, %arg21: memref<1x1x32xf32, #tpu.memory_space<vmem>>, %arg22: memref<2x8x32xf32, #tpu.memory_space<vmem>>) attributes {dimension_semantics = [#tpu.dimension_semantics<parallel>, #tpu.dimension_semantics<arbitrary>], iteration_bounds = array<i64: 1, 2>, scalar_prefetch = 0 : i64, scratch_operands = 0 : i64, tpu.core_type = #tpu.core_type<tc>, window_params = [{transform_indices = @transform_0, window_bounds = array<i64: 2, 8, 16>}, {pipeline_mode = #tpu.pipeline_mode<synchronous>, transform_indices = @transform_1, window_bounds = array<i64: 16, 8>}, {pipeline_mode = #tpu.pipeline_mode<synchronous>, transform_indices = @transform_2, window_bounds = array<i64: 16, 32>}, {pipeline_mode = #tpu.pipeline_mode<synchronous>, transform_indices = @transform_3, window_bounds = array<i64: 1, 32>}, {pipeline_mode = #tpu.pipeline_mode<synchronous>, transform_indices = @transform_4, window_bounds = array<i64: 1, 32>}, {pipeline_mode = #tpu.pipeline_mode<synchronous>, transform_indices = @transform_5, window_bounds = array<i64: 1, 32>}, {pipeline_mode = #tpu.pipeline_mode<synchronous>, transform_indices = @transform_6, window_bounds = array<i64: 1, 32>}, {pipeline_mode = #tpu.pipeline_mode<synchronous>, transform_indices = @transform_7, window_bounds = array<i64: 1, 32>}, {transform_indices = @transform_8, window_bounds = array<i64: 1, 1, 32>}, {transform_indices = @transform_9, window_bounds = array<i64: 1, 1, 32>}, {transform_indices = @transform_10, window_bounds = array<i64: 1, 32, 96>}, {transform_indices = @transform_11, window_bounds = array<i64: 1, 1, 96>}, {transform_indices = @transform_12, window_bounds = array<i64: 1, 32, 32>}, {transform_indices = @transform_13, window_bounds = array<i64: 1, 1, 32>}, {transform_indices = @transform_14, window_bounds = array<i64: 1, 1, 32>}, {transform_indices = @transform_15, window_bounds = array<i64: 1, 1, 32>}, {transform_indices = @transform_16, window_bounds = array<i64: 1, 32, 64>}, {transform_indices = @transform_17, window_bounds = array<i64: 1, 1, 64>}, {transform_indices = @transform_18, window_bounds = array<i64: 1, 64, 32>}, {transform_indices = @transform_19, window_bounds = array<i64: 1, 1, 32>}, {transform_indices = @transform_20, window_bounds = array<i64: 2, 8, 32>}]} {
    %c0_i32 = arith.constant 0 : i32
    %0 = arith.cmpi eq, %arg1, %c0_i32 : i32
    %1 = arith.extui %0 : i1 to i32
    %c0_i32_0 = arith.constant 0 : i32
    %2 = arith.cmpi ne, %1, %c0_i32_0 : i32
    scf.if %2 {
      %c0_190 = arith.constant 0 : index
      %c0_191 = arith.constant 0 : index
      %691 = vector.load %arg4[%c0_190, %c0_191] : memref<16x32xbf16, #tpu.memory_space<vmem>>, vector<16x32xbf16>
      %c0_192 = arith.constant 0 : index
      %c0_193 = arith.constant 0 : index
      %692 = vector.load %arg5[%c0_192, %c0_193] : memref<1x32xf32, #tpu.memory_space<vmem>>, vector<1x32xf32>
      %693 = vector.shape_cast %692 : vector<1x32xf32> to vector<32xf32>
      %c0_194 = arith.constant 0 : index
      %c0_195 = arith.constant 0 : index
      %694 = vector.load %arg6[%c0_194, %c0_195] : memref<1x32xf32, #tpu.memory_space<vmem>>, vector<1x32xf32>
      %695 = vector.shape_cast %694 : vector<1x32xf32> to vector<32xf32>
      %c0_196 = arith.constant 0 : index
      %c0_197 = arith.constant 0 : index
      %696 = vector.load %arg7[%c0_196, %c0_197] : memref<1x32xf32, #tpu.memory_space<vmem>>, vector<1x32xf32>
      %697 = vector.shape_cast %696 : vector<1x32xf32> to vector<32xf32>
      %c0_198 = arith.constant 0 : index
      %c0_199 = arith.constant 0 : index
      %c0_200 = arith.constant 0 : index
      %698 = vector.load %arg2[%c0_198, %c0_199, %c0_200] : memref<2x8x16xf32, #tpu.memory_space<vmem>>, vector<1x8x16xf32>
      %699 = vector.shape_cast %698 : vector<1x8x16xf32> to vector<8x16xf32>
      %700 = arith.truncf %699 : vector<8x16xf32> to vector<8x16xbf16>
      %cst_201 = arith.constant dense<0.000000e+00> : vector<8x32xf32>
      %701 = tpu.matmul %700, %691, %cst_201 {dimension_numbers = #tpu.dot_dimension_numbers<[1], [0], [0], [1], [0, 0, 1, 1], [], []>} : vector<8x16xbf16>, vector<16x32xbf16>, vector<8x32xf32> -> vector<8x32xf32>
      %702 = vector.shape_cast %693 : vector<32xf32> to vector<1x32xf32>
      %703 = vector.broadcast %702 : vector<1x32xf32> to vector<8x32xf32>
      %704 = arith.addf %701, %703 : vector<8x32xf32>
      %cst_202 = arith.constant dense<0.000000e+00> : vector<8xf32>
      %705 = vector.multi_reduction <add>, %704, %cst_202 [1] : vector<8x32xf32> to vector<8xf32>
      %706 = vector.shape_cast %705 : vector<8xf32> to vector<8x1xf32>
      %cst_203 = arith.constant 3.200000e+01 : f32
      %707 = vector.broadcast %cst_203 : f32 to vector<8x1xf32>
      %708 = arith.divf %706, %707 : vector<8x1xf32>
      %709 = vector.broadcast %708 : vector<8x1xf32> to vector<8x32xf32>
      %710 = arith.subf %704, %709 : vector<8x32xf32>
      %711 = arith.mulf %710, %710 : vector<8x32xf32>
      %cst_204 = arith.constant dense<0.000000e+00> : vector<8xf32>
      %712 = vector.multi_reduction <add>, %711, %cst_204 [1] : vector<8x32xf32> to vector<8xf32>
      %713 = vector.shape_cast %712 : vector<8xf32> to vector<8x1xf32>
      %cst_205 = arith.constant 3.200000e+01 : f32
      %714 = vector.broadcast %cst_205 : f32 to vector<8x1xf32>
      %715 = arith.divf %713, %714 : vector<8x1xf32>
      %716 = vector.broadcast %708 : vector<8x1xf32> to vector<8x32xf32>
      %717 = arith.subf %704, %716 : vector<8x32xf32>
      %cst_206 = arith.constant 9.99999974E-6 : f32
      %718 = vector.broadcast %cst_206 : f32 to vector<8x1xf32>
      %719 = arith.addf %715, %718 : vector<8x1xf32>
      %720 = math.rsqrt %719 : vector<8x1xf32>
      %721 = vector.broadcast %720 : vector<8x1xf32> to vector<8x32xf32>
      %722 = arith.mulf %717, %721 : vector<8x32xf32>
      %723 = vector.shape_cast %695 : vector<32xf32> to vector<1x32xf32>
      %724 = vector.broadcast %723 : vector<1x32xf32> to vector<8x32xf32>
      %725 = arith.mulf %722, %724 : vector<8x32xf32>
      %726 = vector.shape_cast %697 : vector<32xf32> to vector<1x32xf32>
      %727 = vector.broadcast %726 : vector<1x32xf32> to vector<8x32xf32>
      %728 = arith.addf %725, %727 : vector<8x32xf32>
      %cst_207 = arith.constant 0.000000e+00 : f32
      %729 = vector.broadcast %cst_207 : f32 to vector<8x32xf32>
      %730 = arith.maximumf %728, %729 : vector<8x32xf32>
      %c0_208 = arith.constant 0 : index
      %c0_209 = arith.constant 0 : index
      %c0_210 = arith.constant 0 : index
      %731 = vector.load %arg22[%c0_208, %c0_209, %c0_210] : memref<2x8x32xf32, #tpu.memory_space<vmem>>, vector<1x8x32xf32>
      %732 = vector.shape_cast %731 : vector<1x8x32xf32> to vector<8x32xf32>
      %733 = vector.shape_cast %730 : vector<8x32xf32> to vector<1x8x32xf32>
      tpu.vector_store %arg22[%c0_208, %c0_209, %c0_210], %733 {strides = array<i32>} : memref<2x8x32xf32, #tpu.memory_space<vmem>>, vector<1x8x32xf32>,
      %c1_211 = arith.constant 1 : index
      %c0_212 = arith.constant 0 : index
      %c0_213 = arith.constant 0 : index
      %734 = vector.load %arg2[%c1_211, %c0_212, %c0_213] : memref<2x8x16xf32, #tpu.memory_space<vmem>>, vector<1x8x16xf32>
      %735 = vector.shape_cast %734 : vector<1x8x16xf32> to vector<8x16xf32>
      %736 = arith.truncf %735 : vector<8x16xf32> to vector<8x16xbf16>
      %cst_214 = arith.constant dense<0.000000e+00> : vector<8x32xf32>
      %737 = tpu.matmul %736, %691, %cst_214 {dimension_numbers = #tpu.dot_dimension_numbers<[1], [0], [0], [1], [0, 0, 1, 1], [], []>} : vector<8x16xbf16>, vector<16x32xbf16>, vector<8x32xf32> -> vector<8x32xf32>
      %738 = vector.shape_cast %693 : vector<32xf32> to vector<1x32xf32>
      %739 = vector.broadcast %738 : vector<1x32xf32> to vector<8x32xf32>
      %740 = arith.addf %737, %739 : vector<8x32xf32>
      %cst_215 = arith.constant dense<0.000000e+00> : vector<8xf32>
      %741 = vector.multi_reduction <add>, %740, %cst_215 [1] : vector<8x32xf32> to vector<8xf32>
      %742 = vector.shape_cast %741 : vector<8xf32> to vector<8x1xf32>
      %cst_216 = arith.constant 3.200000e+01 : f32
      %743 = vector.broadcast %cst_216 : f32 to vector<8x1xf32>
      %744 = arith.divf %742, %743 : vector<8x1xf32>
      %745 = vector.broadcast %744 : vector<8x1xf32> to vector<8x32xf32>
      %746 = arith.subf %740, %745 : vector<8x32xf32>
      %747 = arith.mulf %746, %746 : vector<8x32xf32>
      %cst_217 = arith.constant dense<0.000000e+00> : vector<8xf32>
      %748 = vector.multi_reduction <add>, %747, %cst_217 [1] : vector<8x32xf32> to vector<8xf32>
      %749 = vector.shape_cast %748 : vector<8xf32> to vector<8x1xf32>
      %cst_218 = arith.constant 3.200000e+01 : f32
      %750 = vector.broadcast %cst_218 : f32 to vector<8x1xf32>
      %751 = arith.divf %749, %750 : vector<8x1xf32>
      %752 = vector.broadcast %744 : vector<8x1xf32> to vector<8x32xf32>
      %753 = arith.subf %740, %752 : vector<8x32xf32>
      %cst_219 = arith.constant 9.99999974E-6 : f32
      %754 = vector.broadcast %cst_219 : f32 to vector<8x1xf32>
      %755 = arith.addf %751, %754 : vector<8x1xf32>
      %756 = math.rsqrt %755 : vector<8x1xf32>
      %757 = vector.broadcast %756 : vector<8x1xf32> to vector<8x32xf32>
      %758 = arith.mulf %753, %757 : vector<8x32xf32>
      %759 = vector.shape_cast %695 : vector<32xf32> to vector<1x32xf32>
      %760 = vector.broadcast %759 : vector<1x32xf32> to vector<8x32xf32>
      %761 = arith.mulf %758, %760 : vector<8x32xf32>
      %762 = vector.shape_cast %697 : vector<32xf32> to vector<1x32xf32>
      %763 = vector.broadcast %762 : vector<1x32xf32> to vector<8x32xf32>
      %764 = arith.addf %761, %763 : vector<8x32xf32>
      %cst_220 = arith.constant 0.000000e+00 : f32
      %765 = vector.broadcast %cst_220 : f32 to vector<8x32xf32>
      %766 = arith.maximumf %764, %765 : vector<8x32xf32>
      %c1_221 = arith.constant 1 : index
      %c0_222 = arith.constant 0 : index
      %c0_223 = arith.constant 0 : index
      %767 = vector.load %arg22[%c1_221, %c0_222, %c0_223] : memref<2x8x32xf32, #tpu.memory_space<vmem>>, vector<1x8x32xf32>
      %768 = vector.shape_cast %767 : vector<1x8x32xf32> to vector<8x32xf32>
      %769 = vector.shape_cast %766 : vector<8x32xf32> to vector<1x8x32xf32>
      tpu.vector_store %arg22[%c1_221, %c0_222, %c0_223], %769 {strides = array<i32>} : memref<2x8x32xf32, #tpu.memory_space<vmem>>, vector<1x8x32xf32>,
    } else {
    }
    %c0 = arith.constant 0 : index
    %c0_1 = arith.constant 0 : index
    %3 = vector.load %arg3[%c0, %c0_1] : memref<16x8xf32, #tpu.memory_space<vmem>>, vector<16x8xf32>
    %c0_2 = arith.constant 0 : index
    %c0_3 = arith.constant 0 : index
    %c0_4 = arith.constant 0 : index
    %4 = vector.load %arg10[%c0_2, %c0_3, %c0_4] : memref<1x1x32xf32, #tpu.memory_space<vmem>>, vector<1x1x32xf32>
    %5 = vector.shape_cast %4 : vector<1x1x32xf32> to vector<32xf32>
    %c0_5 = arith.constant 0 : index
    %c0_6 = arith.constant 0 : index
    %c0_7 = arith.constant 0 : index
    %6 = vector.load %arg11[%c0_5, %c0_6, %c0_7] : memref<1x1x32xf32, #tpu.memory_space<vmem>>, vector<1x1x32xf32>
    %7 = vector.shape_cast %6 : vector<1x1x32xf32> to vector<32xf32>
    %c0_8 = arith.constant 0 : index
    %c0_9 = arith.constant 0 : index
    %c0_10 = arith.constant 0 : index
    %8 = vector.load %arg16[%c0_8, %c0_9, %c0_10] : memref<1x1x32xf32, #tpu.memory_space<vmem>>, vector<1x1x32xf32>
    %9 = vector.shape_cast %8 : vector<1x1x32xf32> to vector<32xf32>
    %c0_11 = arith.constant 0 : index
    %c0_12 = arith.constant 0 : index
    %c0_13 = arith.constant 0 : index
    %10 = vector.load %arg17[%c0_11, %c0_12, %c0_13] : memref<1x1x32xf32, #tpu.memory_space<vmem>>, vector<1x1x32xf32>
    %11 = vector.shape_cast %10 : vector<1x1x32xf32> to vector<32xf32>
    %c0_14 = arith.constant 0 : index
    %c0_15 = arith.constant 0 : index
    %c0_16 = arith.constant 0 : index
    %12 = vector.load %arg12[%c0_14, %c0_15, %c0_16] : memref<1x32x96xbf16, #tpu.memory_space<vmem>>, vector<1x32x96xbf16>
    %13 = vector.shape_cast %12 : vector<1x32x96xbf16> to vector<32x96xbf16>
    %c0_17 = arith.constant 0 : index
    %c0_18 = arith.constant 0 : index
    %c0_19 = arith.constant 0 : index
    %14 = vector.load %arg13[%c0_17, %c0_18, %c0_19] : memref<1x1x96xf32, #tpu.memory_space<vmem>>, vector<1x1x96xf32>
    %15 = vector.shape_cast %14 : vector<1x1x96xf32> to vector<96xf32>
    %c0_20 = arith.constant 0 : index
    %c0_21 = arith.constant 0 : index
    %c0_22 = arith.constant 0 : index
    %16 = vector.load %arg14[%c0_20, %c0_21, %c0_22] : memref<1x32x32xbf16, #tpu.memory_space<vmem>>, vector<1x32x32xbf16>
    %17 = vector.shape_cast %16 : vector<1x32x32xbf16> to vector<32x32xbf16>
    %c0_23 = arith.constant 0 : index
    %c0_24 = arith.constant 0 : index
    %c0_25 = arith.constant 0 : index
    %18 = vector.load %arg15[%c0_23, %c0_24, %c0_25] : memref<1x1x32xf32, #tpu.memory_space<vmem>>, vector<1x1x32xf32>
    %19 = vector.shape_cast %18 : vector<1x1x32xf32> to vector<32xf32>
    %c0_26 = arith.constant 0 : index
    %c0_27 = arith.constant 0 : index
    %c0_28 = arith.constant 0 : index
    %20 = vector.load %arg18[%c0_26, %c0_27, %c0_28] : memref<1x32x64xbf16, #tpu.memory_space<vmem>>, vector<1x32x64xbf16>
    %21 = vector.shape_cast %20 : vector<1x32x64xbf16> to vector<32x64xbf16>
    %c0_29 = arith.constant 0 : index
    %c0_30 = arith.constant 0 : index
    %c0_31 = arith.constant 0 : index
    %22 = vector.load %arg19[%c0_29, %c0_30, %c0_31] : memref<1x1x64xf32, #tpu.memory_space<vmem>>, vector<1x1x64xf32>
    %23 = vector.shape_cast %22 : vector<1x1x64xf32> to vector<64xf32>
    %c0_32 = arith.constant 0 : index
    %c0_33 = arith.constant 0 : index
    %c0_34 = arith.constant 0 : index
    %24 = vector.load %arg20[%c0_32, %c0_33, %c0_34] : memref<1x64x32xbf16, #tpu.memory_space<vmem>>, vector<1x64x32xbf16>
    %25 = vector.shape_cast %24 : vector<1x64x32xbf16> to vector<64x32xbf16>
    %c0_35 = arith.constant 0 : index
    %c0_36 = arith.constant 0 : index
    %c0_37 = arith.constant 0 : index
    %26 = vector.load %arg21[%c0_35, %c0_36, %c0_37] : memref<1x1x32xf32, #tpu.memory_space<vmem>>, vector<1x1x32xf32>
    %27 = vector.shape_cast %26 : vector<1x1x32xf32> to vector<32xf32>
    %c0_38 = arith.constant 0 : index
    %c0_39 = arith.constant 0 : index
    %c0_40 = arith.constant 0 : index
    %28 = vector.load %arg22[%c0_38, %c0_39, %c0_40] : memref<2x8x32xf32, #tpu.memory_space<vmem>>, vector<1x8x32xf32>
    %29 = vector.shape_cast %28 : vector<1x8x32xf32> to vector<8x32xf32>
    %cst = arith.constant dense<0.000000e+00> : vector<8xf32>
    %30 = vector.multi_reduction <add>, %29, %cst [1] : vector<8x32xf32> to vector<8xf32>
    %31 = vector.shape_cast %30 : vector<8xf32> to vector<8x1xf32>
    %cst_41 = arith.constant 3.200000e+01 : f32
    %32 = vector.broadcast %cst_41 : f32 to vector<8x1xf32>
    %33 = arith.divf %31, %32 : vector<8x1xf32>
    %34 = vector.broadcast %33 : vector<8x1xf32> to vector<8x32xf32>
    %35 = arith.subf %29, %34 : vector<8x32xf32>
    %36 = arith.mulf %35, %35 : vector<8x32xf32>
    %cst_42 = arith.constant dense<0.000000e+00> : vector<8xf32>
    %37 = vector.multi_reduction <add>, %36, %cst_42 [1] : vector<8x32xf32> to vector<8xf32>
    %38 = vector.shape_cast %37 : vector<8xf32> to vector<8x1xf32>
    %cst_43 = arith.constant 3.200000e+01 : f32
    %39 = vector.broadcast %cst_43 : f32 to vector<8x1xf32>
    %40 = arith.divf %38, %39 : vector<8x1xf32>
    %41 = vector.broadcast %33 : vector<8x1xf32> to vector<8x32xf32>
    %42 = arith.subf %29, %41 : vector<8x32xf32>
    %cst_44 = arith.constant 9.99999974E-6 : f32
    %43 = vector.broadcast %cst_44 : f32 to vector<8x1xf32>
    %44 = arith.addf %40, %43 : vector<8x1xf32>
    %45 = math.rsqrt %44 : vector<8x1xf32>
    %46 = vector.broadcast %45 : vector<8x1xf32> to vector<8x32xf32>
    %47 = arith.mulf %42, %46 : vector<8x32xf32>
    %48 = vector.shape_cast %5 : vector<32xf32> to vector<1x32xf32>
    %49 = vector.broadcast %48 : vector<1x32xf32> to vector<8x32xf32>
    %50 = arith.mulf %47, %49 : vector<8x32xf32>
    %51 = vector.shape_cast %7 : vector<32xf32> to vector<1x32xf32>
    %52 = vector.broadcast %51 : vector<1x32xf32> to vector<8x32xf32>
    %53 = arith.addf %50, %52 : vector<8x32xf32>
    %54 = arith.truncf %53 : vector<8x32xf32> to vector<8x32xbf16>
    %cst_45 = arith.constant dense<0.000000e+00> : vector<8x96xf32>
    %55 = tpu.matmul %54, %13, %cst_45 {dimension_numbers = #tpu.dot_dimension_numbers<[1], [0], [0], [1], [0, 0, 1, 1], [], []>} : vector<8x32xbf16>, vector<32x96xbf16>, vector<8x96xf32> -> vector<8x96xf32>
    %56 = vector.shape_cast %15 : vector<96xf32> to vector<1x96xf32>
    %57 = vector.broadcast %56 : vector<1x96xf32> to vector<8x96xf32>
    %58 = arith.addf %55, %57 : vector<8x96xf32>
    %59 = vector.extract_strided_slice %58 {offsets = [0, 0], sizes = [8, 8], strides = [1, 1]} : vector<8x96xf32> to vector<8x8xf32>
    %cst_46 = arith.constant 0.353553385 : f32
    %60 = vector.broadcast %cst_46 : f32 to vector<8x8xf32>
    %61 = arith.mulf %59, %60 : vector<8x8xf32>
    %62 = vector.extract_strided_slice %58 {offsets = [0, 32], sizes = [8, 8], strides = [1, 1]} : vector<8x96xf32> to vector<8x8xf32>
    %63 = vector.extract_strided_slice %58 {offsets = [0, 64], sizes = [8, 8], strides = [1, 1]} : vector<8x96xf32> to vector<8x8xf32>
    %64 = tpu.concatenate %62, %3 in 0 : vector<8x8xf32>, vector<16x8xf32> -> vector<24x8xf32>
    %65 = arith.truncf %61 : vector<8x8xf32> to vector<8x8xbf16>
    %66 = arith.truncf %64 : vector<24x8xf32> to vector<24x8xbf16>
    %cst_47 = arith.constant dense<0.000000e+00> : vector<8x24xf32>
    %67 = tpu.matmul %65, %66, %cst_47 {dimension_numbers = #tpu.dot_dimension_numbers<[1], [1], [0], [0], [0, 0, 1, 0], [], []>} : vector<8x8xbf16>, vector<24x8xbf16>, vector<8x24xf32> -> vector<8x24xf32>
    %68 = vector.extract_strided_slice %67 {offsets = [0, 0], sizes = [8, 8], strides = [1, 1]} : vector<8x24xf32> to vector<8x8xf32>
    %69 = vector.extract_strided_slice %67 {offsets = [0, 8], sizes = [8, 16], strides = [1, 1]} : vector<8x24xf32> to vector<8x16xf32>
    %70 = tpu.iota {dimensions = array<i32: 0>} : vector<8x1xi32>
    %71 = vector.extract_strided_slice %69 {offsets = [0, 15], sizes = [8, 1], strides = [1, 1]} : vector<8x16xf32> to vector<8x1xf32>
    %72 = vector.extract_strided_slice %69 {offsets = [0, 0], sizes = [8, 15], strides = [1, 1]} : vector<8x16xf32> to vector<8x15xf32>
    %73 = tpu.concatenate %71, %72 in 1 : vector<8x1xf32>, vector<8x15xf32> -> vector<8x16xf32>
    %c0_i32_48 = arith.constant 0 : i32
    %74 = vector.broadcast %c0_i32_48 : i32 to vector<8x1xi32>
    %75 = arith.shrsi %70, %74 : vector<8x1xi32>
    %c1_i32 = arith.constant 1 : i32
    %76 = vector.broadcast %c1_i32 : i32 to vector<8x1xi32>
    %77 = arith.andi %75, %76 : vector<8x1xi32>
    %c1_i32_49 = arith.constant 1 : i32
    %78 = vector.broadcast %c1_i32_49 : i32 to vector<8x1xi32>
    %79 = arith.cmpi eq, %77, %78 : vector<8x1xi32>
    %80 = vector.shape_cast %79 : vector<8x1xi1> to vector<8x1xi1>
    %81 = vector.broadcast %80 : vector<8x1xi1> to vector<8x16xi1>
    %82 = arith.select %81, %73, %69 : vector<8x16xi1>, vector<8x16xf32>
    %83 = vector.extract_strided_slice %82 {offsets = [0, 14], sizes = [8, 2], strides = [1, 1]} : vector<8x16xf32> to vector<8x2xf32>
    %84 = vector.extract_strided_slice %82 {offsets = [0, 0], sizes = [8, 14], strides = [1, 1]} : vector<8x16xf32> to vector<8x14xf32>
    %85 = tpu.concatenate %83, %84 in 1 : vector<8x2xf32>, vector<8x14xf32> -> vector<8x16xf32>
    %c1_i32_50 = arith.constant 1 : i32
    %86 = vector.broadcast %c1_i32_50 : i32 to vector<8x1xi32>
    %87 = arith.shrsi %70, %86 : vector<8x1xi32>
    %c1_i32_51 = arith.constant 1 : i32
    %88 = vector.broadcast %c1_i32_51 : i32 to vector<8x1xi32>
    %89 = arith.andi %87, %88 : vector<8x1xi32>
    %c1_i32_52 = arith.constant 1 : i32
    %90 = vector.broadcast %c1_i32_52 : i32 to vector<8x1xi32>
    %91 = arith.cmpi eq, %89, %90 : vector<8x1xi32>
    %92 = vector.shape_cast %91 : vector<8x1xi1> to vector<8x1xi1>
    %93 = vector.broadcast %92 : vector<8x1xi1> to vector<8x16xi1>
    %94 = arith.select %93, %85, %82 : vector<8x16xi1>, vector<8x16xf32>
    %95 = vector.extract_strided_slice %94 {offsets = [0, 12], sizes = [8, 4], strides = [1, 1]} : vector<8x16xf32> to vector<8x4xf32>
    %96 = vector.extract_strided_slice %94 {offsets = [0, 0], sizes = [8, 12], strides = [1, 1]} : vector<8x16xf32> to vector<8x12xf32>
    %97 = tpu.concatenate %95, %96 in 1 : vector<8x4xf32>, vector<8x12xf32> -> vector<8x16xf32>
    %c2_i32 = arith.constant 2 : i32
    %98 = vector.broadcast %c2_i32 : i32 to vector<8x1xi32>
    %99 = arith.shrsi %70, %98 : vector<8x1xi32>
    %c1_i32_53 = arith.constant 1 : i32
    %100 = vector.broadcast %c1_i32_53 : i32 to vector<8x1xi32>
    %101 = arith.andi %99, %100 : vector<8x1xi32>
    %c1_i32_54 = arith.constant 1 : i32
    %102 = vector.broadcast %c1_i32_54 : i32 to vector<8x1xi32>
    %103 = arith.cmpi eq, %101, %102 : vector<8x1xi32>
    %104 = vector.shape_cast %103 : vector<8x1xi1> to vector<8x1xi1>
    %105 = vector.broadcast %104 : vector<8x1xi1> to vector<8x16xi1>
    %106 = arith.select %105, %97, %94 : vector<8x16xi1>, vector<8x16xf32>
    %107 = vector.extract_strided_slice %106 {offsets = [0, 0], sizes = [8, 8], strides = [1, 1]} : vector<8x16xf32> to vector<8x8xf32>
    %108 = arith.addf %68, %107 : vector<8x8xf32>
    %cst_55 = arith.constant dense<0xFF800000> : vector<8xf32>
    %109 = vector.multi_reduction <maximumf>, %108, %cst_55 [1] : vector<8x8xf32> to vector<8xf32>
    %110 = vector.shape_cast %109 : vector<8xf32> to vector<8x1xf32>
    %111 = vector.broadcast %110 : vector<8x1xf32> to vector<8x8xf32>
    %112 = arith.subf %108, %111 : vector<8x8xf32>
    %113 = math.exp %112 : vector<8x8xf32>
    %cst_56 = arith.constant dense<0.000000e+00> : vector<8xf32>
    %114 = vector.multi_reduction <add>, %113, %cst_56 [1] : vector<8x8xf32> to vector<8xf32>
    %115 = vector.shape_cast %114 : vector<8xf32> to vector<8x1xf32>
    %116 = tpu.reciprocal %115 {approx = true} : vector<8x1xf32> -> vector<8x1xf32>
    %117 = vector.broadcast %116 : vector<8x1xf32> to vector<8x8xf32>
    %118 = arith.mulf %113, %117 : vector<8x8xf32>
    %119 = arith.truncf %118 : vector<8x8xf32> to vector<8x8xbf16>
    %120 = arith.truncf %63 : vector<8x8xf32> to vector<8x8xbf16>
    %cst_57 = arith.constant dense<0.000000e+00> : vector<8x8xf32>
    %121 = tpu.matmul %119, %120, %cst_57 {dimension_numbers = #tpu.dot_dimension_numbers<[1], [0], [0], [1], [0, 0, 1, 1], [], []>} : vector<8x8xbf16>, vector<8x8xbf16>, vector<8x8xf32> -> vector<8x8xf32>
    %122 = vector.extract_strided_slice %58 {offsets = [0, 8], sizes = [8, 8], strides = [1, 1]} : vector<8x96xf32> to vector<8x8xf32>
    %cst_58 = arith.constant 0.353553385 : f32
    %123 = vector.broadcast %cst_58 : f32 to vector<8x8xf32>
    %124 = arith.mulf %122, %123 : vector<8x8xf32>
    %125 = vector.extract_strided_slice %58 {offsets = [0, 40], sizes = [8, 8], strides = [1, 1]} : vector<8x96xf32> to vector<8x8xf32>
    %126 = vector.extract_strided_slice %58 {offsets = [0, 72], sizes = [8, 8], strides = [1, 1]} : vector<8x96xf32> to vector<8x8xf32>
    %127 = tpu.concatenate %125, %3 in 0 : vector<8x8xf32>, vector<16x8xf32> -> vector<24x8xf32>
    %128 = arith.truncf %124 : vector<8x8xf32> to vector<8x8xbf16>
    %129 = arith.truncf %127 : vector<24x8xf32> to vector<24x8xbf16>
    %cst_59 = arith.constant dense<0.000000e+00> : vector<8x24xf32>
    %130 = tpu.matmul %128, %129, %cst_59 {dimension_numbers = #tpu.dot_dimension_numbers<[1], [1], [0], [0], [0, 0, 1, 0], [], []>} : vector<8x8xbf16>, vector<24x8xbf16>, vector<8x24xf32> -> vector<8x24xf32>
    %131 = vector.extract_strided_slice %130 {offsets = [0, 0], sizes = [8, 8], strides = [1, 1]} : vector<8x24xf32> to vector<8x8xf32>
    %132 = vector.extract_strided_slice %130 {offsets = [0, 8], sizes = [8, 16], strides = [1, 1]} : vector<8x24xf32> to vector<8x16xf32>
    %133 = tpu.iota {dimensions = array<i32: 0>} : vector<8x1xi32>
    %134 = vector.extract_strided_slice %132 {offsets = [0, 15], sizes = [8, 1], strides = [1, 1]} : vector<8x16xf32> to vector<8x1xf32>
    %135 = vector.extract_strided_slice %132 {offsets = [0, 0], sizes = [8, 15], strides = [1, 1]} : vector<8x16xf32> to vector<8x15xf32>
    %136 = tpu.concatenate %134, %135 in 1 : vector<8x1xf32>, vector<8x15xf32> -> vector<8x16xf32>
    %c0_i32_60 = arith.constant 0 : i32
    %137 = vector.broadcast %c0_i32_60 : i32 to vector<8x1xi32>
    %138 = arith.shrsi %133, %137 : vector<8x1xi32>
    %c1_i32_61 = arith.constant 1 : i32
    %139 = vector.broadcast %c1_i32_61 : i32 to vector<8x1xi32>
    %140 = arith.andi %138, %139 : vector<8x1xi32>
    %c1_i32_62 = arith.constant 1 : i32
    %141 = vector.broadcast %c1_i32_62 : i32 to vector<8x1xi32>
    %142 = arith.cmpi eq, %140, %141 : vector<8x1xi32>
    %143 = vector.shape_cast %142 : vector<8x1xi1> to vector<8x1xi1>
    %144 = vector.broadcast %143 : vector<8x1xi1> to vector<8x16xi1>
    %145 = arith.select %144, %136, %132 : vector<8x16xi1>, vector<8x16xf32>
    %146 = vector.extract_strided_slice %145 {offsets = [0, 14], sizes = [8, 2], strides = [1, 1]} : vector<8x16xf32> to vector<8x2xf32>
    %147 = vector.extract_strided_slice %145 {offsets = [0, 0], sizes = [8, 14], strides = [1, 1]} : vector<8x16xf32> to vector<8x14xf32>
    %148 = tpu.concatenate %146, %147 in 1 : vector<8x2xf32>, vector<8x14xf32> -> vector<8x16xf32>
    %c1_i32_63 = arith.constant 1 : i32
    %149 = vector.broadcast %c1_i32_63 : i32 to vector<8x1xi32>
    %150 = arith.shrsi %133, %149 : vector<8x1xi32>
    %c1_i32_64 = arith.constant 1 : i32
    %151 = vector.broadcast %c1_i32_64 : i32 to vector<8x1xi32>
    %152 = arith.andi %150, %151 : vector<8x1xi32>
    %c1_i32_65 = arith.constant 1 : i32
    %153 = vector.broadcast %c1_i32_65 : i32 to vector<8x1xi32>
    %154 = arith.cmpi eq, %152, %153 : vector<8x1xi32>
    %155 = vector.shape_cast %154 : vector<8x1xi1> to vector<8x1xi1>
    %156 = vector.broadcast %155 : vector<8x1xi1> to vector<8x16xi1>
    %157 = arith.select %156, %148, %145 : vector<8x16xi1>, vector<8x16xf32>
    %158 = vector.extract_strided_slice %157 {offsets = [0, 12], sizes = [8, 4], strides = [1, 1]} : vector<8x16xf32> to vector<8x4xf32>
    %159 = vector.extract_strided_slice %157 {offsets = [0, 0], sizes = [8, 12], strides = [1, 1]} : vector<8x16xf32> to vector<8x12xf32>
    %160 = tpu.concatenate %158, %159 in 1 : vector<8x4xf32>, vector<8x12xf32> -> vector<8x16xf32>
    %c2_i32_66 = arith.constant 2 : i32
    %161 = vector.broadcast %c2_i32_66 : i32 to vector<8x1xi32>
    %162 = arith.shrsi %133, %161 : vector<8x1xi32>
    %c1_i32_67 = arith.constant 1 : i32
    %163 = vector.broadcast %c1_i32_67 : i32 to vector<8x1xi32>
    %164 = arith.andi %162, %163 : vector<8x1xi32>
    %c1_i32_68 = arith.constant 1 : i32
    %165 = vector.broadcast %c1_i32_68 : i32 to vector<8x1xi32>
    %166 = arith.cmpi eq, %164, %165 : vector<8x1xi32>
    %167 = vector.shape_cast %166 : vector<8x1xi1> to vector<8x1xi1>
    %168 = vector.broadcast %167 : vector<8x1xi1> to vector<8x16xi1>
    %169 = arith.select %168, %160, %157 : vector<8x16xi1>, vector<8x16xf32>
    %170 = vector.extract_strided_slice %169 {offsets = [0, 0], sizes = [8, 8], strides = [1, 1]} : vector<8x16xf32> to vector<8x8xf32>
    %171 = arith.addf %131, %170 : vector<8x8xf32>
    %cst_69 = arith.constant dense<0xFF800000> : vector<8xf32>
    %172 = vector.multi_reduction <maximumf>, %171, %cst_69 [1] : vector<8x8xf32> to vector<8xf32>
    %173 = vector.shape_cast %172 : vector<8xf32> to vector<8x1xf32>
    %174 = vector.broadcast %173 : vector<8x1xf32> to vector<8x8xf32>
    %175 = arith.subf %171, %174 : vector<8x8xf32>
    %176 = math.exp %175 : vector<8x8xf32>
    %cst_70 = arith.constant dense<0.000000e+00> : vector<8xf32>
    %177 = vector.multi_reduction <add>, %176, %cst_70 [1] : vector<8x8xf32> to vector<8xf32>
    %178 = vector.shape_cast %177 : vector<8xf32> to vector<8x1xf32>
    %179 = tpu.reciprocal %178 {approx = true} : vector<8x1xf32> -> vector<8x1xf32>
    %180 = vector.broadcast %179 : vector<8x1xf32> to vector<8x8xf32>
    %181 = arith.mulf %176, %180 : vector<8x8xf32>
    %182 = arith.truncf %181 : vector<8x8xf32> to vector<8x8xbf16>
    %183 = arith.truncf %126 : vector<8x8xf32> to vector<8x8xbf16>
    %cst_71 = arith.constant dense<0.000000e+00> : vector<8x8xf32>
    %184 = tpu.matmul %182, %183, %cst_71 {dimension_numbers = #tpu.dot_dimension_numbers<[1], [0], [0], [1], [0, 0, 1, 1], [], []>} : vector<8x8xbf16>, vector<8x8xbf16>, vector<8x8xf32> -> vector<8x8xf32>
    %185 = vector.extract_strided_slice %58 {offsets = [0, 16], sizes = [8, 8], strides = [1, 1]} : vector<8x96xf32> to vector<8x8xf32>
    %cst_72 = arith.constant 0.353553385 : f32
    %186 = vector.broadcast %cst_72 : f32 to vector<8x8xf32>
    %187 = arith.mulf %185, %186 : vector<8x8xf32>
    %188 = vector.extract_strided_slice %58 {offsets = [0, 48], sizes = [8, 8], strides = [1, 1]} : vector<8x96xf32> to vector<8x8xf32>
    %189 = vector.extract_strided_slice %58 {offsets = [0, 80], sizes = [8, 8], strides = [1, 1]} : vector<8x96xf32> to vector<8x8xf32>
    %190 = tpu.concatenate %188, %3 in 0 : vector<8x8xf32>, vector<16x8xf32> -> vector<24x8xf32>
    %191 = arith.truncf %187 : vector<8x8xf32> to vector<8x8xbf16>
    %192 = arith.truncf %190 : vector<24x8xf32> to vector<24x8xbf16>
    %cst_73 = arith.constant dense<0.000000e+00> : vector<8x24xf32>
    %193 = tpu.matmul %191, %192, %cst_73 {dimension_numbers = #tpu.dot_dimension_numbers<[1], [1], [0], [0], [0, 0, 1, 0], [], []>} : vector<8x8xbf16>, vector<24x8xbf16>, vector<8x24xf32> -> vector<8x24xf32>
    %194 = vector.extract_strided_slice %193 {offsets = [0, 0], sizes = [8, 8], strides = [1, 1]} : vector<8x24xf32> to vector<8x8xf32>
    %195 = vector.extract_strided_slice %193 {offsets = [0, 8], sizes = [8, 16], strides = [1, 1]} : vector<8x24xf32> to vector<8x16xf32>
    %196 = tpu.iota {dimensions = array<i32: 0>} : vector<8x1xi32>
    %197 = vector.extract_strided_slice %195 {offsets = [0, 15], sizes = [8, 1], strides = [1, 1]} : vector<8x16xf32> to vector<8x1xf32>
    %198 = vector.extract_strided_slice %195 {offsets = [0, 0], sizes = [8, 15], strides = [1, 1]} : vector<8x16xf32> to vector<8x15xf32>
    %199 = tpu.concatenate %197, %198 in 1 : vector<8x1xf32>, vector<8x15xf32> -> vector<8x16xf32>
    %c0_i32_74 = arith.constant 0 : i32
    %200 = vector.broadcast %c0_i32_74 : i32 to vector<8x1xi32>
    %201 = arith.shrsi %196, %200 : vector<8x1xi32>
    %c1_i32_75 = arith.constant 1 : i32
    %202 = vector.broadcast %c1_i32_75 : i32 to vector<8x1xi32>
    %203 = arith.andi %201, %202 : vector<8x1xi32>
    %c1_i32_76 = arith.constant 1 : i32
    %204 = vector.broadcast %c1_i32_76 : i32 to vector<8x1xi32>
    %205 = arith.cmpi eq, %203, %204 : vector<8x1xi32>
    %206 = vector.shape_cast %205 : vector<8x1xi1> to vector<8x1xi1>
    %207 = vector.broadcast %206 : vector<8x1xi1> to vector<8x16xi1>
    %208 = arith.select %207, %199, %195 : vector<8x16xi1>, vector<8x16xf32>
    %209 = vector.extract_strided_slice %208 {offsets = [0, 14], sizes = [8, 2], strides = [1, 1]} : vector<8x16xf32> to vector<8x2xf32>
    %210 = vector.extract_strided_slice %208 {offsets = [0, 0], sizes = [8, 14], strides = [1, 1]} : vector<8x16xf32> to vector<8x14xf32>
    %211 = tpu.concatenate %209, %210 in 1 : vector<8x2xf32>, vector<8x14xf32> -> vector<8x16xf32>
    %c1_i32_77 = arith.constant 1 : i32
    %212 = vector.broadcast %c1_i32_77 : i32 to vector<8x1xi32>
    %213 = arith.shrsi %196, %212 : vector<8x1xi32>
    %c1_i32_78 = arith.constant 1 : i32
    %214 = vector.broadcast %c1_i32_78 : i32 to vector<8x1xi32>
    %215 = arith.andi %213, %214 : vector<8x1xi32>
    %c1_i32_79 = arith.constant 1 : i32
    %216 = vector.broadcast %c1_i32_79 : i32 to vector<8x1xi32>
    %217 = arith.cmpi eq, %215, %216 : vector<8x1xi32>
    %218 = vector.shape_cast %217 : vector<8x1xi1> to vector<8x1xi1>
    %219 = vector.broadcast %218 : vector<8x1xi1> to vector<8x16xi1>
    %220 = arith.select %219, %211, %208 : vector<8x16xi1>, vector<8x16xf32>
    %221 = vector.extract_strided_slice %220 {offsets = [0, 12], sizes = [8, 4], strides = [1, 1]} : vector<8x16xf32> to vector<8x4xf32>
    %222 = vector.extract_strided_slice %220 {offsets = [0, 0], sizes = [8, 12], strides = [1, 1]} : vector<8x16xf32> to vector<8x12xf32>
    %223 = tpu.concatenate %221, %222 in 1 : vector<8x4xf32>, vector<8x12xf32> -> vector<8x16xf32>
    %c2_i32_80 = arith.constant 2 : i32
    %224 = vector.broadcast %c2_i32_80 : i32 to vector<8x1xi32>
    %225 = arith.shrsi %196, %224 : vector<8x1xi32>
    %c1_i32_81 = arith.constant 1 : i32
    %226 = vector.broadcast %c1_i32_81 : i32 to vector<8x1xi32>
    %227 = arith.andi %225, %226 : vector<8x1xi32>
    %c1_i32_82 = arith.constant 1 : i32
    %228 = vector.broadcast %c1_i32_82 : i32 to vector<8x1xi32>
    %229 = arith.cmpi eq, %227, %228 : vector<8x1xi32>
    %230 = vector.shape_cast %229 : vector<8x1xi1> to vector<8x1xi1>
    %231 = vector.broadcast %230 : vector<8x1xi1> to vector<8x16xi1>
    %232 = arith.select %231, %223, %220 : vector<8x16xi1>, vector<8x16xf32>
    %233 = vector.extract_strided_slice %232 {offsets = [0, 0], sizes = [8, 8], strides = [1, 1]} : vector<8x16xf32> to vector<8x8xf32>
    %234 = arith.addf %194, %233 : vector<8x8xf32>
    %cst_83 = arith.constant dense<0xFF800000> : vector<8xf32>
    %235 = vector.multi_reduction <maximumf>, %234, %cst_83 [1] : vector<8x8xf32> to vector<8xf32>
    %236 = vector.shape_cast %235 : vector<8xf32> to vector<8x1xf32>
    %237 = vector.broadcast %236 : vector<8x1xf32> to vector<8x8xf32>
    %238 = arith.subf %234, %237 : vector<8x8xf32>
    %239 = math.exp %238 : vector<8x8xf32>
    %cst_84 = arith.constant dense<0.000000e+00> : vector<8xf32>
    %240 = vector.multi_reduction <add>, %239, %cst_84 [1] : vector<8x8xf32> to vector<8xf32>
    %241 = vector.shape_cast %240 : vector<8xf32> to vector<8x1xf32>
    %242 = tpu.reciprocal %241 {approx = true} : vector<8x1xf32> -> vector<8x1xf32>
    %243 = vector.broadcast %242 : vector<8x1xf32> to vector<8x8xf32>
    %244 = arith.mulf %239, %243 : vector<8x8xf32>
    %245 = arith.truncf %244 : vector<8x8xf32> to vector<8x8xbf16>
    %246 = arith.truncf %189 : vector<8x8xf32> to vector<8x8xbf16>
    %cst_85 = arith.constant dense<0.000000e+00> : vector<8x8xf32>
    %247 = tpu.matmul %245, %246, %cst_85 {dimension_numbers = #tpu.dot_dimension_numbers<[1], [0], [0], [1], [0, 0, 1, 1], [], []>} : vector<8x8xbf16>, vector<8x8xbf16>, vector<8x8xf32> -> vector<8x8xf32>
    %248 = vector.extract_strided_slice %58 {offsets = [0, 24], sizes = [8, 8], strides = [1, 1]} : vector<8x96xf32> to vector<8x8xf32>
    %cst_86 = arith.constant 0.353553385 : f32
    %249 = vector.broadcast %cst_86 : f32 to vector<8x8xf32>
    %250 = arith.mulf %248, %249 : vector<8x8xf32>
    %251 = vector.extract_strided_slice %58 {offsets = [0, 56], sizes = [8, 8], strides = [1, 1]} : vector<8x96xf32> to vector<8x8xf32>
    %252 = vector.extract_strided_slice %58 {offsets = [0, 88], sizes = [8, 8], strides = [1, 1]} : vector<8x96xf32> to vector<8x8xf32>
    %253 = tpu.concatenate %251, %3 in 0 : vector<8x8xf32>, vector<16x8xf32> -> vector<24x8xf32>
    %254 = arith.truncf %250 : vector<8x8xf32> to vector<8x8xbf16>
    %255 = arith.truncf %253 : vector<24x8xf32> to vector<24x8xbf16>
    %cst_87 = arith.constant dense<0.000000e+00> : vector<8x24xf32>
    %256 = tpu.matmul %254, %255, %cst_87 {dimension_numbers = #tpu.dot_dimension_numbers<[1], [1], [0], [0], [0, 0, 1, 0], [], []>} : vector<8x8xbf16>, vector<24x8xbf16>, vector<8x24xf32> -> vector<8x24xf32>
    %257 = vector.extract_strided_slice %256 {offsets = [0, 0], sizes = [8, 8], strides = [1, 1]} : vector<8x24xf32> to vector<8x8xf32>
    %258 = vector.extract_strided_slice %256 {offsets = [0, 8], sizes = [8, 16], strides = [1, 1]} : vector<8x24xf32> to vector<8x16xf32>
    %259 = tpu.iota {dimensions = array<i32: 0>} : vector<8x1xi32>
    %260 = vector.extract_strided_slice %258 {offsets = [0, 15], sizes = [8, 1], strides = [1, 1]} : vector<8x16xf32> to vector<8x1xf32>
    %261 = vector.extract_strided_slice %258 {offsets = [0, 0], sizes = [8, 15], strides = [1, 1]} : vector<8x16xf32> to vector<8x15xf32>
    %262 = tpu.concatenate %260, %261 in 1 : vector<8x1xf32>, vector<8x15xf32> -> vector<8x16xf32>
    %c0_i32_88 = arith.constant 0 : i32
    %263 = vector.broadcast %c0_i32_88 : i32 to vector<8x1xi32>
    %264 = arith.shrsi %259, %263 : vector<8x1xi32>
    %c1_i32_89 = arith.constant 1 : i32
    %265 = vector.broadcast %c1_i32_89 : i32 to vector<8x1xi32>
    %266 = arith.andi %264, %265 : vector<8x1xi32>
    %c1_i32_90 = arith.constant 1 : i32
    %267 = vector.broadcast %c1_i32_90 : i32 to vector<8x1xi32>
    %268 = arith.cmpi eq, %266, %267 : vector<8x1xi32>
    %269 = vector.shape_cast %268 : vector<8x1xi1> to vector<8x1xi1>
    %270 = vector.broadcast %269 : vector<8x1xi1> to vector<8x16xi1>
    %271 = arith.select %270, %262, %258 : vector<8x16xi1>, vector<8x16xf32>
    %272 = vector.extract_strided_slice %271 {offsets = [0, 14], sizes = [8, 2], strides = [1, 1]} : vector<8x16xf32> to vector<8x2xf32>
    %273 = vector.extract_strided_slice %271 {offsets = [0, 0], sizes = [8, 14], strides = [1, 1]} : vector<8x16xf32> to vector<8x14xf32>
    %274 = tpu.concatenate %272, %273 in 1 : vector<8x2xf32>, vector<8x14xf32> -> vector<8x16xf32>
    %c1_i32_91 = arith.constant 1 : i32
    %275 = vector.broadcast %c1_i32_91 : i32 to vector<8x1xi32>
    %276 = arith.shrsi %259, %275 : vector<8x1xi32>
    %c1_i32_92 = arith.constant 1 : i32
    %277 = vector.broadcast %c1_i32_92 : i32 to vector<8x1xi32>
    %278 = arith.andi %276, %277 : vector<8x1xi32>
    %c1_i32_93 = arith.constant 1 : i32
    %279 = vector.broadcast %c1_i32_93 : i32 to vector<8x1xi32>
    %280 = arith.cmpi eq, %278, %279 : vector<8x1xi32>
    %281 = vector.shape_cast %280 : vector<8x1xi1> to vector<8x1xi1>
    %282 = vector.broadcast %281 : vector<8x1xi1> to vector<8x16xi1>
    %283 = arith.select %282, %274, %271 : vector<8x16xi1>, vector<8x16xf32>
    %284 = vector.extract_strided_slice %283 {offsets = [0, 12], sizes = [8, 4], strides = [1, 1]} : vector<8x16xf32> to vector<8x4xf32>
    %285 = vector.extract_strided_slice %283 {offsets = [0, 0], sizes = [8, 12], strides = [1, 1]} : vector<8x16xf32> to vector<8x12xf32>
    %286 = tpu.concatenate %284, %285 in 1 : vector<8x4xf32>, vector<8x12xf32> -> vector<8x16xf32>
    %c2_i32_94 = arith.constant 2 : i32
    %287 = vector.broadcast %c2_i32_94 : i32 to vector<8x1xi32>
    %288 = arith.shrsi %259, %287 : vector<8x1xi32>
    %c1_i32_95 = arith.constant 1 : i32
    %289 = vector.broadcast %c1_i32_95 : i32 to vector<8x1xi32>
    %290 = arith.andi %288, %289 : vector<8x1xi32>
    %c1_i32_96 = arith.constant 1 : i32
    %291 = vector.broadcast %c1_i32_96 : i32 to vector<8x1xi32>
    %292 = arith.cmpi eq, %290, %291 : vector<8x1xi32>
    %293 = vector.shape_cast %292 : vector<8x1xi1> to vector<8x1xi1>
    %294 = vector.broadcast %293 : vector<8x1xi1> to vector<8x16xi1>
    %295 = arith.select %294, %286, %283 : vector<8x16xi1>, vector<8x16xf32>
    %296 = vector.extract_strided_slice %295 {offsets = [0, 0], sizes = [8, 8], strides = [1, 1]} : vector<8x16xf32> to vector<8x8xf32>
    %297 = arith.addf %257, %296 : vector<8x8xf32>
    %cst_97 = arith.constant dense<0xFF800000> : vector<8xf32>
    %298 = vector.multi_reduction <maximumf>, %297, %cst_97 [1] : vector<8x8xf32> to vector<8xf32>
    %299 = vector.shape_cast %298 : vector<8xf32> to vector<8x1xf32>
    %300 = vector.broadcast %299 : vector<8x1xf32> to vector<8x8xf32>
    %301 = arith.subf %297, %300 : vector<8x8xf32>
    %302 = math.exp %301 : vector<8x8xf32>
    %cst_98 = arith.constant dense<0.000000e+00> : vector<8xf32>
    %303 = vector.multi_reduction <add>, %302, %cst_98 [1] : vector<8x8xf32> to vector<8xf32>
    %304 = vector.shape_cast %303 : vector<8xf32> to vector<8x1xf32>
    %305 = tpu.reciprocal %304 {approx = true} : vector<8x1xf32> -> vector<8x1xf32>
    %306 = vector.broadcast %305 : vector<8x1xf32> to vector<8x8xf32>
    %307 = arith.mulf %302, %306 : vector<8x8xf32>
    %308 = arith.truncf %307 : vector<8x8xf32> to vector<8x8xbf16>
    %309 = arith.truncf %252 : vector<8x8xf32> to vector<8x8xbf16>
    %cst_99 = arith.constant dense<0.000000e+00> : vector<8x8xf32>
    %310 = tpu.matmul %308, %309, %cst_99 {dimension_numbers = #tpu.dot_dimension_numbers<[1], [0], [0], [1], [0, 0, 1, 1], [], []>} : vector<8x8xbf16>, vector<8x8xbf16>, vector<8x8xf32> -> vector<8x8xf32>
    %311 = tpu.concatenate %121, %184, %247, %310 in 1 : vector<8x8xf32>, vector<8x8xf32>, vector<8x8xf32>, vector<8x8xf32> -> vector<8x32xf32>
    %312 = arith.truncf %311 : vector<8x32xf32> to vector<8x32xbf16>
    %cst_100 = arith.constant dense<0.000000e+00> : vector<8x32xf32>
    %313 = tpu.matmul %312, %17, %cst_100 {dimension_numbers = #tpu.dot_dimension_numbers<[1], [0], [0], [1], [0, 0, 1, 1], [], []>} : vector<8x32xbf16>, vector<32x32xbf16>, vector<8x32xf32> -> vector<8x32xf32>
    %314 = arith.addf %29, %313 : vector<8x32xf32>
    %315 = vector.shape_cast %19 : vector<32xf32> to vector<1x32xf32>
    %316 = vector.broadcast %315 : vector<1x32xf32> to vector<8x32xf32>
    %317 = arith.addf %314, %316 : vector<8x32xf32>
    %cst_101 = arith.constant dense<0.000000e+00> : vector<8xf32>
    %318 = vector.multi_reduction <add>, %317, %cst_101 [1] : vector<8x32xf32> to vector<8xf32>
    %319 = vector.shape_cast %318 : vector<8xf32> to vector<8x1xf32>
    %cst_102 = arith.constant 3.200000e+01 : f32
    %320 = vector.broadcast %cst_102 : f32 to vector<8x1xf32>
    %321 = arith.divf %319, %320 : vector<8x1xf32>
    %322 = vector.broadcast %321 : vector<8x1xf32> to vector<8x32xf32>
    %323 = arith.subf %317, %322 : vector<8x32xf32>
    %324 = arith.mulf %323, %323 : vector<8x32xf32>
    %cst_103 = arith.constant dense<0.000000e+00> : vector<8xf32>
    %325 = vector.multi_reduction <add>, %324, %cst_103 [1] : vector<8x32xf32> to vector<8xf32>
    %326 = vector.shape_cast %325 : vector<8xf32> to vector<8x1xf32>
    %cst_104 = arith.constant 3.200000e+01 : f32
    %327 = vector.broadcast %cst_104 : f32 to vector<8x1xf32>
    %328 = arith.divf %326, %327 : vector<8x1xf32>
    %329 = vector.broadcast %321 : vector<8x1xf32> to vector<8x32xf32>
    %330 = arith.subf %317, %329 : vector<8x32xf32>
    %cst_105 = arith.constant 9.99999974E-6 : f32
    %331 = vector.broadcast %cst_105 : f32 to vector<8x1xf32>
    %332 = arith.addf %328, %331 : vector<8x1xf32>
    %333 = math.rsqrt %332 : vector<8x1xf32>
    %334 = vector.broadcast %333 : vector<8x1xf32> to vector<8x32xf32>
    %335 = arith.mulf %330, %334 : vector<8x32xf32>
    %336 = vector.shape_cast %9 : vector<32xf32> to vector<1x32xf32>
    %337 = vector.broadcast %336 : vector<1x32xf32> to vector<8x32xf32>
    %338 = arith.mulf %335, %337 : vector<8x32xf32>
    %339 = vector.shape_cast %11 : vector<32xf32> to vector<1x32xf32>
    %340 = vector.broadcast %339 : vector<1x32xf32> to vector<8x32xf32>
    %341 = arith.addf %338, %340 : vector<8x32xf32>
    %342 = arith.truncf %341 : vector<8x32xf32> to vector<8x32xbf16>
    %cst_106 = arith.constant dense<0.000000e+00> : vector<8x64xf32>
    %343 = tpu.matmul %342, %21, %cst_106 {dimension_numbers = #tpu.dot_dimension_numbers<[1], [0], [0], [1], [0, 0, 1, 1], [], []>} : vector<8x32xbf16>, vector<32x64xbf16>, vector<8x64xf32> -> vector<8x64xf32>
    %344 = vector.shape_cast %23 : vector<64xf32> to vector<1x64xf32>
    %345 = vector.broadcast %344 : vector<1x64xf32> to vector<8x64xf32>
    %346 = arith.addf %343, %345 : vector<8x64xf32>
    %cst_107 = arith.constant 0.000000e+00 : f32
    %347 = vector.broadcast %cst_107 : f32 to vector<8x64xf32>
    %348 = arith.maximumf %346, %347 : vector<8x64xf32>
    %349 = arith.truncf %348 : vector<8x64xf32> to vector<8x64xbf16>
    %cst_108 = arith.constant dense<0.000000e+00> : vector<8x32xf32>
    %350 = tpu.matmul %349, %25, %cst_108 {dimension_numbers = #tpu.dot_dimension_numbers<[1], [0], [0], [1], [0, 0, 1, 1], [], []>} : vector<8x64xbf16>, vector<64x32xbf16>, vector<8x32xf32> -> vector<8x32xf32>
    %351 = arith.addf %317, %350 : vector<8x32xf32>
    %352 = vector.shape_cast %27 : vector<32xf32> to vector<1x32xf32>
    %353 = vector.broadcast %352 : vector<1x32xf32> to vector<8x32xf32>
    %354 = arith.addf %351, %353 : vector<8x32xf32>
    %c0_109 = arith.constant 0 : index
    %c0_110 = arith.constant 0 : index
    %c0_111 = arith.constant 0 : index
    %355 = vector.load %arg22[%c0_109, %c0_110, %c0_111] : memref<2x8x32xf32, #tpu.memory_space<vmem>>, vector<1x8x32xf32>
    %356 = vector.shape_cast %355 : vector<1x8x32xf32> to vector<8x32xf32>
    %357 = vector.shape_cast %354 : vector<8x32xf32> to vector<1x8x32xf32>
    tpu.vector_store %arg22[%c0_109, %c0_110, %c0_111], %357 {strides = array<i32>} : memref<2x8x32xf32, #tpu.memory_space<vmem>>, vector<1x8x32xf32>,
    %c1 = arith.constant 1 : index
    %c0_112 = arith.constant 0 : index
    %c0_113 = arith.constant 0 : index
    %358 = vector.load %arg22[%c1, %c0_112, %c0_113] : memref<2x8x32xf32, #tpu.memory_space<vmem>>, vector<1x8x32xf32>
    %359 = vector.shape_cast %358 : vector<1x8x32xf32> to vector<8x32xf32>
    %cst_114 = arith.constant dense<0.000000e+00> : vector<8xf32>
    %360 = vector.multi_reduction <add>, %359, %cst_114 [1] : vector<8x32xf32> to vector<8xf32>
    %361 = vector.shape_cast %360 : vector<8xf32> to vector<8x1xf32>
    %cst_115 = arith.constant 3.200000e+01 : f32
    %362 = vector.broadcast %cst_115 : f32 to vector<8x1xf32>
    %363 = arith.divf %361, %362 : vector<8x1xf32>
    %364 = vector.broadcast %363 : vector<8x1xf32> to vector<8x32xf32>
    %365 = arith.subf %359, %364 : vector<8x32xf32>
    %366 = arith.mulf %365, %365 : vector<8x32xf32>
    %cst_116 = arith.constant dense<0.000000e+00> : vector<8xf32>
    %367 = vector.multi_reduction <add>, %366, %cst_116 [1] : vector<8x32xf32> to vector<8xf32>
    %368 = vector.shape_cast %367 : vector<8xf32> to vector<8x1xf32>
    %cst_117 = arith.constant 3.200000e+01 : f32
    %369 = vector.broadcast %cst_117 : f32 to vector<8x1xf32>
    %370 = arith.divf %368, %369 : vector<8x1xf32>
    %371 = vector.broadcast %363 : vector<8x1xf32> to vector<8x32xf32>
    %372 = arith.subf %359, %371 : vector<8x32xf32>
    %cst_118 = arith.constant 9.99999974E-6 : f32
    %373 = vector.broadcast %cst_118 : f32 to vector<8x1xf32>
    %374 = arith.addf %370, %373 : vector<8x1xf32>
    %375 = math.rsqrt %374 : vector<8x1xf32>
    %376 = vector.broadcast %375 : vector<8x1xf32> to vector<8x32xf32>
    %377 = arith.mulf %372, %376 : vector<8x32xf32>
    %378 = vector.shape_cast %5 : vector<32xf32> to vector<1x32xf32>
    %379 = vector.broadcast %378 : vector<1x32xf32> to vector<8x32xf32>
    %380 = arith.mulf %377, %379 : vector<8x32xf32>
    %381 = vector.shape_cast %7 : vector<32xf32> to vector<1x32xf32>
    %382 = vector.broadcast %381 : vector<1x32xf32> to vector<8x32xf32>
    %383 = arith.addf %380, %382 : vector<8x32xf32>
    %384 = arith.truncf %383 : vector<8x32xf32> to vector<8x32xbf16>
    %cst_119 = arith.constant dense<0.000000e+00> : vector<8x96xf32>
    %385 = tpu.matmul %384, %13, %cst_119 {dimension_numbers = #tpu.dot_dimension_numbers<[1], [0], [0], [1], [0, 0, 1, 1], [], []>} : vector<8x32xbf16>, vector<32x96xbf16>, vector<8x96xf32> -> vector<8x96xf32>
    %386 = vector.shape_cast %15 : vector<96xf32> to vector<1x96xf32>
    %387 = vector.broadcast %386 : vector<1x96xf32> to vector<8x96xf32>
    %388 = arith.addf %385, %387 : vector<8x96xf32>
    %389 = vector.extract_strided_slice %388 {offsets = [0, 0], sizes = [8, 8], strides = [1, 1]} : vector<8x96xf32> to vector<8x8xf32>
    %cst_120 = arith.constant 0.353553385 : f32
    %390 = vector.broadcast %cst_120 : f32 to vector<8x8xf32>
    %391 = arith.mulf %389, %390 : vector<8x8xf32>
    %392 = vector.extract_strided_slice %388 {offsets = [0, 32], sizes = [8, 8], strides = [1, 1]} : vector<8x96xf32> to vector<8x8xf32>
    %393 = vector.extract_strided_slice %388 {offsets = [0, 64], sizes = [8, 8], strides = [1, 1]} : vector<8x96xf32> to vector<8x8xf32>
    %394 = tpu.concatenate %392, %3 in 0 : vector<8x8xf32>, vector<16x8xf32> -> vector<24x8xf32>
    %395 = arith.truncf %391 : vector<8x8xf32> to vector<8x8xbf16>
    %396 = arith.truncf %394 : vector<24x8xf32> to vector<24x8xbf16>
    %cst_121 = arith.constant dense<0.000000e+00> : vector<8x24xf32>
    %397 = tpu.matmul %395, %396, %cst_121 {dimension_numbers = #tpu.dot_dimension_numbers<[1], [1], [0], [0], [0, 0, 1, 0], [], []>} : vector<8x8xbf16>, vector<24x8xbf16>, vector<8x24xf32> -> vector<8x24xf32>
    %398 = vector.extract_strided_slice %397 {offsets = [0, 0], sizes = [8, 8], strides = [1, 1]} : vector<8x24xf32> to vector<8x8xf32>
    %399 = vector.extract_strided_slice %397 {offsets = [0, 8], sizes = [8, 16], strides = [1, 1]} : vector<8x24xf32> to vector<8x16xf32>
    %400 = tpu.iota {dimensions = array<i32: 0>} : vector<8x1xi32>
    %401 = vector.extract_strided_slice %399 {offsets = [0, 15], sizes = [8, 1], strides = [1, 1]} : vector<8x16xf32> to vector<8x1xf32>
    %402 = vector.extract_strided_slice %399 {offsets = [0, 0], sizes = [8, 15], strides = [1, 1]} : vector<8x16xf32> to vector<8x15xf32>
    %403 = tpu.concatenate %401, %402 in 1 : vector<8x1xf32>, vector<8x15xf32> -> vector<8x16xf32>
    %c0_i32_122 = arith.constant 0 : i32
    %404 = vector.broadcast %c0_i32_122 : i32 to vector<8x1xi32>
    %405 = arith.shrsi %400, %404 : vector<8x1xi32>
    %c1_i32_123 = arith.constant 1 : i32
    %406 = vector.broadcast %c1_i32_123 : i32 to vector<8x1xi32>
    %407 = arith.andi %405, %406 : vector<8x1xi32>
    %c1_i32_124 = arith.constant 1 : i32
    %408 = vector.broadcast %c1_i32_124 : i32 to vector<8x1xi32>
    %409 = arith.cmpi eq, %407, %408 : vector<8x1xi32>
    %410 = vector.shape_cast %409 : vector<8x1xi1> to vector<8x1xi1>
    %411 = vector.broadcast %410 : vector<8x1xi1> to vector<8x16xi1>
    %412 = arith.select %411, %403, %399 : vector<8x16xi1>, vector<8x16xf32>
    %413 = vector.extract_strided_slice %412 {offsets = [0, 14], sizes = [8, 2], strides = [1, 1]} : vector<8x16xf32> to vector<8x2xf32>
    %414 = vector.extract_strided_slice %412 {offsets = [0, 0], sizes = [8, 14], strides = [1, 1]} : vector<8x16xf32> to vector<8x14xf32>
    %415 = tpu.concatenate %413, %414 in 1 : vector<8x2xf32>, vector<8x14xf32> -> vector<8x16xf32>
    %c1_i32_125 = arith.constant 1 : i32
    %416 = vector.broadcast %c1_i32_125 : i32 to vector<8x1xi32>
    %417 = arith.shrsi %400, %416 : vector<8x1xi32>
    %c1_i32_126 = arith.constant 1 : i32
    %418 = vector.broadcast %c1_i32_126 : i32 to vector<8x1xi32>
    %419 = arith.andi %417, %418 : vector<8x1xi32>
    %c1_i32_127 = arith.constant 1 : i32
    %420 = vector.broadcast %c1_i32_127 : i32 to vector<8x1xi32>
    %421 = arith.cmpi eq, %419, %420 : vector<8x1xi32>
    %422 = vector.shape_cast %421 : vector<8x1xi1> to vector<8x1xi1>
    %423 = vector.broadcast %422 : vector<8x1xi1> to vector<8x16xi1>
    %424 = arith.select %423, %415, %412 : vector<8x16xi1>, vector<8x16xf32>
    %425 = vector.extract_strided_slice %424 {offsets = [0, 12], sizes = [8, 4], strides = [1, 1]} : vector<8x16xf32> to vector<8x4xf32>
    %426 = vector.extract_strided_slice %424 {offsets = [0, 0], sizes = [8, 12], strides = [1, 1]} : vector<8x16xf32> to vector<8x12xf32>
    %427 = tpu.concatenate %425, %426 in 1 : vector<8x4xf32>, vector<8x12xf32> -> vector<8x16xf32>
    %c2_i32_128 = arith.constant 2 : i32
    %428 = vector.broadcast %c2_i32_128 : i32 to vector<8x1xi32>
    %429 = arith.shrsi %400, %428 : vector<8x1xi32>
    %c1_i32_129 = arith.constant 1 : i32
    %430 = vector.broadcast %c1_i32_129 : i32 to vector<8x1xi32>
    %431 = arith.andi %429, %430 : vector<8x1xi32>
    %c1_i32_130 = arith.constant 1 : i32
    %432 = vector.broadcast %c1_i32_130 : i32 to vector<8x1xi32>
    %433 = arith.cmpi eq, %431, %432 : vector<8x1xi32>
    %434 = vector.shape_cast %433 : vector<8x1xi1> to vector<8x1xi1>
    %435 = vector.broadcast %434 : vector<8x1xi1> to vector<8x16xi1>
    %436 = arith.select %435, %427, %424 : vector<8x16xi1>, vector<8x16xf32>
    %437 = vector.extract_strided_slice %436 {offsets = [0, 0], sizes = [8, 8], strides = [1, 1]} : vector<8x16xf32> to vector<8x8xf32>
    %438 = arith.addf %398, %437 : vector<8x8xf32>
    %cst_131 = arith.constant dense<0xFF800000> : vector<8xf32>
    %439 = vector.multi_reduction <maximumf>, %438, %cst_131 [1] : vector<8x8xf32> to vector<8xf32>
    %440 = vector.shape_cast %439 : vector<8xf32> to vector<8x1xf32>
    %441 = vector.broadcast %440 : vector<8x1xf32> to vector<8x8xf32>
    %442 = arith.subf %438, %441 : vector<8x8xf32>
    %443 = math.exp %442 : vector<8x8xf32>
    %cst_132 = arith.constant dense<0.000000e+00> : vector<8xf32>
    %444 = vector.multi_reduction <add>, %443, %cst_132 [1] : vector<8x8xf32> to vector<8xf32>
    %445 = vector.shape_cast %444 : vector<8xf32> to vector<8x1xf32>
    %446 = tpu.reciprocal %445 {approx = true} : vector<8x1xf32> -> vector<8x1xf32>
    %447 = vector.broadcast %446 : vector<8x1xf32> to vector<8x8xf32>
    %448 = arith.mulf %443, %447 : vector<8x8xf32>
    %449 = arith.truncf %448 : vector<8x8xf32> to vector<8x8xbf16>
    %450 = arith.truncf %393 : vector<8x8xf32> to vector<8x8xbf16>
    %cst_133 = arith.constant dense<0.000000e+00> : vector<8x8xf32>
    %451 = tpu.matmul %449, %450, %cst_133 {dimension_numbers = #tpu.dot_dimension_numbers<[1], [0], [0], [1], [0, 0, 1, 1], [], []>} : vector<8x8xbf16>, vector<8x8xbf16>, vector<8x8xf32> -> vector<8x8xf32>
    %452 = vector.extract_strided_slice %388 {offsets = [0, 8], sizes = [8, 8], strides = [1, 1]} : vector<8x96xf32> to vector<8x8xf32>
    %cst_134 = arith.constant 0.353553385 : f32
    %453 = vector.broadcast %cst_134 : f32 to vector<8x8xf32>
    %454 = arith.mulf %452, %453 : vector<8x8xf32>
    %455 = vector.extract_strided_slice %388 {offsets = [0, 40], sizes = [8, 8], strides = [1, 1]} : vector<8x96xf32> to vector<8x8xf32>
    %456 = vector.extract_strided_slice %388 {offsets = [0, 72], sizes = [8, 8], strides = [1, 1]} : vector<8x96xf32> to vector<8x8xf32>
    %457 = tpu.concatenate %455, %3 in 0 : vector<8x8xf32>, vector<16x8xf32> -> vector<24x8xf32>
    %458 = arith.truncf %454 : vector<8x8xf32> to vector<8x8xbf16>
    %459 = arith.truncf %457 : vector<24x8xf32> to vector<24x8xbf16>
    %cst_135 = arith.constant dense<0.000000e+00> : vector<8x24xf32>
    %460 = tpu.matmul %458, %459, %cst_135 {dimension_numbers = #tpu.dot_dimension_numbers<[1], [1], [0], [0], [0, 0, 1, 0], [], []>} : vector<8x8xbf16>, vector<24x8xbf16>, vector<8x24xf32> -> vector<8x24xf32>
    %461 = vector.extract_strided_slice %460 {offsets = [0, 0], sizes = [8, 8], strides = [1, 1]} : vector<8x24xf32> to vector<8x8xf32>
    %462 = vector.extract_strided_slice %460 {offsets = [0, 8], sizes = [8, 16], strides = [1, 1]} : vector<8x24xf32> to vector<8x16xf32>
    %463 = tpu.iota {dimensions = array<i32: 0>} : vector<8x1xi32>
    %464 = vector.extract_strided_slice %462 {offsets = [0, 15], sizes = [8, 1], strides = [1, 1]} : vector<8x16xf32> to vector<8x1xf32>
    %465 = vector.extract_strided_slice %462 {offsets = [0, 0], sizes = [8, 15], strides = [1, 1]} : vector<8x16xf32> to vector<8x15xf32>
    %466 = tpu.concatenate %464, %465 in 1 : vector<8x1xf32>, vector<8x15xf32> -> vector<8x16xf32>
    %c0_i32_136 = arith.constant 0 : i32
    %467 = vector.broadcast %c0_i32_136 : i32 to vector<8x1xi32>
    %468 = arith.shrsi %463, %467 : vector<8x1xi32>
    %c1_i32_137 = arith.constant 1 : i32
    %469 = vector.broadcast %c1_i32_137 : i32 to vector<8x1xi32>
    %470 = arith.andi %468, %469 : vector<8x1xi32>
    %c1_i32_138 = arith.constant 1 : i32
    %471 = vector.broadcast %c1_i32_138 : i32 to vector<8x1xi32>
    %472 = arith.cmpi eq, %470, %471 : vector<8x1xi32>
    %473 = vector.shape_cast %472 : vector<8x1xi1> to vector<8x1xi1>
    %474 = vector.broadcast %473 : vector<8x1xi1> to vector<8x16xi1>
    %475 = arith.select %474, %466, %462 : vector<8x16xi1>, vector<8x16xf32>
    %476 = vector.extract_strided_slice %475 {offsets = [0, 14], sizes = [8, 2], strides = [1, 1]} : vector<8x16xf32> to vector<8x2xf32>
    %477 = vector.extract_strided_slice %475 {offsets = [0, 0], sizes = [8, 14], strides = [1, 1]} : vector<8x16xf32> to vector<8x14xf32>
    %478 = tpu.concatenate %476, %477 in 1 : vector<8x2xf32>, vector<8x14xf32> -> vector<8x16xf32>
    %c1_i32_139 = arith.constant 1 : i32
    %479 = vector.broadcast %c1_i32_139 : i32 to vector<8x1xi32>
    %480 = arith.shrsi %463, %479 : vector<8x1xi32>
    %c1_i32_140 = arith.constant 1 : i32
    %481 = vector.broadcast %c1_i32_140 : i32 to vector<8x1xi32>
    %482 = arith.andi %480, %481 : vector<8x1xi32>
    %c1_i32_141 = arith.constant 1 : i32
    %483 = vector.broadcast %c1_i32_141 : i32 to vector<8x1xi32>
    %484 = arith.cmpi eq, %482, %483 : vector<8x1xi32>
    %485 = vector.shape_cast %484 : vector<8x1xi1> to vector<8x1xi1>
    %486 = vector.broadcast %485 : vector<8x1xi1> to vector<8x16xi1>
    %487 = arith.select %486, %478, %475 : vector<8x16xi1>, vector<8x16xf32>
    %488 = vector.extract_strided_slice %487 {offsets = [0, 12], sizes = [8, 4], strides = [1, 1]} : vector<8x16xf32> to vector<8x4xf32>
    %489 = vector.extract_strided_slice %487 {offsets = [0, 0], sizes = [8, 12], strides = [1, 1]} : vector<8x16xf32> to vector<8x12xf32>
    %490 = tpu.concatenate %488, %489 in 1 : vector<8x4xf32>, vector<8x12xf32> -> vector<8x16xf32>
    %c2_i32_142 = arith.constant 2 : i32
    %491 = vector.broadcast %c2_i32_142 : i32 to vector<8x1xi32>
    %492 = arith.shrsi %463, %491 : vector<8x1xi32>
    %c1_i32_143 = arith.constant 1 : i32
    %493 = vector.broadcast %c1_i32_143 : i32 to vector<8x1xi32>
    %494 = arith.andi %492, %493 : vector<8x1xi32>
    %c1_i32_144 = arith.constant 1 : i32
    %495 = vector.broadcast %c1_i32_144 : i32 to vector<8x1xi32>
    %496 = arith.cmpi eq, %494, %495 : vector<8x1xi32>
    %497 = vector.shape_cast %496 : vector<8x1xi1> to vector<8x1xi1>
    %498 = vector.broadcast %497 : vector<8x1xi1> to vector<8x16xi1>
    %499 = arith.select %498, %490, %487 : vector<8x16xi1>, vector<8x16xf32>
    %500 = vector.extract_strided_slice %499 {offsets = [0, 0], sizes = [8, 8], strides = [1, 1]} : vector<8x16xf32> to vector<8x8xf32>
    %501 = arith.addf %461, %500 : vector<8x8xf32>
    %cst_145 = arith.constant dense<0xFF800000> : vector<8xf32>
    %502 = vector.multi_reduction <maximumf>, %501, %cst_145 [1] : vector<8x8xf32> to vector<8xf32>
    %503 = vector.shape_cast %502 : vector<8xf32> to vector<8x1xf32>
    %504 = vector.broadcast %503 : vector<8x1xf32> to vector<8x8xf32>
    %505 = arith.subf %501, %504 : vector<8x8xf32>
    %506 = math.exp %505 : vector<8x8xf32>
    %cst_146 = arith.constant dense<0.000000e+00> : vector<8xf32>
    %507 = vector.multi_reduction <add>, %506, %cst_146 [1] : vector<8x8xf32> to vector<8xf32>
    %508 = vector.shape_cast %507 : vector<8xf32> to vector<8x1xf32>
    %509 = tpu.reciprocal %508 {approx = true} : vector<8x1xf32> -> vector<8x1xf32>
    %510 = vector.broadcast %509 : vector<8x1xf32> to vector<8x8xf32>
    %511 = arith.mulf %506, %510 : vector<8x8xf32>
    %512 = arith.truncf %511 : vector<8x8xf32> to vector<8x8xbf16>
    %513 = arith.truncf %456 : vector<8x8xf32> to vector<8x8xbf16>
    %cst_147 = arith.constant dense<0.000000e+00> : vector<8x8xf32>
    %514 = tpu.matmul %512, %513, %cst_147 {dimension_numbers = #tpu.dot_dimension_numbers<[1], [0], [0], [1], [0, 0, 1, 1], [], []>} : vector<8x8xbf16>, vector<8x8xbf16>, vector<8x8xf32> -> vector<8x8xf32>
    %515 = vector.extract_strided_slice %388 {offsets = [0, 16], sizes = [8, 8], strides = [1, 1]} : vector<8x96xf32> to vector<8x8xf32>
    %cst_148 = arith.constant 0.353553385 : f32
    %516 = vector.broadcast %cst_148 : f32 to vector<8x8xf32>
    %517 = arith.mulf %515, %516 : vector<8x8xf32>
    %518 = vector.extract_strided_slice %388 {offsets = [0, 48], sizes = [8, 8], strides = [1, 1]} : vector<8x96xf32> to vector<8x8xf32>
    %519 = vector.extract_strided_slice %388 {offsets = [0, 80], sizes = [8, 8], strides = [1, 1]} : vector<8x96xf32> to vector<8x8xf32>
    %520 = tpu.concatenate %518, %3 in 0 : vector<8x8xf32>, vector<16x8xf32> -> vector<24x8xf32>
    %521 = arith.truncf %517 : vector<8x8xf32> to vector<8x8xbf16>
    %522 = arith.truncf %520 : vector<24x8xf32> to vector<24x8xbf16>
    %cst_149 = arith.constant dense<0.000000e+00> : vector<8x24xf32>
    %523 = tpu.matmul %521, %522, %cst_149 {dimension_numbers = #tpu.dot_dimension_numbers<[1], [1], [0], [0], [0, 0, 1, 0], [], []>} : vector<8x8xbf16>, vector<24x8xbf16>, vector<8x24xf32> -> vector<8x24xf32>
    %524 = vector.extract_strided_slice %523 {offsets = [0, 0], sizes = [8, 8], strides = [1, 1]} : vector<8x24xf32> to vector<8x8xf32>
    %525 = vector.extract_strided_slice %523 {offsets = [0, 8], sizes = [8, 16], strides = [1, 1]} : vector<8x24xf32> to vector<8x16xf32>
    %526 = tpu.iota {dimensions = array<i32: 0>} : vector<8x1xi32>
    %527 = vector.extract_strided_slice %525 {offsets = [0, 15], sizes = [8, 1], strides = [1, 1]} : vector<8x16xf32> to vector<8x1xf32>
    %528 = vector.extract_strided_slice %525 {offsets = [0, 0], sizes = [8, 15], strides = [1, 1]} : vector<8x16xf32> to vector<8x15xf32>
    %529 = tpu.concatenate %527, %528 in 1 : vector<8x1xf32>, vector<8x15xf32> -> vector<8x16xf32>
    %c0_i32_150 = arith.constant 0 : i32
    %530 = vector.broadcast %c0_i32_150 : i32 to vector<8x1xi32>
    %531 = arith.shrsi %526, %530 : vector<8x1xi32>
    %c1_i32_151 = arith.constant 1 : i32
    %532 = vector.broadcast %c1_i32_151 : i32 to vector<8x1xi32>
    %533 = arith.andi %531, %532 : vector<8x1xi32>
    %c1_i32_152 = arith.constant 1 : i32
    %534 = vector.broadcast %c1_i32_152 : i32 to vector<8x1xi32>
    %535 = arith.cmpi eq, %533, %534 : vector<8x1xi32>
    %536 = vector.shape_cast %535 : vector<8x1xi1> to vector<8x1xi1>
    %537 = vector.broadcast %536 : vector<8x1xi1> to vector<8x16xi1>
    %538 = arith.select %537, %529, %525 : vector<8x16xi1>, vector<8x16xf32>
    %539 = vector.extract_strided_slice %538 {offsets = [0, 14], sizes = [8, 2], strides = [1, 1]} : vector<8x16xf32> to vector<8x2xf32>
    %540 = vector.extract_strided_slice %538 {offsets = [0, 0], sizes = [8, 14], strides = [1, 1]} : vector<8x16xf32> to vector<8x14xf32>
    %541 = tpu.concatenate %539, %540 in 1 : vector<8x2xf32>, vector<8x14xf32> -> vector<8x16xf32>
    %c1_i32_153 = arith.constant 1 : i32
    %542 = vector.broadcast %c1_i32_153 : i32 to vector<8x1xi32>
    %543 = arith.shrsi %526, %542 : vector<8x1xi32>
    %c1_i32_154 = arith.constant 1 : i32
    %544 = vector.broadcast %c1_i32_154 : i32 to vector<8x1xi32>
    %545 = arith.andi %543, %544 : vector<8x1xi32>
    %c1_i32_155 = arith.constant 1 : i32
    %546 = vector.broadcast %c1_i32_155 : i32 to vector<8x1xi32>
    %547 = arith.cmpi eq, %545, %546 : vector<8x1xi32>
    %548 = vector.shape_cast %547 : vector<8x1xi1> to vector<8x1xi1>
    %549 = vector.broadcast %548 : vector<8x1xi1> to vector<8x16xi1>
    %550 = arith.select %549, %541, %538 : vector<8x16xi1>, vector<8x16xf32>
    %551 = vector.extract_strided_slice %550 {offsets = [0, 12], sizes = [8, 4], strides = [1, 1]} : vector<8x16xf32> to vector<8x4xf32>
    %552 = vector.extract_strided_slice %550 {offsets = [0, 0], sizes = [8, 12], strides = [1, 1]} : vector<8x16xf32> to vector<8x12xf32>
    %553 = tpu.concatenate %551, %552 in 1 : vector<8x4xf32>, vector<8x12xf32> -> vector<8x16xf32>
    %c2_i32_156 = arith.constant 2 : i32
    %554 = vector.broadcast %c2_i32_156 : i32 to vector<8x1xi32>
    %555 = arith.shrsi %526, %554 : vector<8x1xi32>
    %c1_i32_157 = arith.constant 1 : i32
    %556 = vector.broadcast %c1_i32_157 : i32 to vector<8x1xi32>
    %557 = arith.andi %555, %556 : vector<8x1xi32>
    %c1_i32_158 = arith.constant 1 : i32
    %558 = vector.broadcast %c1_i32_158 : i32 to vector<8x1xi32>
    %559 = arith.cmpi eq, %557, %558 : vector<8x1xi32>
    %560 = vector.shape_cast %559 : vector<8x1xi1> to vector<8x1xi1>
    %561 = vector.broadcast %560 : vector<8x1xi1> to vector<8x16xi1>
    %562 = arith.select %561, %553, %550 : vector<8x16xi1>, vector<8x16xf32>
    %563 = vector.extract_strided_slice %562 {offsets = [0, 0], sizes = [8, 8], strides = [1, 1]} : vector<8x16xf32> to vector<8x8xf32>
    %564 = arith.addf %524, %563 : vector<8x8xf32>
    %cst_159 = arith.constant dense<0xFF800000> : vector<8xf32>
    %565 = vector.multi_reduction <maximumf>, %564, %cst_159 [1] : vector<8x8xf32> to vector<8xf32>
    %566 = vector.shape_cast %565 : vector<8xf32> to vector<8x1xf32>
    %567 = vector.broadcast %566 : vector<8x1xf32> to vector<8x8xf32>
    %568 = arith.subf %564, %567 : vector<8x8xf32>
    %569 = math.exp %568 : vector<8x8xf32>
    %cst_160 = arith.constant dense<0.000000e+00> : vector<8xf32>
    %570 = vector.multi_reduction <add>, %569, %cst_160 [1] : vector<8x8xf32> to vector<8xf32>
    %571 = vector.shape_cast %570 : vector<8xf32> to vector<8x1xf32>
    %572 = tpu.reciprocal %571 {approx = true} : vector<8x1xf32> -> vector<8x1xf32>
    %573 = vector.broadcast %572 : vector<8x1xf32> to vector<8x8xf32>
    %574 = arith.mulf %569, %573 : vector<8x8xf32>
    %575 = arith.truncf %574 : vector<8x8xf32> to vector<8x8xbf16>
    %576 = arith.truncf %519 : vector<8x8xf32> to vector<8x8xbf16>
    %cst_161 = arith.constant dense<0.000000e+00> : vector<8x8xf32>
    %577 = tpu.matmul %575, %576, %cst_161 {dimension_numbers = #tpu.dot_dimension_numbers<[1], [0], [0], [1], [0, 0, 1, 1], [], []>} : vector<8x8xbf16>, vector<8x8xbf16>, vector<8x8xf32> -> vector<8x8xf32>
    %578 = vector.extract_strided_slice %388 {offsets = [0, 24], sizes = [8, 8], strides = [1, 1]} : vector<8x96xf32> to vector<8x8xf32>
    %cst_162 = arith.constant 0.353553385 : f32
    %579 = vector.broadcast %cst_162 : f32 to vector<8x8xf32>
    %580 = arith.mulf %578, %579 : vector<8x8xf32>
    %581 = vector.extract_strided_slice %388 {offsets = [0, 56], sizes = [8, 8], strides = [1, 1]} : vector<8x96xf32> to vector<8x8xf32>
    %582 = vector.extract_strided_slice %388 {offsets = [0, 88], sizes = [8, 8], strides = [1, 1]} : vector<8x96xf32> to vector<8x8xf32>
    %583 = tpu.concatenate %581, %3 in 0 : vector<8x8xf32>, vector<16x8xf32> -> vector<24x8xf32>
    %584 = arith.truncf %580 : vector<8x8xf32> to vector<8x8xbf16>
    %585 = arith.truncf %583 : vector<24x8xf32> to vector<24x8xbf16>
    %cst_163 = arith.constant dense<0.000000e+00> : vector<8x24xf32>
    %586 = tpu.matmul %584, %585, %cst_163 {dimension_numbers = #tpu.dot_dimension_numbers<[1], [1], [0], [0], [0, 0, 1, 0], [], []>} : vector<8x8xbf16>, vector<24x8xbf16>, vector<8x24xf32> -> vector<8x24xf32>
    %587 = vector.extract_strided_slice %586 {offsets = [0, 0], sizes = [8, 8], strides = [1, 1]} : vector<8x24xf32> to vector<8x8xf32>
    %588 = vector.extract_strided_slice %586 {offsets = [0, 8], sizes = [8, 16], strides = [1, 1]} : vector<8x24xf32> to vector<8x16xf32>
    %589 = tpu.iota {dimensions = array<i32: 0>} : vector<8x1xi32>
    %590 = vector.extract_strided_slice %588 {offsets = [0, 15], sizes = [8, 1], strides = [1, 1]} : vector<8x16xf32> to vector<8x1xf32>
    %591 = vector.extract_strided_slice %588 {offsets = [0, 0], sizes = [8, 15], strides = [1, 1]} : vector<8x16xf32> to vector<8x15xf32>
    %592 = tpu.concatenate %590, %591 in 1 : vector<8x1xf32>, vector<8x15xf32> -> vector<8x16xf32>
    %c0_i32_164 = arith.constant 0 : i32
    %593 = vector.broadcast %c0_i32_164 : i32 to vector<8x1xi32>
    %594 = arith.shrsi %589, %593 : vector<8x1xi32>
    %c1_i32_165 = arith.constant 1 : i32
    %595 = vector.broadcast %c1_i32_165 : i32 to vector<8x1xi32>
    %596 = arith.andi %594, %595 : vector<8x1xi32>
    %c1_i32_166 = arith.constant 1 : i32
    %597 = vector.broadcast %c1_i32_166 : i32 to vector<8x1xi32>
    %598 = arith.cmpi eq, %596, %597 : vector<8x1xi32>
    %599 = vector.shape_cast %598 : vector<8x1xi1> to vector<8x1xi1>
    %600 = vector.broadcast %599 : vector<8x1xi1> to vector<8x16xi1>
    %601 = arith.select %600, %592, %588 : vector<8x16xi1>, vector<8x16xf32>
    %602 = vector.extract_strided_slice %601 {offsets = [0, 14], sizes = [8, 2], strides = [1, 1]} : vector<8x16xf32> to vector<8x2xf32>
    %603 = vector.extract_strided_slice %601 {offsets = [0, 0], sizes = [8, 14], strides = [1, 1]} : vector<8x16xf32> to vector<8x14xf32>
    %604 = tpu.concatenate %602, %603 in 1 : vector<8x2xf32>, vector<8x14xf32> -> vector<8x16xf32>
    %c1_i32_167 = arith.constant 1 : i32
    %605 = vector.broadcast %c1_i32_167 : i32 to vector<8x1xi32>
    %606 = arith.shrsi %589, %605 : vector<8x1xi32>
    %c1_i32_168 = arith.constant 1 : i32
    %607 = vector.broadcast %c1_i32_168 : i32 to vector<8x1xi32>
    %608 = arith.andi %606, %607 : vector<8x1xi32>
    %c1_i32_169 = arith.constant 1 : i32
    %609 = vector.broadcast %c1_i32_169 : i32 to vector<8x1xi32>
    %610 = arith.cmpi eq, %608, %609 : vector<8x1xi32>
    %611 = vector.shape_cast %610 : vector<8x1xi1> to vector<8x1xi1>
    %612 = vector.broadcast %611 : vector<8x1xi1> to vector<8x16xi1>
    %613 = arith.select %612, %604, %601 : vector<8x16xi1>, vector<8x16xf32>
    %614 = vector.extract_strided_slice %613 {offsets = [0, 12], sizes = [8, 4], strides = [1, 1]} : vector<8x16xf32> to vector<8x4xf32>
    %615 = vector.extract_strided_slice %613 {offsets = [0, 0], sizes = [8, 12], strides = [1, 1]} : vector<8x16xf32> to vector<8x12xf32>
    %616 = tpu.concatenate %614, %615 in 1 : vector<8x4xf32>, vector<8x12xf32> -> vector<8x16xf32>
    %c2_i32_170 = arith.constant 2 : i32
    %617 = vector.broadcast %c2_i32_170 : i32 to vector<8x1xi32>
    %618 = arith.shrsi %589, %617 : vector<8x1xi32>
    %c1_i32_171 = arith.constant 1 : i32
    %619 = vector.broadcast %c1_i32_171 : i32 to vector<8x1xi32>
    %620 = arith.andi %618, %619 : vector<8x1xi32>
    %c1_i32_172 = arith.constant 1 : i32
    %621 = vector.broadcast %c1_i32_172 : i32 to vector<8x1xi32>
    %622 = arith.cmpi eq, %620, %621 : vector<8x1xi32>
    %623 = vector.shape_cast %622 : vector<8x1xi1> to vector<8x1xi1>
    %624 = vector.broadcast %623 : vector<8x1xi1> to vector<8x16xi1>
    %625 = arith.select %624, %616, %613 : vector<8x16xi1>, vector<8x16xf32>
    %626 = vector.extract_strided_slice %625 {offsets = [0, 0], sizes = [8, 8], strides = [1, 1]} : vector<8x16xf32> to vector<8x8xf32>
    %627 = arith.addf %587, %626 : vector<8x8xf32>
    %cst_173 = arith.constant dense<0xFF800000> : vector<8xf32>
    %628 = vector.multi_reduction <maximumf>, %627, %cst_173 [1] : vector<8x8xf32> to vector<8xf32>
    %629 = vector.shape_cast %628 : vector<8xf32> to vector<8x1xf32>
    %630 = vector.broadcast %629 : vector<8x1xf32> to vector<8x8xf32>
    %631 = arith.subf %627, %630 : vector<8x8xf32>
    %632 = math.exp %631 : vector<8x8xf32>
    %cst_174 = arith.constant dense<0.000000e+00> : vector<8xf32>
    %633 = vector.multi_reduction <add>, %632, %cst_174 [1] : vector<8x8xf32> to vector<8xf32>
    %634 = vector.shape_cast %633 : vector<8xf32> to vector<8x1xf32>
    %635 = tpu.reciprocal %634 {approx = true} : vector<8x1xf32> -> vector<8x1xf32>
    %636 = vector.broadcast %635 : vector<8x1xf32> to vector<8x8xf32>
    %637 = arith.mulf %632, %636 : vector<8x8xf32>
    %638 = arith.truncf %637 : vector<8x8xf32> to vector<8x8xbf16>
    %639 = arith.truncf %582 : vector<8x8xf32> to vector<8x8xbf16>
    %cst_175 = arith.constant dense<0.000000e+00> : vector<8x8xf32>
    %640 = tpu.matmul %638, %639, %cst_175 {dimension_numbers = #tpu.dot_dimension_numbers<[1], [0], [0], [1], [0, 0, 1, 1], [], []>} : vector<8x8xbf16>, vector<8x8xbf16>, vector<8x8xf32> -> vector<8x8xf32>
    %641 = tpu.concatenate %451, %514, %577, %640 in 1 : vector<8x8xf32>, vector<8x8xf32>, vector<8x8xf32>, vector<8x8xf32> -> vector<8x32xf32>
    %642 = arith.truncf %641 : vector<8x32xf32> to vector<8x32xbf16>
    %cst_176 = arith.constant dense<0.000000e+00> : vector<8x32xf32>
    %643 = tpu.matmul %642, %17, %cst_176 {dimension_numbers = #tpu.dot_dimension_numbers<[1], [0], [0], [1], [0, 0, 1, 1], [], []>} : vector<8x32xbf16>, vector<32x32xbf16>, vector<8x32xf32> -> vector<8x32xf32>
    %644 = arith.addf %359, %643 : vector<8x32xf32>
    %645 = vector.shape_cast %19 : vector<32xf32> to vector<1x32xf32>
    %646 = vector.broadcast %645 : vector<1x32xf32> to vector<8x32xf32>
    %647 = arith.addf %644, %646 : vector<8x32xf32>
    %cst_177 = arith.constant dense<0.000000e+00> : vector<8xf32>
    %648 = vector.multi_reduction <add>, %647, %cst_177 [1] : vector<8x32xf32> to vector<8xf32>
    %649 = vector.shape_cast %648 : vector<8xf32> to vector<8x1xf32>
    %cst_178 = arith.constant 3.200000e+01 : f32
    %650 = vector.broadcast %cst_178 : f32 to vector<8x1xf32>
    %651 = arith.divf %649, %650 : vector<8x1xf32>
    %652 = vector.broadcast %651 : vector<8x1xf32> to vector<8x32xf32>
    %653 = arith.subf %647, %652 : vector<8x32xf32>
    %654 = arith.mulf %653, %653 : vector<8x32xf32>
    %cst_179 = arith.constant dense<0.000000e+00> : vector<8xf32>
    %655 = vector.multi_reduction <add>, %654, %cst_179 [1] : vector<8x32xf32> to vector<8xf32>
    %656 = vector.shape_cast %655 : vector<8xf32> to vector<8x1xf32>
    %cst_180 = arith.constant 3.200000e+01 : f32
    %657 = vector.broadcast %cst_180 : f32 to vector<8x1xf32>
    %658 = arith.divf %656, %657 : vector<8x1xf32>
    %659 = vector.broadcast %651 : vector<8x1xf32> to vector<8x32xf32>
    %660 = arith.subf %647, %659 : vector<8x32xf32>
    %cst_181 = arith.constant 9.99999974E-6 : f32
    %661 = vector.broadcast %cst_181 : f32 to vector<8x1xf32>
    %662 = arith.addf %658, %661 : vector<8x1xf32>
    %663 = math.rsqrt %662 : vector<8x1xf32>
    %664 = vector.broadcast %663 : vector<8x1xf32> to vector<8x32xf32>
    %665 = arith.mulf %660, %664 : vector<8x32xf32>
    %666 = vector.shape_cast %9 : vector<32xf32> to vector<1x32xf32>
    %667 = vector.broadcast %666 : vector<1x32xf32> to vector<8x32xf32>
    %668 = arith.mulf %665, %667 : vector<8x32xf32>
    %669 = vector.shape_cast %11 : vector<32xf32> to vector<1x32xf32>
    %670 = vector.broadcast %669 : vector<1x32xf32> to vector<8x32xf32>
    %671 = arith.addf %668, %670 : vector<8x32xf32>
    %672 = arith.truncf %671 : vector<8x32xf32> to vector<8x32xbf16>
    %cst_182 = arith.constant dense<0.000000e+00> : vector<8x64xf32>
    %673 = tpu.matmul %672, %21, %cst_182 {dimension_numbers = #tpu.dot_dimension_numbers<[1], [0], [0], [1], [0, 0, 1, 1], [], []>} : vector<8x32xbf16>, vector<32x64xbf16>, vector<8x64xf32> -> vector<8x64xf32>
    %674 = vector.shape_cast %23 : vector<64xf32> to vector<1x64xf32>
    %675 = vector.broadcast %674 : vector<1x64xf32> to vector<8x64xf32>
    %676 = arith.addf %673, %675 : vector<8x64xf32>
    %cst_183 = arith.constant 0.000000e+00 : f32
    %677 = vector.broadcast %cst_183 : f32 to vector<8x64xf32>
    %678 = arith.maximumf %676, %677 : vector<8x64xf32>
    %679 = arith.truncf %678 : vector<8x64xf32> to vector<8x64xbf16>
    %cst_184 = arith.constant dense<0.000000e+00> : vector<8x32xf32>
    %680 = tpu.matmul %679, %25, %cst_184 {dimension_numbers = #tpu.dot_dimension_numbers<[1], [0], [0], [1], [0, 0, 1, 1], [], []>} : vector<8x64xbf16>, vector<64x32xbf16>, vector<8x32xf32> -> vector<8x32xf32>
    %681 = arith.addf %647, %680 : vector<8x32xf32>
    %682 = vector.shape_cast %27 : vector<32xf32> to vector<1x32xf32>
    %683 = vector.broadcast %682 : vector<1x32xf32> to vector<8x32xf32>
    %684 = arith.addf %681, %683 : vector<8x32xf32>
    %c1_185 = arith.constant 1 : index
    %c0_186 = arith.constant 0 : index
    %c0_187 = arith.constant 0 : index
    %685 = vector.load %arg22[%c1_185, %c0_186, %c0_187] : memref<2x8x32xf32, #tpu.memory_space<vmem>>, vector<1x8x32xf32>
    %686 = vector.shape_cast %685 : vector<1x8x32xf32> to vector<8x32xf32>
    %687 = vector.shape_cast %684 : vector<8x32xf32> to vector<1x8x32xf32>
    tpu.vector_store %arg22[%c1_185, %c0_186, %c0_187], %687 {strides = array<i32>} : memref<2x8x32xf32, #tpu.memory_space<vmem>>, vector<1x8x32xf32>,
    %c1_i32_188 = arith.constant 1 : i32
    %688 = arith.cmpi eq, %arg1, %c1_i32_188 : i32
    %689 = arith.extui %688 : i1 to i32
    %c0_i32_189 = arith.constant 0 : i32
    %690 = arith.cmpi ne, %689, %c0_i32_189 : i32
    scf.if %690 {
      %c0_190 = arith.constant 0 : index
      %c0_191 = arith.constant 0 : index
      %691 = vector.load %arg8[%c0_190, %c0_191] : memref<1x32xf32, #tpu.memory_space<vmem>>, vector<1x32xf32>
      %692 = vector.shape_cast %691 : vector<1x32xf32> to vector<32xf32>
      %c0_192 = arith.constant 0 : index
      %c0_193 = arith.constant 0 : index
      %693 = vector.load %arg9[%c0_192, %c0_193] : memref<1x32xf32, #tpu.memory_space<vmem>>, vector<1x32xf32>
      %694 = vector.shape_cast %693 : vector<1x32xf32> to vector<32xf32>
      %c0_194 = arith.constant 0 : index
      %c0_195 = arith.constant 0 : index
      %c0_196 = arith.constant 0 : index
      %695 = vector.load %arg22[%c0_194, %c0_195, %c0_196] : memref<2x8x32xf32, #tpu.memory_space<vmem>>, vector<1x8x32xf32>
      %696 = vector.shape_cast %695 : vector<1x8x32xf32> to vector<8x32xf32>
      %cst_197 = arith.constant dense<0.000000e+00> : vector<8xf32>
      %697 = vector.multi_reduction <add>, %696, %cst_197 [1] : vector<8x32xf32> to vector<8xf32>
      %698 = vector.shape_cast %697 : vector<8xf32> to vector<8x1xf32>
      %cst_198 = arith.constant 3.200000e+01 : f32
      %699 = vector.broadcast %cst_198 : f32 to vector<8x1xf32>
      %700 = arith.divf %698, %699 : vector<8x1xf32>
      %701 = vector.broadcast %700 : vector<8x1xf32> to vector<8x32xf32>
      %702 = arith.subf %696, %701 : vector<8x32xf32>
      %703 = arith.mulf %702, %702 : vector<8x32xf32>
      %cst_199 = arith.constant dense<0.000000e+00> : vector<8xf32>
      %704 = vector.multi_reduction <add>, %703, %cst_199 [1] : vector<8x32xf32> to vector<8xf32>
      %705 = vector.shape_cast %704 : vector<8xf32> to vector<8x1xf32>
      %cst_200 = arith.constant 3.200000e+01 : f32
      %706 = vector.broadcast %cst_200 : f32 to vector<8x1xf32>
      %707 = arith.divf %705, %706 : vector<8x1xf32>
      %708 = vector.broadcast %700 : vector<8x1xf32> to vector<8x32xf32>
      %709 = arith.subf %696, %708 : vector<8x32xf32>
      %cst_201 = arith.constant 9.99999974E-6 : f32
      %710 = vector.broadcast %cst_201 : f32 to vector<8x1xf32>
      %711 = arith.addf %707, %710 : vector<8x1xf32>
      %712 = math.rsqrt %711 : vector<8x1xf32>
      %713 = vector.broadcast %712 : vector<8x1xf32> to vector<8x32xf32>
      %714 = arith.mulf %709, %713 : vector<8x32xf32>
      %715 = vector.shape_cast %692 : vector<32xf32> to vector<1x32xf32>
      %716 = vector.broadcast %715 : vector<1x32xf32> to vector<8x32xf32>
      %717 = arith.mulf %714, %716 : vector<8x32xf32>
      %718 = vector.shape_cast %694 : vector<32xf32> to vector<1x32xf32>
      %719 = vector.broadcast %718 : vector<1x32xf32> to vector<8x32xf32>
      %720 = arith.addf %717, %719 : vector<8x32xf32>
      %c0_202 = arith.constant 0 : index
      %c0_203 = arith.constant 0 : index
      %c0_204 = arith.constant 0 : index
      %721 = vector.load %arg22[%c0_202, %c0_203, %c0_204] : memref<2x8x32xf32, #tpu.memory_space<vmem>>, vector<1x8x32xf32>
      %722 = vector.shape_cast %721 : vector<1x8x32xf32> to vector<8x32xf32>
      %723 = vector.shape_cast %720 : vector<8x32xf32> to vector<1x8x32xf32>
      tpu.vector_store %arg22[%c0_202, %c0_203, %c0_204], %723 {strides = array<i32>} : memref<2x8x32xf32, #tpu.memory_space<vmem>>, vector<1x8x32xf32>,
      %c1_205 = arith.constant 1 : index
      %c0_206 = arith.constant 0 : index
      %c0_207 = arith.constant 0 : index
      %724 = vector.load %arg22[%c1_205, %c0_206, %c0_207] : memref<2x8x32xf32, #tpu.memory_space<vmem>>, vector<1x8x32xf32>
      %725 = vector.shape_cast %724 : vector<1x8x32xf32> to vector<8x32xf32>
      %cst_208 = arith.constant dense<0.000000e+00> : vector<8xf32>
      %726 = vector.multi_reduction <add>, %725, %cst_208 [1] : vector<8x32xf32> to vector<8xf32>
      %727 = vector.shape_cast %726 : vector<8xf32> to vector<8x1xf32>
      %cst_209 = arith.constant 3.200000e+01 : f32
      %728 = vector.broadcast %cst_209 : f32 to vector<8x1xf32>
      %729 = arith.divf %727, %728 : vector<8x1xf32>
      %730 = vector.broadcast %729 : vector<8x1xf32> to vector<8x32xf32>
      %731 = arith.subf %725, %730 : vector<8x32xf32>
      %732 = arith.mulf %731, %731 : vector<8x32xf32>
      %cst_210 = arith.constant dense<0.000000e+00> : vector<8xf32>
      %733 = vector.multi_reduction <add>, %732, %cst_210 [1] : vector<8x32xf32> to vector<8xf32>
      %734 = vector.shape_cast %733 : vector<8xf32> to vector<8x1xf32>
      %cst_211 = arith.constant 3.200000e+01 : f32
      %735 = vector.broadcast %cst_211 : f32 to vector<8x1xf32>
      %736 = arith.divf %734, %735 : vector<8x1xf32>
      %737 = vector.broadcast %729 : vector<8x1xf32> to vector<8x32xf32>
      %738 = arith.subf %725, %737 : vector<8x32xf32>
      %cst_212 = arith.constant 9.99999974E-6 : f32
      %739 = vector.broadcast %cst_212 : f32 to vector<8x1xf32>
      %740 = arith.addf %736, %739 : vector<8x1xf32>
      %741 = math.rsqrt %740 : vector<8x1xf32>
      %742 = vector.broadcast %741 : vector<8x1xf32> to vector<8x32xf32>
      %743 = arith.mulf %738, %742 : vector<8x32xf32>
      %744 = vector.shape_cast %692 : vector<32xf32> to vector<1x32xf32>
      %745 = vector.broadcast %744 : vector<1x32xf32> to vector<8x32xf32>
      %746 = arith.mulf %743, %745 : vector<8x32xf32>
      %747 = vector.shape_cast %694 : vector<32xf32> to vector<1x32xf32>
      %748 = vector.broadcast %747 : vector<1x32xf32> to vector<8x32xf32>
      %749 = arith.addf %746, %748 : vector<8x32xf32>
      %c1_213 = arith.constant 1 : index
      %c0_214 = arith.constant 0 : index
      %c0_215 = arith.constant 0 : index
      %750 = vector.load %arg22[%c1_213, %c0_214, %c0_215] : memref<2x8x32xf32, #tpu.memory_space<vmem>>, vector<1x8x32xf32>
      %751 = vector.shape_cast %750 : vector<1x8x32xf32> to vector<8x32xf32>
      %752 = vector.shape_cast %749 : vector<8x32xf32> to vector<1x8x32xf32>
      tpu.vector_store %arg22[%c1_213, %c0_214, %c0_215], %752 {strides = array<i32>} : memref<2x8x32xf32, #tpu.memory_space<vmem>>, vector<1x8x32xf32>,
    } else {
    }
    return
  }
  func.func @transform_0(%arg0: i32, %arg1: i32) -> (i32, i32, i32) {
    %c0_i32 = arith.constant 0 : i32
    %c0_i32_0 = arith.constant 0 : i32
    %c0_i32_1 = arith.constant 0 : i32
    return %arg0, %c0_i32, %c0_i32_0 : i32, i32, i32
  }
  func.func @transform_1(%arg0: i32, %arg1: i32) -> (i32, i32) {
    %c0_i32 = arith.constant 0 : i32
    %c0_i32_0 = arith.constant 0 : i32
    %c0_i32_1 = arith.constant 0 : i32
    return %c0_i32, %c0_i32_0 : i32, i32
  }
  func.func @transform_2(%arg0: i32, %arg1: i32) -> (i32, i32) {
    %c0_i32 = arith.constant 0 : i32
    %c0_i32_0 = arith.constant 0 : i32
    %c0_i32_1 = arith.constant 0 : i32
    return %c0_i32, %c0_i32_0 : i32, i32
  }
  func.func @transform_3(%arg0: i32, %arg1: i32) -> (i32, i32) {
    %c0_i32 = arith.constant 0 : i32
    %c0_i32_0 = arith.constant 0 : i32
    %c0_i32_1 = arith.constant 0 : i32
    return %c0_i32, %c0_i32_0 : i32, i32
  }
  func.func @transform_4(%arg0: i32, %arg1: i32) -> (i32, i32) {
    %c0_i32 = arith.constant 0 : i32
    %c0_i32_0 = arith.constant 0 : i32
    %c0_i32_1 = arith.constant 0 : i32
    return %c0_i32, %c0_i32_0 : i32, i32
  }
  func.func @transform_5(%arg0: i32, %arg1: i32) -> (i32, i32) {
    %c0_i32 = arith.constant 0 : i32
    %c0_i32_0 = arith.constant 0 : i32
    %c0_i32_1 = arith.constant 0 : i32
    return %c0_i32, %c0_i32_0 : i32, i32
  }
  func.func @transform_6(%arg0: i32, %arg1: i32) -> (i32, i32) {
    %c0_i32 = arith.constant 0 : i32
    %c0_i32_0 = arith.constant 0 : i32
    %c0_i32_1 = arith.constant 0 : i32
    return %c0_i32, %c0_i32_0 : i32, i32
  }
  func.func @transform_7(%arg0: i32, %arg1: i32) -> (i32, i32) {
    %c0_i32 = arith.constant 0 : i32
    %c0_i32_0 = arith.constant 0 : i32
    %c0_i32_1 = arith.constant 0 : i32
    return %c0_i32, %c0_i32_0 : i32, i32
  }
  func.func @transform_8(%arg0: i32, %arg1: i32) -> (i32, i32, i32) {
    %c0_i32 = arith.constant 0 : i32
    %c0_i32_0 = arith.constant 0 : i32
    %c0_i32_1 = arith.constant 0 : i32
    return %arg1, %c0_i32, %c0_i32_0 : i32, i32, i32
  }
  func.func @transform_9(%arg0: i32, %arg1: i32) -> (i32, i32, i32) {
    %c0_i32 = arith.constant 0 : i32
    %c0_i32_0 = arith.constant 0 : i32
    %c0_i32_1 = arith.constant 0 : i32
    return %arg1, %c0_i32, %c0_i32_0 : i32, i32, i32
  }
  func.func @transform_10(%arg0: i32, %arg1: i32) -> (i32, i32, i32) {
    %c0_i32 = arith.constant 0 : i32
    %c0_i32_0 = arith.constant 0 : i32
    %c0_i32_1 = arith.constant 0 : i32
    return %arg1, %c0_i32, %c0_i32_0 : i32, i32, i32
  }
  func.func @transform_11(%arg0: i32, %arg1: i32) -> (i32, i32, i32) {
    %c0_i32 = arith.constant 0 : i32
    %c0_i32_0 = arith.constant 0 : i32
    %c0_i32_1 = arith.constant 0 : i32
    return %arg1, %c0_i32, %c0_i32_0 : i32, i32, i32
  }
  func.func @transform_12(%arg0: i32, %arg1: i32) -> (i32, i32, i32) {
    %c0_i32 = arith.constant 0 : i32
    %c0_i32_0 = arith.constant 0 : i32
    %c0_i32_1 = arith.constant 0 : i32
    return %arg1, %c0_i32, %c0_i32_0 : i32, i32, i32
  }
  func.func @transform_13(%arg0: i32, %arg1: i32) -> (i32, i32, i32) {
    %c0_i32 = arith.constant 0 : i32
    %c0_i32_0 = arith.constant 0 : i32
    %c0_i32_1 = arith.constant 0 : i32
    return %arg1, %c0_i32, %c0_i32_0 : i32, i32, i32
  }
  func.func @transform_14(%arg0: i32, %arg1: i32) -> (i32, i32, i32) {
    %c0_i32 = arith.constant 0 : i32
    %c0_i32_0 = arith.constant 0 : i32
    %c0_i32_1 = arith.constant 0 : i32
    return %arg1, %c0_i32, %c0_i32_0 : i32, i32, i32
  }
  func.func @transform_15(%arg0: i32, %arg1: i32) -> (i32, i32, i32) {
    %c0_i32 = arith.constant 0 : i32
    %c0_i32_0 = arith.constant 0 : i32
    %c0_i32_1 = arith.constant 0 : i32
    return %arg1, %c0_i32, %c0_i32_0 : i32, i32, i32
  }
  func.func @transform_16(%arg0: i32, %arg1: i32) -> (i32, i32, i32) {
    %c0_i32 = arith.constant 0 : i32
    %c0_i32_0 = arith.constant 0 : i32
    %c0_i32_1 = arith.constant 0 : i32
    return %arg1, %c0_i32, %c0_i32_0 : i32, i32, i32
  }
  func.func @transform_17(%arg0: i32, %arg1: i32) -> (i32, i32, i32) {
    %c0_i32 = arith.constant 0 : i32
    %c0_i32_0 = arith.constant 0 : i32
    %c0_i32_1 = arith.constant 0 : i32
    return %arg1, %c0_i32, %c0_i32_0 : i32, i32, i32
  }
  func.func @transform_18(%arg0: i32, %arg1: i32) -> (i32, i32, i32) {
    %c0_i32 = arith.constant 0 : i32
    %c0_i32_0 = arith.constant 0 : i32
    %c0_i32_1 = arith.constant 0 : i32
    return %arg1, %c0_i32, %c0_i32_0 : i32, i32, i32
  }
  func.func @transform_19(%arg0: i32, %arg1: i32) -> (i32, i32, i32) {
    %c0_i32 = arith.constant 0 : i32
    %c0_i32_0 = arith.constant 0 : i32
    %c0_i32_1 = arith.constant 0 : i32
    return %arg1, %c0_i32, %c0_i32_0 : i32, i32, i32
  }
  func.func @transform_20(%arg0: i32, %arg1: i32) -> (i32, i32, i32) {
    %c0_i32 = arith.constant 0 : i32
    %c0_i32_0 = arith.constant 0 : i32
    %c0_i32_1 = arith.constant 0 : i32
    return %arg0, %c0_i32, %c0_i32_0 : i32, i32, i32
  }
}

</mosaic_0001>

<llo_original>
// kernel: tpu_custom_call.1
$region0: #{tpu_custom_call.1}
  #allocation0 [shape = 'u32[]', space=smem, size = 0x4, offset = 0x4, fixed_abs, tag = 'smem constant byte address 0x4 - core index']
  #allocation1 [shape = 'u32[144,128]{1,0:T(1,128)}', space=vmem, size = 0x12000, scoped, tag = 'internal scratch']
  %s0 = inlined_call_operand.vmem [shape: f32[2,8,16], index: 0, kind: input, shape index: {}]
  %s1 = inlined_call_operand.vmem [shape: f32[16,8], index: 1, kind: input, shape index: {}]
  %s2 = inlined_call_operand.vmem [shape: bf16[16,32], index: 2, kind: input, shape index: {}]
  %s3 = inlined_call_operand.vmem [shape: f32[1,32], index: 3, kind: input, shape index: {}]
  %s4 = inlined_call_operand.hbm [shape: f32[1,32], index: 4, kind: input, shape index: {}]
  %s5 = inlined_call_operand.hbm [shape: f32[1,32], index: 5, kind: input, shape index: {}]
  %s6 = inlined_call_operand.hbm [shape: f32[1,32], index: 6, kind: input, shape index: {}]
  %s7 = inlined_call_operand.hbm [shape: f32[1,32], index: 7, kind: input, shape index: {}]
  %s8 = inlined_call_operand.vmem [shape: f32[2,1,32], index: 8, kind: input, shape index: {}]
  %s9 = inlined_call_operand.vmem [shape: f32[2,1,32], index: 9, kind: input, shape index: {}]
  %s10 = inlined_call_operand.vmem [shape: bf16[2,32,96], index: 10, kind: input, shape index: {}]
  %s11 = inlined_call_operand.vmem [shape: f32[2,1,96], index: 11, kind: input, shape index: {}]
  %s12 = inlined_call_operand.vmem [shape: bf16[2,32,32], index: 12, kind: input, shape index: {}]
  %s13 = inlined_call_operand.vmem [shape: f32[2,1,32], index: 13, kind: input, shape index: {}]
  %s14 = inlined_call_operand.vmem [shape: f32[2,1,32], index: 14, kind: input, shape index: {}]
  %s15 = inlined_call_operand.vmem [shape: f32[2,1,32], index: 15, kind: input, shape index: {}]
  %s16 = inlined_call_operand.vmem [shape: bf16[2,32,64], index: 16, kind: input, shape index: {}]
  %s17 = inlined_call_operand.vmem [shape: f32[2,1,64], index: 17, kind: input, shape index: {}]
  %s18 = inlined_call_operand.vmem [shape: bf16[2,64,32], index: 18, kind: input, shape index: {}]
  %s19 = inlined_call_operand.vmem [shape: f32[2,1,32], index: 19, kind: input, shape index: {}]
  %s20 = inlined_call_operand.hbm [shape: f32[2,8,32], index: 20, kind: output, shape index: {}]
  %s21 = sld [smem:[#allocation0]]
  $region137: #{tpu_custom_call.1} parent=0
    _
  %s23 = ssub.s32 1, %s21
  %s24 = scalar_select 0, %s23, %s21
  $region1: #{tpu_custom_call.1} parent=0
    #allocation2 [shape = 'u8[512]{0}', space=vmem, size = 0x400, scoped, tag = 'input window, operand 4, single buffered']
    #allocation3 [shape = 's32[2]{0}', space=sflag, size = 0x8, scoped, tag = 'scoped memory for tpu_custom_call.1']
    #allocation4 [shape = 's32[2]{0}', space=sflag, size = 0x8, scoped, tag = 'scoped memory for tpu_custom_call.1']
    #allocation5 [shape = 'u8[512]{0}', space=vmem, size = 0x400, scoped, tag = 'input window, operand 5, single buffered']
    #allocation6 [shape = 's32[1]{0}', space=sflag, size = 0x4, scoped, tag = 'scoped memory for tpu_custom_call.1']
    #allocation7 [shape = 'u8[512]{0}', space=vmem, size = 0x400, scoped, tag = 'input window, operand 6, single buffered']
    #allocation8 [shape = 'u8[512]{0}', space=vmem, size = 0x400, scoped, tag = 'input window, operand 7, single buffered']
    #allocation9 [shape = 's32[1]{0}', space=sflag, size = 0x4, scoped, tag = 'scoped memory for tpu_custom_call.1']
    #allocation10 [shape = 'u8[8192]{0}', space=vmem, size = 0x2000, scoped, tag = 'output window, operand 0, single buffered']
    %25 = vsyncpa [#allocation3], 0
    %26 = vsyncpa [#allocation6], 0
    %27 = vsyncpa [#allocation9], 0
    %28 = vsyncpa [#allocation4], 0
    loop: start=0, step=1, limit=4
    $region2: #{tpu_custom_call.1} parent=1 // loop_pre_header
      _
    $region3: #{tpu_custom_call.1} parent=1 // loop_header
      %s30 = sphi 0, %s34
      %p31 = scmp.ge.s32.totalorder %s30, 4
      %s37 = sphi 0, %s49
      %s38 = sphi 0, %s45
      %s39 = sphi 0, %s37
      %s40 = sphi 0, %s38
      %s41 = sphi 0, %s39
      %s42 = sphi 0, %s40
      %s52 = sphi 0, %s54
      %s55 = sphi 0, %s52
      %s56 = sphi 0, %s55
      %s72 = sphi 0, %s56
      %s76 = sphi 0, %s76
      %s78 = sphi 0, %s76
      %s79 = sphi 0, %s78
      %s93 = sphi 0, %s79
      %s97 = sphi 0, %s97
      %s99 = sphi 0, %s97
      %s100 = sphi 0, %s99
      %s114 = sphi 0, %s100
      %s118 = sphi 0, %s118
      %s120 = sphi 0, %s118
      %s121 = sphi 0, %s120
      %s135 = sphi 0, %s121
      %s139 = sphi 0, %s139
      %s141 = sphi 0, %s139
      %s142 = sphi 0, %s141
      %s156 = sphi 0, %s142
      %s160 = sphi 0, %s160
      %s162 = sphi 0, %s160
      %s163 = sphi 0, %s162
      %s177 = sphi 0, %s163
      %s181 = sphi 0, %s181
      %s183 = sphi 0, %s181
      %s184 = sphi 0, %s183
      %s198 = sphi 0, %s184
      %s202 = sphi 0, %s202
      %s204 = sphi 0, %s202
      %s205 = sphi 0, %s204
      %s219 = sphi 0, %s205
      %s225 = sphi 0, %s227
      %s228 = sphi 0, %s225
      %s229 = sphi 0, %s228
      %s245 = sphi 0, %s229
      %s251 = sphi 0, %s253
      %s254 = sphi 0, %s251
      %s255 = sphi 0, %s254
      %s271 = sphi 0, %s255
      %s277 = sphi 0, %s279
      %s280 = sphi 0, %s277
      %s281 = sphi 0, %s280
      %s297 = sphi 0, %s281
      %s303 = sphi 0, %s305
      %s306 = sphi 0, %s303
      %s307 = sphi 0, %s306
      %s323 = sphi 0, %s307
      %s329 = sphi 0, %s331
      %s332 = sphi 0, %s329
      %s333 = sphi 0, %s332
      %s349 = sphi 0, %s333
      %s355 = sphi 0, %s357
      %s358 = sphi 0, %s355
      %s359 = sphi 0, %s358
      %s375 = sphi 0, %s359
      %s381 = sphi 0, %s383
      %s384 = sphi 0, %s381
      %s385 = sphi 0, %s384
      %s401 = sphi 0, %s385
      %s407 = sphi 0, %s409
      %s410 = sphi 0, %s407
      %s411 = sphi 0, %s410
      %s427 = sphi 0, %s411
      %s433 = sphi 0, %s435
      %s436 = sphi 0, %s433
      %s437 = sphi 0, %s436
      %s453 = sphi 0, %s437
      %s459 = sphi 0, %s461
      %s462 = sphi 0, %s459
      %s463 = sphi 0, %s462
      %s479 = sphi 0, %s463
      %s485 = sphi 0, %s487
      %s488 = sphi 0, %s485
      %s489 = sphi 0, %s488
      %s505 = sphi 0, %s489
      %s511 = sphi 0, %s513
      %s514 = sphi 0, %s511
      %s515 = sphi 0, %s514
      %s531 = sphi 0, %s515
      %s537 = sphi 0, %s539
      %s540 = sphi 0, %s537
      %s541 = sphi 0, %s540
      %s557 = sphi 0, %s541
    $region4: #{tpu_custom_call.1} parent=1 // loop_header_branch
      %33 = sbr.rel (%p31) target = $region8
    $region5: #{tpu_custom_call.1} parent=1 // loop_body
      %s35 = ssub.s32 %s30, 1
      %s36 = ssub.s32 %s30, 2
      %s43 = sadd.s32 1, %s38
      %p44 = scmp.ge.s32.totalorder %s43, 2
      %s45 = scalar_select %p44, 0, %s43
      %s46 = sadd.s32 1, %s37
      %s47 = scalar_select %p44, %s46, %s37
      %p48 = scmp.ge.s32.totalorder %s47, 1
      %s49 = scalar_select %p48, 0, %s47
      %s50 = ssub.s32 %s37, %s49
      %p51 = scmp.eq.s32.totalorder %s50, 0
      %s53 = sadd.s32 %s52, 1
      %s54 = scalar_select %p51, %s52, %s53
      %p57 = pneg %p51
      %p58 = scmp.eq.s32.totalorder %s30, 1
      %p59 = por %p57, %p58
      %p60 = scmp.ne.s32.totalorder %s52, %s55
      %p61 = scmp.eq.s32.totalorder %s30, 0
      %p62 = por %p60, %p61
      %p63 = scmp.ne.s32.totalorder %s52, %s55
      %p64 = scmp.eq.s32.totalorder %s35, 1
      %p65 = por %p63, %p64
      %p66 = scmp.ne.s32.totalorder %s55, %s56
      %p67 = scmp.eq.s32.totalorder %s35, 0
      %p68 = por %p66, %p67
      %p69 = scmp.ne.s32.totalorder %s55, %s56
      %p70 = scmp.eq.s32.totalorder %s36, 1
      %p71 = por %p69, %p70
      %p73 = scmp.ne.s32.totalorder %s56, %s72
      %p74 = scmp.eq.s32.totalorder %s36, 0
      %p75 = por %p73, %p74
      %s77 = sadd.s32 %s76, 1
      %p80 = scmp.eq.s32.totalorder %s30, 1
      %p81 = scmp.ne.s32.totalorder %s76, %s78
      %p82 = scmp.eq.s32.totalorder %s30, 0
      %p83 = por %p81, %p82
      %p84 = scmp.ne.s32.totalorder %s76, %s78
      %p85 = scmp.eq.s32.totalorder %s35, 1
      %p86 = por %p84, %p85
      %p87 = scmp.ne.s32.totalorder %s78, %s79
      %p88 = scmp.eq.s32.totalorder %s35, 0
      %p89 = por %p87, %p88
      %p90 = scmp.ne.s32.totalorder %s78, %s79
      %p91 = scmp.eq.s32.totalorder %s36, 1
      %p92 = por %p90, %p91
      %p94 = scmp.ne.s32.totalorder %s79, %s93
      %p95 = scmp.eq.s32.totalorder %s36, 0
      %p96 = por %p94, %p95
      %s98 = sadd.s32 %s97, 1
      %p101 = scmp.eq.s32.totalorder %s30, 1
      %p102 = scmp.ne.s32.totalorder %s97, %s99
      %p103 = scmp.eq.s32.totalorder %s30, 0
      %p104 = por %p102, %p103
      %p105 = scmp.ne.s32.totalorder %s97, %s99
      %p106 = scmp.eq.s32.totalorder %s35, 1
      %p107 = por %p105, %p106
      %p108 = scmp.ne.s32.totalorder %s99, %s100
      %p109 = scmp.eq.s32.totalorder %s35, 0
      %p110 = por %p108, %p109
      %p111 = scmp.ne.s32.totalorder %s99, %s100
      %p112 = scmp.eq.s32.totalorder %s36, 1
      %p113 = por %p111, %p112
      %p115 = scmp.ne.s32.totalorder %s100, %s114
      %p116 = scmp.eq.s32.totalorder %s36, 0
      %p117 = por %p115, %p116
      %s119 = sadd.s32 %s118, 1
      %p122 = scmp.eq.s32.totalorder %s30, 1
      %p123 = scmp.ne.s32.totalorder %s118, %s120
      %p124 = scmp.eq.s32.totalorder %s30, 0
      %p125 = por %p123, %p124
      %p126 = scmp.ne.s32.totalorder %s118, %s120
      %p127 = scmp.eq.s32.totalorder %s35, 1
      %p128 = por %p126, %p127
      %p129 = scmp.ne.s32.totalorder %s120, %s121
      %p130 = scmp.eq.s32.totalorder %s35, 0
      %p131 = por %p129, %p130
      %p132 = scmp.ne.s32.totalorder %s120, %s121
      %p133 = scmp.eq.s32.totalorder %s36, 1
      %p134 = por %p132, %p133
      %p136 = scmp.ne.s32.totalorder %s121, %s135
      %p137 = scmp.eq.s32.totalorder %s36, 0
      %p138 = por %p136, %p137
      %s140 = sadd.s32 %s139, 1
      %p143 = scmp.eq.s32.totalorder %s30, 1
      %p144 = scmp.ne.s32.totalorder %s139, %s141
      %p145 = scmp.eq.s32.totalorder %s30, 0
      %p146 = por %p144, %p145
      %p147 = scmp.ne.s32.totalorder %s139, %s141
      %p148 = scmp.eq.s32.totalorder %s35, 1
      %p149 = por %p147, %p148
      %p150 = scmp.ne.s32.totalorder %s141, %s142
      %p151 = scmp.eq.s32.totalorder %s35, 0
      %p152 = por %p150, %p151
      %p153 = scmp.ne.s32.totalorder %s141, %s142
      %p154 = scmp.eq.s32.totalorder %s36, 1
      %p155 = por %p153, %p154
      %p157 = scmp.ne.s32.totalorder %s142, %s156
      %p158 = scmp.eq.s32.totalorder %s36, 0
      %p159 = por %p157, %p158
      %s161 = sadd.s32 %s160, 1
      %p164 = scmp.eq.s32.totalorder %s30, 1
      %p165 = scmp.ne.s32.totalorder %s160, %s162
      %p166 = scmp.eq.s32.totalorder %s30, 0
      %p167 = por %p165, %p166
      %p168 = scmp.ne.s32.totalorder %s160, %s162
      %p169 = scmp.eq.s32.totalorder %s35, 1
      %p170 = por %p168, %p169
      %p171 = scmp.ne.s32.totalorder %s162, %s163
      %p172 = scmp.eq.s32.totalorder %s35, 0
      %p173 = por %p171, %p172
      %p174 = scmp.ne.s32.totalorder %s162, %s163
      %p175 = scmp.eq.s32.totalorder %s36, 1
      %p176 = por %p174, %p175
      %p178 = scmp.ne.s32.totalorder %s163, %s177
      %p179 = scmp.eq.s32.totalorder %s36, 0
      %p180 = por %p178, %p179
      %s182 = sadd.s32 %s181, 1
      %p185 = scmp.eq.s32.totalorder %s30, 1
      %p186 = scmp.ne.s32.totalorder %s181, %s183
      %p187 = scmp.eq.s32.totalorder %s30, 0
      %p188 = por %p186, %p187
      %p189 = scmp.ne.s32.totalorder %s181, %s183
      %p190 = scmp.eq.s32.totalorder %s35, 1
      %p191 = por %p189, %p190
      %p192 = scmp.ne.s32.totalorder %s183, %s184
      %p193 = scmp.eq.s32.totalorder %s35, 0
      %p194 = por %p192, %p193
      %p195 = scmp.ne.s32.totalorder %s183, %s184
      %p196 = scmp.eq.s32.totalorder %s36, 1
      %p197 = por %p195, %p196
      %p199 = scmp.ne.s32.totalorder %s184, %s198
      %p200 = scmp.eq.s32.totalorder %s36, 0
      %p201 = por %p199, %p200
      %s203 = sadd.s32 %s202, 1
      %p206 = scmp.eq.s32.totalorder %s30, 1
      %p207 = scmp.ne.s32.totalorder %s202, %s204
      %p208 = scmp.eq.s32.totalorder %s30, 0
      %p209 = por %p207, %p208
      %p210 = scmp.ne.s32.totalorder %s202, %s204
      %p211 = scmp.eq.s32.totalorder %s35, 1
      %p212 = por %p210, %p211
      %p213 = scmp.ne.s32.totalorder %s204, %s205
      %p214 = scmp.eq.s32.totalorder %s35, 0
      %p215 = por %p213, %p214
      %p216 = scmp.ne.s32.totalorder %s204, %s205
      %p217 = scmp.eq.s32.totalorder %s36, 1
      %p218 = por %p216, %p217
      %p220 = scmp.ne.s32.totalorder %s205, %s219
      %p221 = scmp.eq.s32.totalorder %s36, 0
      %p222 = por %p220, %p221
      %s223 = ssub.s32 %s38, %s45
      %p224 = scmp.eq.s32.totalorder %s223, 0
      %s226 = sadd.s32 %s225, 1
      %s227 = scalar_select %p224, %s225, %s226
      %p230 = pneg %p224
      %p231 = scmp.eq.s32.totalorder %s30, 1
      %p232 = por %p230, %p231
      %p233 = scmp.ne.s32.totalorder %s225, %s228
      %p234 = scmp.eq.s32.totalorder %s30, 0
      %p235 = por %p233, %p234
      %p236 = scmp.ne.s32.totalorder %s225, %s228
      %p237 = scmp.eq.s32.totalorder %s35, 1
      %p238 = por %p236, %p237
      %p239 = scmp.ne.s32.totalorder %s228, %s229
      %p240 = scmp.eq.s32.totalorder %s35, 0
      %p241 = por %p239, %p240
      %p242 = scmp.ne.s32.totalorder %s228, %s229
      %p243 = scmp.eq.s32.totalorder %s36, 1
      %p244 = por %p242, %p243
      %p246 = scmp.ne.s32.totalorder %s229, %s245
      %p247 = scmp.eq.s32.totalorder %s36, 0
      %p248 = por %p246, %p247
      %s249 = ssub.s32 %s38, %s45
      %p250 = scmp.eq.s32.totalorder %s249, 0
      %s252 = sadd.s32 %s251, 1
      %s253 = scalar_select %p250, %s251, %s252
      %p256 = pneg %p250
      %p257 = scmp.eq.s32.totalorder %s30, 1
      %p258 = por %p256, %p257
      %p259 = scmp.ne.s32.totalorder %s251, %s254
      %p260 = scmp.eq.s32.totalorder %s30, 0
      %p261 = por %p259, %p260
      %p262 = scmp.ne.s32.totalorder %s251, %s254
      %p263 = scmp.eq.s32.totalorder %s35, 1
      %p264 = por %p262, %p263
      %p265 = scmp.ne.s32.totalorder %s254, %s255
      %p266 = scmp.eq.s32.totalorder %s35, 0
      %p267 = por %p265, %p266
      %p268 = scmp.ne.s32.totalorder %s254, %s255
      %p269 = scmp.eq.s32.totalorder %s36, 1
      %p270 = por %p268, %p269
      %p272 = scmp.ne.s32.totalorder %s255, %s271
      %p273 = scmp.eq.s32.totalorder %s36, 0
      %p274 = por %p272, %p273
      %s275 = ssub.s32 %s38, %s45
      %p276 = scmp.eq.s32.totalorder %s275, 0
      %s278 = sadd.s32 %s277, 1
      %s279 = scalar_select %p276, %s277, %s278
      %p282 = pneg %p276
      %p283 = scmp.eq.s32.totalorder %s30, 1
      %p284 = por %p282, %p283
      %p285 = scmp.ne.s32.totalorder %s277, %s280
      %p286 = scmp.eq.s32.totalorder %s30, 0
      %p287 = por %p285, %p286
      %p288 = scmp.ne.s32.totalorder %s277, %s280
      %p289 = scmp.eq.s32.totalorder %s35, 1
      %p290 = por %p288, %p289
      %p291 = scmp.ne.s32.totalorder %s280, %s281
      %p292 = scmp.eq.s32.totalorder %s35, 0
      %p293 = por %p291, %p292
      %p294 = scmp.ne.s32.totalorder %s280, %s281
      %p295 = scmp.eq.s32.totalorder %s36, 1
      %p296 = por %p294, %p295
      %p298 = scmp.ne.s32.totalorder %s281, %s297
      %p299 = scmp.eq.s32.totalorder %s36, 0
      %p300 = por %p298, %p299
      %s301 = ssub.s32 %s38, %s45
      %p302 = scmp.eq.s32.totalorder %s301, 0
      %s304 = sadd.s32 %s303, 1
      %s305 = scalar_select %p302, %s303, %s304
      %p308 = pneg %p302
      %p309 = scmp.eq.s32.totalorder %s30, 1
      %p310 = por %p308, %p309
      %p311 = scmp.ne.s32.totalorder %s303, %s306
      %p312 = scmp.eq.s32.totalorder %s30, 0
      %p313 = por %p311, %p312
      %p314 = scmp.ne.s32.totalorder %s303, %s306
      %p315 = scmp.eq.s32.totalorder %s35, 1
      %p316 = por %p314, %p315
      %p317 = scmp.ne.s32.totalorder %s306, %s307
      %p318 = scmp.eq.s32.totalorder %s35, 0
      %p319 = por %p317, %p318
      %p320 = scmp.ne.s32.totalorder %s306, %s307
      %p321 = scmp.eq.s32.totalorder %s36, 1
      %p322 = por %p320, %p321
      %p324 = scmp.ne.s32.totalorder %s307, %s323
      %p325 = scmp.eq.s32.totalorder %s36, 0
      %p326 = por %p324, %p325
      %s327 = ssub.s32 %s38, %s45
      %p328 = scmp.eq.s32.totalorder %s327, 0
      %s330 = sadd.s32 %s329, 1
      %s331 = scalar_select %p328, %s329, %s330
      %p334 = pneg %p328
      %p335 = scmp.eq.s32.totalorder %s30, 1
      %p336 = por %p334, %p335
      %p337 = scmp.ne.s32.totalorder %s329, %s332
      %p338 = scmp.eq.s32.totalorder %s30, 0
      %p339 = por %p337, %p338
      %p340 = scmp.ne.s32.totalorder %s329, %s332
      %p341 = scmp.eq.s32.totalorder %s35, 1
      %p342 = por %p340, %p341
      %p343 = scmp.ne.s32.totalorder %s332, %s333
      %p344 = scmp.eq.s32.totalorder %s35, 0
      %p345 = por %p343, %p344
      %p346 = scmp.ne.s32.totalorder %s332, %s333
      %p347 = scmp.eq.s32.totalorder %s36, 1
      %p348 = por %p346, %p347
      %p350 = scmp.ne.s32.totalorder %s333, %s349
      %p351 = scmp.eq.s32.totalorder %s36, 0
      %p352 = por %p350, %p351
      %s353 = ssub.s32 %s38, %s45
      %p354 = scmp.eq.s32.totalorder %s353, 0
      %s356 = sadd.s32 %s355, 1
      %s357 = scalar_select %p354, %s355, %s356
      %p360 = pneg %p354
      %p361 = scmp.eq.s32.totalorder %s30, 1
      %p362 = por %p360, %p361
      %p363 = scmp.ne.s32.totalorder %s355, %s358
      %p364 = scmp.eq.s32.totalorder %s30, 0
      %p365 = por %p363, %p364
      %p366 = scmp.ne.s32.totalorder %s355, %s358
      %p367 = scmp.eq.s32.totalorder %s35, 1
      %p368 = por %p366, %p367
      %p369 = scmp.ne.s32.totalorder %s358, %s359
      %p370 = scmp.eq.s32.totalorder %s35, 0
      %p371 = por %p369, %p370
      %p372 = scmp.ne.s32.totalorder %s358, %s359
      %p373 = scmp.eq.s32.totalorder %s36, 1
      %p374 = por %p372, %p373
      %p376 = scmp.ne.s32.totalorder %s359, %s375
      %p377 = scmp.eq.s32.totalorder %s36, 0
      %p378 = por %p376, %p377
      %s379 = ssub.s32 %s38, %s45
      %p380 = scmp.eq.s32.totalorder %s379, 0
      %s382 = sadd.s32 %s381, 1
      %s383 = scalar_select %p380, %s381, %s382
      %p386 = pneg %p380
      %p387 = scmp.eq.s32.totalorder %s30, 1
      %p388 = por %p386, %p387
      %p389 = scmp.ne.s32.totalorder %s381, %s384
      %p390 = scmp.eq.s32.totalorder %s30, 0
      %p391 = por %p389, %p390
      %p392 = scmp.ne.s32.totalorder %s381, %s384
      %p393 = scmp.eq.s32.totalorder %s35, 1
      %p394 = por %p392, %p393
      %p395 = scmp.ne.s32.totalorder %s384, %s385
      %p396 = scmp.eq.s32.totalorder %s35, 0
      %p397 = por %p395, %p396
      %p398 = scmp.ne.s32.totalorder %s384, %s385
      %p399 = scmp.eq.s32.totalorder %s36, 1
      %p400 = por %p398, %p399
      %p402 = scmp.ne.s32.totalorder %s385, %s401
      %p403 = scmp.eq.s32.totalorder %s36, 0
      %p404 = por %p402, %p403
      %s405 = ssub.s32 %s38, %s45
      %p406 = scmp.eq.s32.totalorder %s405, 0
      %s408 = sadd.s32 %s407, 1
      %s409 = scalar_select %p406, %s407, %s408
      %p412 = pneg %p406
      %p413 = scmp.eq.s32.totalorder %s30, 1
      %p414 = por %p412, %p413
      %p415 = scmp.ne.s32.totalorder %s407, %s410
      %p416 = scmp.eq.s32.totalorder %s30, 0
      %p417 = por %p415, %p416
      %p418 = scmp.ne.s32.totalorder %s407, %s410
      %p419 = scmp.eq.s32.totalorder %s35, 1
      %p420 = por %p418, %p419
      %p421 = scmp.ne.s32.totalorder %s410, %s411
      %p422 = scmp.eq.s32.totalorder %s35, 0
      %p423 = por %p421, %p422
      %p424 = scmp.ne.s32.totalorder %s410, %s411
      %p425 = scmp.eq.s32.totalorder %s36, 1
      %p426 = por %p424, %p425
      %p428 = scmp.ne.s32.totalorder %s411, %s427
      %p429 = scmp.eq.s32.totalorder %s36, 0
      %p430 = por %p428, %p429
      %s431 = ssub.s32 %s38, %s45
      %p432 = scmp.eq.s32.totalorder %s431, 0
      %s434 = sadd.s32 %s433, 1
      %s435 = scalar_select %p432, %s433, %s434
      %p438 = pneg %p432
      %p439 = scmp.eq.s32.totalorder %s30, 1
      %p440 = por %p438, %p439
      %p441 = scmp.ne.s32.totalorder %s433, %s436
      %p442 = scmp.eq.s32.totalorder %s30, 0
      %p443 = por %p441, %p442
      %p444 = scmp.ne.s32.totalorder %s433, %s436
      %p445 = scmp.eq.s32.totalorder %s35, 1
      %p446 = por %p444, %p445
      %p447 = scmp.ne.s32.totalorder %s436, %s437
      %p448 = scmp.eq.s32.totalorder %s35, 0
      %p449 = por %p447, %p448
      %p450 = scmp.ne.s32.totalorder %s436, %s437
      %p451 = scmp.eq.s32.totalorder %s36, 1
      %p452 = por %p450, %p451
      %p454 = scmp.ne.s32.totalorder %s437, %s453
      %p455 = scmp.eq.s32.totalorder %s36, 0
      %p456 = por %p454, %p455
      %s457 = ssub.s32 %s38, %s45
      %p458 = scmp.eq.s32.totalorder %s457, 0
      %s460 = sadd.s32 %s459, 1
      %s461 = scalar_select %p458, %s459, %s460
      %p464 = pneg %p458
      %p465 = scmp.eq.s32.totalorder %s30, 1
      %p466 = por %p464, %p465
      %p467 = scmp.ne.s32.totalorder %s459, %s462
      %p468 = scmp.eq.s32.totalorder %s30, 0
      %p469 = por %p467, %p468
      %p470 = scmp.ne.s32.totalorder %s459, %s462
      %p471 = scmp.eq.s32.totalorder %s35, 1
      %p472 = por %p470, %p471
      %p473 = scmp.ne.s32.totalorder %s462, %s463
      %p474 = scmp.eq.s32.totalorder %s35, 0
      %p475 = por %p473, %p474
      %p476 = scmp.ne.s32.totalorder %s462, %s463
      %p477 = scmp.eq.s32.totalorder %s36, 1
      %p478 = por %p476, %p477
      %p480 = scmp.ne.s32.totalorder %s463, %s479
      %p481 = scmp.eq.s32.totalorder %s36, 0
      %p482 = por %p480, %p481
      %s483 = ssub.s32 %s38, %s45
      %p484 = scmp.eq.s32.totalorder %s483, 0
      %s486 = sadd.s32 %s485, 1
      %s487 = scalar_select %p484, %s485, %s486
      %p490 = pneg %p484
      %p491 = scmp.eq.s32.totalorder %s30, 1
      %p492 = por %p490, %p491
      %p493 = scmp.ne.s32.totalorder %s485, %s488
      %p494 = scmp.eq.s32.totalorder %s30, 0
      %p495 = por %p493, %p494
      %p496 = scmp.ne.s32.totalorder %s485, %s488
      %p497 = scmp.eq.s32.totalorder %s35, 1
      %p498 = por %p496, %p497
      %p499 = scmp.ne.s32.totalorder %s488, %s489
      %p500 = scmp.eq.s32.totalorder %s35, 0
      %p501 = por %p499, %p500
      %p502 = scmp.ne.s32.totalorder %s488, %s489
      %p503 = scmp.eq.s32.totalorder %s36, 1
      %p504 = por %p502, %p503
      %p506 = scmp.ne.s32.totalorder %s489, %s505
      %p507 = scmp.eq.s32.totalorder %s36, 0
      %p508 = por %p506, %p507
      %s509 = ssub.s32 %s38, %s45
      %p510 = scmp.eq.s32.totalorder %s509, 0
      %s512 = sadd.s32 %s511, 1
      %s513 = scalar_select %p510, %s511, %s512
      %p516 = pneg %p510
      %p517 = scmp.eq.s32.totalorder %s30, 1
      %p518 = por %p516, %p517
      %p519 = scmp.ne.s32.totalorder %s511, %s514
      %p520 = scmp.eq.s32.totalorder %s30, 0
      %p521 = por %p519, %p520
      %p522 = scmp.ne.s32.totalorder %s511, %s514
      %p523 = scmp.eq.s32.totalorder %s35, 1
      %p524 = por %p522, %p523
      %p525 = scmp.ne.s32.totalorder %s514, %s515
      %p526 = scmp.eq.s32.totalorder %s35, 0
      %p527 = por %p525, %p526
      %p528 = scmp.ne.s32.totalorder %s514, %s515
      %p529 = scmp.eq.s32.totalorder %s36, 1
      %p530 = por %p528, %p529
      %p532 = scmp.ne.s32.totalorder %s515, %s531
      %p533 = scmp.eq.s32.totalorder %s36, 0
      %p534 = por %p532, %p533
      %s535 = ssub.s32 %s37, %s49
      %p536 = scmp.eq.s32.totalorder %s535, 0
      %s538 = sadd.s32 %s537, 1
      %s539 = scalar_select %p536, %s537, %s538
      %p542 = pneg %p536
      %p543 = scmp.eq.s32.totalorder %s30, 1
      %p544 = por %p542, %p543
      %p545 = scmp.ne.s32.totalorder %s537, %s540
      %p546 = scmp.eq.s32.totalorder %s30, 0
      %p547 = por %p545, %p546
      %p548 = scmp.ne.s32.totalorder %s537, %s540
      %p549 = scmp.eq.s32.totalorder %s35, 1
      %p550 = por %p548, %p549
      %p551 = scmp.ne.s32.totalorder %s540, %s541
      %p552 = scmp.eq.s32.totalorder %s35, 0
      %p553 = por %p551, %p552
      %p554 = scmp.ne.s32.totalorder %s540, %s541
      %p555 = scmp.eq.s32.totalorder %s36, 1
      %p556 = por %p554, %p555
      %p558 = scmp.ne.s32.totalorder %s541, %s557
      %p559 = scmp.eq.s32.totalorder %s36, 0
      %p560 = por %p558, %p559
      %p561 = scmp.le.s32.totalorder 1, %s30
      %p562 = scmp.lt.s32.totalorder %s30, 3
      %p563 = pnand %p561, %p562
      %p564 = pneg %p563
      // Predicated region
      $region9: #{tpu_custom_call.1} parent=5 // pred_check
        _
      $region10: #{tpu_custom_call.1} parent=5 // pred_check_branch
        %566 = sbr.rel (%p563) target = $region12
      $region11: #{tpu_custom_call.1} parent=5 // pred_region
        %s567 = ssub.s32 %s30, 1
        // Predicated region
        $region13: #{tpu_custom_call.1} parent=11 // pred_check
          %p568 = pneg %p68
        $region14: #{tpu_custom_call.1} parent=11 // pred_check_branch
          %570 = sbr.rel (%p568) target = $region16
        $region15: #{tpu_custom_call.1} parent=11 // pred_region
          %s571 = smul.u32 2, %s39
          %p572 = scmp.lt.s32.totalorder %s571, 1
          %s573 = scalar_select %p572, %s571, 1
          %s574 = smul.addr %s573, 8
          %s575 = scalar_lea.vmem %s0, %s574
          %s576 = smul.u32 2, %s39
        $region16: #{tpu_custom_call.1} parent=11 // pred_fallthru
          _
        // Predicated region
        $region17: #{tpu_custom_call.1} parent=11 // pred_check
          %p577 = pneg %p89
        $region18: #{tpu_custom_call.1} parent=11 // pred_check_branch
          %579 = sbr.rel (%p577) target = $region20
        $region19: #{tpu_custom_call.1} parent=11 // pred_region
          _
        $region20: #{tpu_custom_call.1} parent=11 // pred_fallthru
          _
        // Predicated region
        $region21: #{tpu_custom_call.1} parent=11 // pred_check
          %p580 = pneg %p110
        $region22: #{tpu_custom_call.1} parent=11 // pred_check_branch
          %582 = sbr.rel (%p580) target = $region24
        $region23: #{tpu_custom_call.1} parent=11 // pred_region
          _
        $region24: #{tpu_custom_call.1} parent=11 // pred_fallthru
          _
        // Predicated region
        $region25: #{tpu_custom_call.1} parent=11 // pred_check
          %p583 = pneg %p131
        $region26: #{tpu_custom_call.1} parent=11 // pred_check_branch
          %585 = sbr.rel (%p583) target = $region28
        $region27: #{tpu_custom_call.1} parent=11 // pred_region
          _
        $region28: #{tpu_custom_call.1} parent=11 // pred_fallthru
          _
        // Predicated region
        $region29: #{tpu_custom_call.1} parent=11 // pred_check
          %p586 = pneg %p152
        $region30: #{tpu_custom_call.1} parent=11 // pred_check_branch
          %588 = sbr.rel (%p586) target = $region32
        $region31: #{tpu_custom_call.1} parent=11 // pred_region
          %s590 = ssub.s32 16, 16
          %591 = vsyncadd [#allocation3], %s590
          %s593 = sshll.u32 [#allocation2], 4
          %s594 = int_to_ptr.vmem [resolvable:$true] %s593
          %596 = dma.hbm_to_vmem [thread:$0]  %s4, 16, %s594, [#allocation3]
        $region32: #{tpu_custom_call.1} parent=11 // pred_fallthru
          _
        // Predicated region
        $region33: #{tpu_custom_call.1} parent=11 // pred_check
          %p597 = pneg %p173
        $region34: #{tpu_custom_call.1} parent=11 // pred_check_branch
          %599 = sbr.rel (%p597) target = $region36
        $region35: #{tpu_custom_call.1} parent=11 // pred_region
          %s601 = ssub.s32 16, 16
          %602 = vsyncadd [#allocation6], %s601
          %s604 = sshll.u32 [#allocation5], 4
          %s605 = int_to_ptr.vmem [resolvable:$true] %s604
          %607 = dma.hbm_to_vmem [thread:$0]  %s5, 16, %s605, [#allocation6]
        $region36: #{tpu_custom_call.1} parent=11 // pred_fallthru
          _
        // Predicated region
        $region37: #{tpu_custom_call.1} parent=11 // pred_check
          %p608 = pneg %p194
        $region38: #{tpu_custom_call.1} parent=11 // pred_check_branch
          %610 = sbr.rel (%p608) target = $region40
        $region39: #{tpu_custom_call.1} parent=11 // pred_region
          %s612 = ssub.s32 16, 16
          %613 = vsyncadd [#allocation6], %s612
          %s615 = sshll.u32 [#allocation7], 4
          %s616 = int_to_ptr.vmem [resolvable:$true] %s615
          %618 = dma.hbm_to_vmem [thread:$0]  %s6, 16, %s616, [#allocation6]
        $region40: #{tpu_custom_call.1} parent=11 // pred_fallthru
          _
        // Predicated region
        $region41: #{tpu_custom_call.1} parent=11 // pred_check
          %p619 = pneg %p215
        $region42: #{tpu_custom_call.1} parent=11 // pred_check_branch
          %621 = sbr.rel (%p619) target = $region44
        $region43: #{tpu_custom_call.1} parent=11 // pred_region
          %s623 = ssub.s32 16, 16
          %624 = vsyncadd [#allocation9], %s623
          %s626 = sshll.u32 [#allocation8], 4
          %s627 = int_to_ptr.vmem [resolvable:$true] %s626
          %629 = dma.hbm_to_vmem [thread:$0]  %s7, 16, %s627, [#allocation9]
        $region44: #{tpu_custom_call.1} parent=11 // pred_fallthru
          _
      $region12: #{tpu_custom_call.1} parent=5 // pred_fallthru
        _
      %p630 = scmp.lt.s32.totalorder %s30, 2
      // Predicated region
      $region45: #{tpu_custom_call.1} parent=5 // pred_check
        %p631 = pneg %p630
      $region46: #{tpu_custom_call.1} parent=5 // pred_check_branch
        %633 = sbr.rel (%p631) target = $region48
      $region47: #{tpu_custom_call.1} parent=5 // pred_region
        // Predicated region
        $region49: #{tpu_custom_call.1} parent=47 // pred_check
          %p634 = pneg %p235
        $region50: #{tpu_custom_call.1} parent=47 // pred_check_branch
          %636 = sbr.rel (%p634) target = $region52
        $region51: #{tpu_custom_call.1} parent=47 // pred_region
          %p637 = scmp.lt.s32.totalorder %s38, 1
          %s638 = scalar_select %p637, %s38, 1
          %s639 = scalar_lea.vmem %s8, %s638
        $region52: #{tpu_custom_call.1} parent=47 // pred_fallthru
          _
        // Predicated region
        $region53: #{tpu_custom_call.1} parent=47 // pred_check
          %p640 = pneg %p261
        $region54: #{tpu_custom_call.1} parent=47 // pred_check_branch
          %642 = sbr.rel (%p640) target = $region56
        $region55: #{tpu_custom_call.1} parent=47 // pred_region
          %p643 = scmp.lt.s32.totalorder %s38, 1
          %s644 = scalar_select %p643, %s38, 1
          %s645 = scalar_lea.vmem %s9, %s644
        $region56: #{tpu_custom_call.1} parent=47 // pred_fallthru
          _
        // Predicated region
        $region57: #{tpu_custom_call.1} parent=47 // pred_check
          %p646 = pneg %p287
        $region58: #{tpu_custom_call.1} parent=47 // pred_check_branch
          %648 = sbr.rel (%p646) target = $region60
        $region59: #{tpu_custom_call.1} parent=47 // pred_region
          %p649 = scmp.lt.s32.totalorder %s38, 1
          %s650 = scalar_select %p649, %s38, 1
          %s651 = smul.addr %s650, 4
          %s652 = smul.addr %s651, 4
          %s653 = scalar_lea.vmem %s10, %s652
        $region60: #{tpu_custom_call.1} parent=47 // pred_fallthru
          _
        // Predicated region
        $region61: #{tpu_custom_call.1} parent=47 // pred_check
          %p654 = pneg %p313
        $region62: #{tpu_custom_call.1} parent=47 // pred_check_branch
          %656 = sbr.rel (%p654) target = $region64
        $region63: #{tpu_custom_call.1} parent=47 // pred_region
          %p657 = scmp.lt.s32.totalorder %s38, 1
          %s658 = scalar_select %p657, %s38, 1
          %s659 = scalar_lea.vmem %s11, %s658
        $region64: #{tpu_custom_call.1} parent=47 // pred_fallthru
          _
        // Predicated region
        $region65: #{tpu_custom_call.1} parent=47 // pred_check
          %p660 = pneg %p339
        $region66: #{tpu_custom_call.1} parent=47 // pred_check_branch
          %662 = sbr.rel (%p660) target = $region68
        $region67: #{tpu_custom_call.1} parent=47 // pred_region
          %p663 = scmp.lt.s32.totalorder %s38, 1
          %s664 = scalar_select %p663, %s38, 1
          %s665 = smul.addr %s664, 4
          %s666 = smul.addr %s665, 4
          %s667 = scalar_lea.vmem %s12, %s666
        $region68: #{tpu_custom_call.1} parent=47 // pred_fallthru
          _
        // Predicated region
        $region69: #{tpu_custom_call.1} parent=47 // pred_check
          %p668 = pneg %p365
        $region70: #{tpu_custom_call.1} parent=47 // pred_check_branch
          %670 = sbr.rel (%p668) target = $region72
        $region71: #{tpu_custom_call.1} parent=47 // pred_region
          %p671 = scmp.lt.s32.totalorder %s38, 1
          %s672 = scalar_select %p671, %s38, 1
          %s673 = scalar_lea.vmem %s13, %s672
        $region72: #{tpu_custom_call.1} parent=47 // pred_fallthru
          _
        // Predicated region
        $region73: #{tpu_custom_call.1} parent=47 // pred_check
          %p674 = pneg %p391
        $region74: #{tpu_custom_call.1} parent=47 // pred_check_branch
          %676 = sbr.rel (%p674) target = $region76
        $region75: #{tpu_custom_call.1} parent=47 // pred_region
          %p677 = scmp.lt.s32.totalorder %s38, 1
          %s678 = scalar_select %p677, %s38, 1
          %s679 = scalar_lea.vmem %s14, %s678
        $region76: #{tpu_custom_call.1} parent=47 // pred_fallthru
          _
        // Predicated region
        $region77: #{tpu_custom_call.1} parent=47 // pred_check
          %p680 = pneg %p417
        $region78: #{tpu_custom_call.1} parent=47 // pred_check_branch
          %682 = sbr.rel (%p680) target = $region80
        $region79: #{tpu_custom_call.1} parent=47 // pred_region
          %p683 = scmp.lt.s32.totalorder %s38, 1
          %s684 = scalar_select %p683, %s38, 1
          %s685 = scalar_lea.vmem %s15, %s684
        $region80: #{tpu_custom_call.1} parent=47 // pred_fallthru
          _
        // Predicated region
        $region81: #{tpu_custom_call.1} parent=47 // pred_check
          %p686 = pneg %p443
        $region82: #{tpu_custom_call.1} parent=47 // pred_check_branch
          %688 = sbr.rel (%p686) target = $region84
        $region83: #{tpu_custom_call.1} parent=47 // pred_region
          %p689 = scmp.lt.s32.totalorder %s38, 1
          %s690 = scalar_select %p689, %s38, 1
          %s691 = smul.addr %s690, 4
          %s692 = smul.addr %s691, 4
          %s693 = scalar_lea.vmem %s16, %s692
        $region84: #{tpu_custom_call.1} parent=47 // pred_fallthru
          _
        // Predicated region
        $region85: #{tpu_custom_call.1} parent=47 // pred_check
          %p694 = pneg %p469
        $region86: #{tpu_custom_call.1} parent=47 // pred_check_branch
          %696 = sbr.rel (%p694) target = $region88
        $region87: #{tpu_custom_call.1} parent=47 // pred_region
          %p697 = scmp.lt.s32.totalorder %s38, 1
          %s698 = scalar_select %p697, %s38, 1
          %s699 = scalar_lea.vmem %s17, %s698
        $region88: #{tpu_custom_call.1} parent=47 // pred_fallthru
          _
        // Predicated region
        $region89: #{tpu_custom_call.1} parent=47 // pred_check
          %p700 = pneg %p495
        $region90: #{tpu_custom_call.1} parent=47 // pred_check_branch
          %702 = sbr.rel (%p700) target = $region92
        $region91: #{tpu_custom_call.1} parent=47 // pred_region
          %p703 = scmp.lt.s32.totalorder %s38, 1
          %s704 = scalar_select %p703, %s38, 1
          %s705 = smul.addr %s704, 8
          %s706 = smul.addr %s705, 4
          %s707 = scalar_lea.vmem %s18, %s706
        $region92: #{tpu_custom_call.1} parent=47 // pred_fallthru
          _
        // Predicated region
        $region93: #{tpu_custom_call.1} parent=47 // pred_check
          %p708 = pneg %p521
        $region94: #{tpu_custom_call.1} parent=47 // pred_check_branch
          %710 = sbr.rel (%p708) target = $region96
        $region95: #{tpu_custom_call.1} parent=47 // pred_region
          %p711 = scmp.lt.s32.totalorder %s38, 1
          %s712 = scalar_select %p711, %s38, 1
          %s713 = scalar_lea.vmem %s19, %s712
        $region96: #{tpu_custom_call.1} parent=47 // pred_fallthru
          _
      $region48: #{tpu_custom_call.1} parent=5 // pred_fallthru
        _
      %p714 = scmp.le.s32.totalorder 1, %s30
      %p715 = scmp.lt.s32.totalorder %s30, 3
      %p716 = pnand %p714, %p715
      %p717 = pneg %p716
      // Predicated region
      $region97: #{tpu_custom_call.1} parent=5 // pred_check
        _
      $region98: #{tpu_custom_call.1} parent=5 // pred_check_branch
        %719 = sbr.rel (%p716) target = $region100
      $region99: #{tpu_custom_call.1} parent=5 // pred_region
        %s720 = ssub.s32 %s30, 1
        // Predicated region
        $region101: #{tpu_custom_call.1} parent=99 // pred_check
          %p721 = pneg %p152
        $region102: #{tpu_custom_call.1} parent=99 // pred_check_branch
          %723 = sbr.rel (%p721) target = $region104
        $region103: #{tpu_custom_call.1} parent=99 // pred_region
          %724 = dma.done [#allocation3], 16
        $region104: #{tpu_custom_call.1} parent=99 // pred_fallthru
          _
        // Predicated region
        $region105: #{tpu_custom_call.1} parent=99 // pred_check
          %p725 = pneg %p173
        $region106: #{tpu_custom_call.1} parent=99 // pred_check_branch
          %727 = sbr.rel (%p725) target = $region108
        $region107: #{tpu_custom_call.1} parent=99 // pred_region
          %728 = dma.done [#allocation6], 16
        $region108: #{tpu_custom_call.1} parent=99 // pred_fallthru
          _
        // Predicated region
        $region109: #{tpu_custom_call.1} parent=99 // pred_check
          %p729 = pneg %p194
        $region110: #{tpu_custom_call.1} parent=99 // pred_check_branch
          %731 = sbr.rel (%p729) target = $region112
        $region111: #{tpu_custom_call.1} parent=99 // pred_region
          %732 = dma.done [#allocation6], 16
        $region112: #{tpu_custom_call.1} parent=99 // pred_fallthru
          _
        // Predicated region
        $region113: #{tpu_custom_call.1} parent=99 // pred_check
          %p733 = pneg %p215
        $region114: #{tpu_custom_call.1} parent=99 // pred_check_branch
          %735 = sbr.rel (%p733) target = $region116
        $region115: #{tpu_custom_call.1} parent=99 // pred_region
          %736 = dma.done [#allocation9], 16
        $region116: #{tpu_custom_call.1} parent=99 // pred_fallthru
          _
        %s737 = smul.u32 2, %s39
        %p738 = scmp.lt.s32.totalorder %s737, 1
        %s739 = scalar_select %p738, %s737, 1
        %s740 = smul.addr %s739, 8
        %s741 = scalar_lea.vmem %s0, %s740
        %p742 = pneg %p68
        %p743 = pneg %p65
        %p744 = pneg %p89
        %p745 = pneg %p86
        %p746 = pneg %p110
        %p747 = pneg %p107
        %p748 = pneg %p131
        %p749 = pneg %p128
        %p750 = pneg %p152
        %p751 = pneg %p149
        %p752 = pneg %p173
        %p753 = pneg %p170
        %p754 = pneg %p194
        %p755 = pneg %p191
        %p756 = pneg %p215
        %p757 = pneg %p212
        %p758 = scmp.lt.s32.totalorder %s40, 1
        %s759 = scalar_select %p758, %s40, 1
        %s760 = scalar_lea.vmem %s8, %s759
        %p761 = pneg %p241
        %p762 = pneg %p238
        %p763 = scmp.lt.s32.totalorder %s40, 1
        %s764 = scalar_select %p763, %s40, 1
        %s765 = scalar_lea.vmem %s9, %s764
        %p766 = pneg %p267
        %p767 = pneg %p264
        %p768 = scmp.lt.s32.totalorder %s40, 1
        %s769 = scalar_select %p768, %s40, 1
        %s770 = smul.addr %s769, 4
        %s771 = smul.addr %s770, 4
        %s772 = scalar_lea.vmem %s10, %s771
        %p773 = pneg %p293
        %p774 = pneg %p290
        %p775 = scmp.lt.s32.totalorder %s40, 1
        %s776 = scalar_select %p775, %s40, 1
        %s777 = scalar_lea.vmem %s11, %s776
        %p778 = pneg %p319
        %p779 = pneg %p316
        %p780 = scmp.lt.s32.totalorder %s40, 1
        %s781 = scalar_select %p780, %s40, 1
        %s782 = smul.addr %s781, 4
        %s783 = smul.addr %s782, 4
        %s784 = scalar_lea.vmem %s12, %s783
        %p785 = pneg %p345
        %p786 = pneg %p342
        %p787 = scmp.lt.s32.totalorder %s40, 1
        %s788 = scalar_select %p787, %s40, 1
        %s789 = scalar_lea.vmem %s13, %s788
        %p790 = pneg %p371
        %p791 = pneg %p368
        %p792 = scmp.lt.s32.totalorder %s40, 1
        %s793 = scalar_select %p792, %s40, 1
        %s794 = scalar_lea.vmem %s14, %s793
        %p795 = pneg %p397
        %p796 = pneg %p394
        %p797 = scmp.lt.s32.totalorder %s40, 1
        %s798 = scalar_select %p797, %s40, 1
        %s799 = scalar_lea.vmem %s15, %s798
        %p800 = pneg %p423
        %p801 = pneg %p420
        %p802 = scmp.lt.s32.totalorder %s40, 1
        %s803 = scalar_select %p802, %s40, 1
        %s804 = smul.addr %s803, 4
        %s805 = smul.addr %s804, 4
        %s806 = scalar_lea.vmem %s16, %s805
        %p807 = pneg %p449
        %p808 = pneg %p446
        %p809 = scmp.lt.s32.totalorder %s40, 1
        %s810 = scalar_select %p809, %s40, 1
        %s811 = scalar_lea.vmem %s17, %s810
        %p812 = pneg %p475
        %p813 = pneg %p472
        %p814 = scmp.lt.s32.totalorder %s40, 1
        %s815 = scalar_select %p814, %s40, 1
        %s816 = smul.addr %s815, 8
        %s817 = smul.addr %s816, 4
        %s818 = scalar_lea.vmem %s18, %s817
        %p819 = pneg %p501
        %p820 = pneg %p498
        %p821 = scmp.lt.s32.totalorder %s40, 1
        %s822 = scalar_select %p821, %s40, 1
        %s823 = scalar_lea.vmem %s19, %s822
        %p824 = pneg %p527
        %p825 = pneg %p524
        %p826 = pneg %p553
        %p827 = pneg %p550
        %s828 = smul.u32 2, %s39
        %p829 = scmp.lt.s32.totalorder %s828, 1
        %s830 = scalar_select %p829, %s828, 1
        %s831 = smul.addr %s830, 8
        %s832 = scalar_lea.vmem %s0, %s831
        %s833 = smul.u32 2, %s39
        %p834 = scmp.lt.s32.totalorder %s40, 1
        %s835 = scalar_select %p834, %s40, 1
        %s836 = scalar_lea.vmem %s8, %s835
        %p837 = scmp.lt.s32.totalorder %s40, 1
        %s838 = scalar_select %p837, %s40, 1
        %s839 = scalar_lea.vmem %s9, %s838
        %p840 = scmp.lt.s32.totalorder %s40, 1
        %s841 = scalar_select %p840, %s40, 1
        %s842 = smul.addr %s841, 4
        %s843 = smul.addr %s842, 4
        %s844 = scalar_lea.vmem %s10, %s843
        %p845 = scmp.lt.s32.totalorder %s40, 1
        %s846 = scalar_select %p845, %s40, 1
        %s847 = scalar_lea.vmem %s11, %s846
        %p848 = scmp.lt.s32.totalorder %s40, 1
        %s849 = scalar_select %p848, %s40, 1
        %s850 = smul.addr %s849, 4
        %s851 = smul.addr %s850, 4
        %s852 = scalar_lea.vmem %s12, %s851
        %p853 = scmp.lt.s32.totalorder %s40, 1
        %s854 = scalar_select %p853, %s40, 1
        %s855 = scalar_lea.vmem %s13, %s854
        %p856 = scmp.lt.s32.totalorder %s40, 1
        %s857 = scalar_select %p856, %s40, 1
        %s858 = scalar_lea.vmem %s14, %s857
        %p859 = scmp.lt.s32.totalorder %s40, 1
        %s860 = scalar_select %p859, %s40, 1
        %s861 = scalar_lea.vmem %s15, %s860
        %p862 = scmp.lt.s32.totalorder %s40, 1
        %s863 = scalar_select %p862, %s40, 1
        %s864 = smul.addr %s863, 4
        %s865 = smul.addr %s864, 4
        %s866 = scalar_lea.vmem %s16, %s865
        %p867 = scmp.lt.s32.totalorder %s40, 1
        %s868 = scalar_select %p867, %s40, 1
        %s869 = scalar_lea.vmem %s17, %s868
        %p870 = scmp.lt.s32.totalorder %s40, 1
        %s871 = scalar_select %p870, %s40, 1
        %s872 = smul.addr %s871, 8
        %s873 = smul.addr %s872, 4
        %s874 = scalar_lea.vmem %s18, %s873
        %p875 = scmp.lt.s32.totalorder %s40, 1
        %s876 = scalar_select %p875, %s40, 1
        %s877 = scalar_lea.vmem %s19, %s876
        %s878 = smul.u32 2, %s39
        %p880 = scmp.eq.s32.totalorder %s40, 0
        // Predicated region
        $region117: #{tpu_custom_call.1} parent=99 // pred_check
          %p881 = pneg %p880
        $region118: #{tpu_custom_call.1} parent=99 // pred_check_branch
          %883 = sbr.rel (%p881) target = $region120
        $region119: #{tpu_custom_call.1} parent=99 // pred_region
          %v884 = vld [vmem:[%s2] sm:$0xf]
          %v885 = vld [vmem:[%s2 + $0x4] sm:$0xf]
          %v886 = vld [vmem:[%s3] sm:$0x1]
          %v887 = vld [vmem:[#allocation2] sm:$0x1]
          %v888 = vld [vmem:[#allocation5] sm:$0x1]
          %v889 = vld [vmem:[%s832] sm:$0xff]
          %v890 = vpack.c.bf16 %v889, %v889
          %v892 = vlaneseq
          %v893 = vshrl.u32 %v892, 7
          %v894 = vsub.s32 0, %v893
          %v895 = vrot.slane %v886, %v894
          %v899 = vunpack.c.l.b16 %v884
          %v900 = vunpack.c.l.b16 %v885
          %v901 = vpack.c.b16 %v900, %v899
          %vm903 = vcmask 130048
          %v905 = vsel %vm903, %v890, 0
          %907 = vmatprep.subr.bf16.mxu0 0
          %908 = vmatpush1.bf16.msra.mxu0 %v901
          %909 = vmatprep.subr.bf16.mxu0 0
          %910 = vmatpush1.bf16.msra.mxu0 0
          %911 = vmatprep.subr.bf16.mxu0 0
          %912 = vmatpush1.bf16.msra.mxu0 0
          %913 = vmatprep.subr.bf16.mxu0 0
          %914 = vmatpush1.bf16.msra.mxu0 0
          %915 = vmatprep.subr.bf16.mxu0 0
          %916 = vmatpush1.bf16.msra.mxu0 0
          %917 = vmatprep.subr.bf16.mxu0 0
          %918 = vmatpush1.bf16.msra.mxu0 0
          %919 = vmatprep.subr.bf16.mxu0 0
          %920 = vmatpush1.bf16.msra.mxu0 0
          %921 = vmatprep.subr.bf16.mxu0 0
          %922 = vmatpush1.bf16.msra.mxu0 0
          %923 = vmatprep.subr.bf16.mxu0 0
          %924 = vmatpush1.bf16.msra.mxu0 0
          %925 = vmatprep.subr.bf16.mxu0 0
          %926 = vmatpush1.bf16.msra.mxu0 0
          %927 = vmatprep.subr.bf16.mxu0 0
          %928 = vmatpush1.bf16.msra.mxu0 0
          %929 = vmatprep.subr.bf16.mxu0 0
          %930 = vmatpush1.bf16.msra.mxu0 0
          %931 = vmatprep.subr.bf16.mxu0 0
          %932 = vmatpush1.bf16.msra.mxu0 0
          %933 = vmatprep.subr.bf16.mxu0 0
          %934 = vmatpush1.bf16.msra.mxu0 0
          %935 = vmatprep.subr.bf16.mxu0 0
          %936 = vmatpush1.bf16.msra.mxu0 0
          %937 = vmatprep.subr.bf16.mxu0 0
          %938 = vmatpush1.bf16.msra.mxu0 0
          %939 = vmatprep.mubr.bf16.mxu0 0
          %940 = vmatmul.mubr.bf16.gmra.mrb[0].mxu0 %v905
          %v941 = vpop.f32.mrb[0].mxu0
          %v942 = vadd.f32 %v895, %v941
          %v943 = vpop.f32.mrb[0].mxu0
          %v944 = vpop.f32.mrb[0].mxu0
          %v945 = vpop.f32.mrb[0].mxu0
          %946 = vdwg.mxu0
          %vm947 = vcmask 261120
          %v948 = vsel %vm947, %v942, 0.0
          %949 = vadd.xlane.f32.xlu0 %v948
          %v950 = vpop.xlane.xlu0 %949
          %v951 = vrcp.pop 32.0
          %v952 = vmul.f32 %v950, %v951
          %v953 = vsub.f32 %v942, %v952
          %v954 = vmul.f32 %v953, %v953
          %v955 = vsel %vm947, %v954, 0.0
          %956 = vadd.xlane.f32.xlu0 %v955
          %v957 = vpop.xlane.xlu0 %956
          %v958 = vmul.f32 %v957, %v951
          %v959 = vadd.f32 %v958, 1e-05
          %v960 = vrsqrt.pop %v959
          %v961 = vmul.f32 %v953, %v960
          %v963 = vlaneseq
          %v964 = vshrl.u32 %v963, 7
          %v965 = vsub.s32 0, %v964
          %v966 = vrot.slane %v887, %v965
          %v968 = vmul.f32 %v961, %v966
          %v970 = vlaneseq
          %v971 = vshrl.u32 %v970, 7
          %v972 = vsub.s32 0, %v971
          %v973 = vrot.slane %v888, %v972
          %v975 = vadd.f32 %v968, %v973
          %v976 = vmax.f32 %v975, 0.0
          %977 = vst.msk [vmem:[#allocation10] sm:$0xff] %vm947, %v976
          %s978 = scalar_lea.vmem %s832, 8
          %v979 = vld [vmem:[%s978] sm:$0xff]
          %v980 = vpack.c.bf16 %v979, %v979
          %v982 = vsel %vm903, %v980, 0
          %984 = vmatprep.subr.bf16.mxu0 0
          %985 = vmatpush1.bf16.msra.mxu0 %v901
          %986 = vmatprep.subr.bf16.mxu0 0
          %987 = vmatpush1.bf16.msra.mxu0 0
          %988 = vmatprep.subr.bf16.mxu0 0
          %989 = vmatpush1.bf16.msra.mxu0 0
          %990 = vmatprep.subr.bf16.mxu0 0
          %991 = vmatpush1.bf16.msra.mxu0 0
          %992 = vmatprep.subr.bf16.mxu0 0
          %993 = vmatpush1.bf16.msra.mxu0 0
          %994 = vmatprep.subr.bf16.mxu0 0
          %995 = vmatpush1.bf16.msra.mxu0 0
          %996 = vmatprep.subr.bf16.mxu0 0
          %997 = vmatpush1.bf16.msra.mxu0 0
          %998 = vmatprep.subr.bf16.mxu0 0
          %999 = vmatpush1.bf16.msra.mxu0 0
          %1000 = vmatprep.subr.bf16.mxu0 0
          %1001 = vmatpush1.bf16.msra.mxu0 0
          %1002 = vmatprep.subr.bf16.mxu0 0
          %1003 = vmatpush1.bf16.msra.mxu0 0
          %1004 = vmatprep.subr.bf16.mxu0 0
          %1005 = vmatpush1.bf16.msra.mxu0 0
          %1006 = vmatprep.subr.bf16.mxu0 0
          %1007 = vmatpush1.bf16.msra.mxu0 0
          %1008 = vmatprep.subr.bf16.mxu0 0
          %1009 = vmatpush1.bf16.msra.mxu0 0
          %1010 = vmatprep.subr.bf16.mxu0 0
          %1011 = vmatpush1.bf16.msra.mxu0 0
          %1012 = vmatprep.subr.bf16.mxu0 0
          %1013 = vmatpush1.bf16.msra.mxu0 0
          %1014 = vmatprep.subr.bf16.mxu0 0
          %1015 = vmatpush1.bf16.msra.mxu0 0
          %1016 = vmatprep.mubr.bf16.mxu0 0
          %1017 = vmatmul.mubr.bf16.gmra.mrb[0].mxu0 %v982
          %v1018 = vpop.f32.mrb[0].mxu0
          %v1019 = vadd.f32 %v895, %v1018
          %v1020 = vpop.f32.mrb[0].mxu0
          %v1021 = vpop.f32.mrb[0].mxu0
          %v1022 = vpop.f32.mrb[0].mxu0
          %1023 = vdwg.mxu0
          %v1024 = vsel %vm947, %v1019, 0.0
          %1025 = vadd.xlane.f32.xlu0 %v1024
          %v1026 = vpop.xlane.xlu0 %1025
          %v1027 = vmul.f32 %v1026, %v951
          %v1028 = vsub.f32 %v1019, %v1027
          %v1029 = vmul.f32 %v1028, %v1028
          %v1030 = vsel %vm947, %v1029, 0.0
          %1031 = vadd.xlane.f32.xlu0 %v1030
          %v1032 = vpop.xlane.xlu0 %1031
          %v1033 = vmul.f32 %v1032, %v951
          %v1034 = vadd.f32 %v1033, 1e-05
          %v1035 = vrsqrt.pop %v1034
          %v1036 = vmul.f32 %v1028, %v1035
          %v1037 = vmul.f32 %v1036, %v966
          %v1038 = vadd.f32 %v1037, %v973
          %v1039 = vmax.f32 %v1038, 0.0
          %s1040 = scalar_lea.vmem [#allocation10], 8
          %1041 = vst.msk [vmem:[%s1040] sm:$0xff] %vm947, %v1039
        $region120: #{tpu_custom_call.1} parent=99 // pred_fallthru
          _
        %v1042 = vld [vmem:[%s1] sm:$0xff]
        %v1043 = vld [vmem:[%s1 + $0x8] sm:$0xff]
        %v1044 = vld [vmem:[%s836] sm:$0x1]
        %v1045 = vld [vmem:[%s839] sm:$0x1]
        %v1046 = vld [vmem:[%s858] sm:$0x1]
        %v1047 = vld [vmem:[%s861] sm:$0x1]
        %v1048 = vld [vmem:[%s844] sm:$0xf]
        %v1049 = vld [vmem:[%s844 + $0x4] sm:$0xf]
        %v1050 = vld [vmem:[%s844 + $0x8] sm:$0xf]
        %v1051 = vld [vmem:[%s844 + $0xc] sm:$0xf]
        %v1052 = vld [vmem:[%s847] sm:$0x1]
        %v1053 = vld [vmem:[%s852] sm:$0xf]
        %v1054 = vld [vmem:[%s852 + $0x4] sm:$0xf]
        %v1055 = vld [vmem:[%s852 + $0x8] sm:$0xf]
        %v1056 = vld [vmem:[%s852 + $0xc] sm:$0xf]
        %v1057 = vld [vmem:[%s855] sm:$0x1]
        %v1058 = vld [vmem:[%s866] sm:$0xf]
        %v1059 = vld [vmem:[%s866 + $0x4] sm:$0xf]
        %v1060 = vld [vmem:[%s866 + $0x8] sm:$0xf]
        %v1061 = vld [vmem:[%s866 + $0xc] sm:$0xf]
        %v1062 = vld [vmem:[%s869] sm:$0x1]
        %v1063 = vld [vmem:[%s874] sm:$0xf]
        %v1064 = vld [vmem:[%s874 + $0x4] sm:$0xf]
        %v1065 = vld [vmem:[%s874 + $0x8] sm:$0xf]
        %v1066 = vld [vmem:[%s874 + $0xc] sm:$0xf]
        %v1067 = vld [vmem:[%s874 + $0x10] sm:$0xf]
        %v1068 = vld [vmem:[%s874 + $0x14] sm:$0xf]
        %v1069 = vld [vmem:[%s874 + $0x18] sm:$0xf]
        %v1070 = vld [vmem:[%s874 + $0x1c] sm:$0xf]
        %v1071 = vld [vmem:[%s877] sm:$0x1]
        %v1072 = vld [vmem:[#allocation10] sm:$0xff]
        %vm1073 = vcmask 261120
        %v1074 = vsel %vm1073, %v1072, 0.0
        %1075 = vadd.xlane.f32.xlu0 %v1074
        %v1076 = vpop.xlane.xlu0 %1075
        %v1077 = vrcp.pop 32.0
        %v1078 = vmul.f32 %v1076, %v1077
        %v1079 = vsub.f32 %v1072, %v1078
        %v1080 = vmul.f32 %v1079, %v1079
        %v1081 = vsel %vm1073, %v1080, 0.0
        %1082 = vadd.xlane.f32.xlu0 %v1081
        %v1083 = vpop.xlane.xlu0 %1082
        %v1084 = vmul.f32 %v1083, %v1077
        %v1085 = vadd.f32 %v1084, 1e-05
        %v1086 = vrsqrt.pop %v1085
        %v1087 = vmul.f32 %v1079, %v1086
        %v1089 = vlaneseq
        %v1090 = vshrl.u32 %v1089, 7
        %v1091 = vsub.s32 0, %v1090
        %v1092 = vrot.slane %v1044, %v1091
        %v1094 = vmul.f32 %v1087, %v1092
        %v1096 = vlaneseq
        %v1097 = vshrl.u32 %v1096, 7
        %v1098 = vsub.s32 0, %v1097
        %v1099 = vrot.slane %v1045, %v1098
        %v1101 = vadd.f32 %v1094, %v1099
        %v1102 = vpack.c.bf16 %v1101, %v1101
        %v1104 = vlaneseq
        %v1105 = vshrl.u32 %v1104, 7
        %v1106 = vsub.s32 0, %v1105
        %v1107 = vrot.slane %v1052, %v1106
        %v1113 = vunpack.c.l.b16 %v1048
        %v1114 = vunpack.c.l.b16 %v1049
        %v1115 = vunpack.c.l.b16 %v1050
        %v1116 = vunpack.c.l.b16 %v1051
        %v1117 = vpack.c.b16 %v1114, %v1113
        %v1118 = vpack.c.b16 %v1116, %v1115
        %v1122 = vsel %vm1073, %v1102, 0
        %1124 = vmatprep.subr.bf16.mxu0 0
        %1125 = vmatpush1.bf16.msra.mxu0 %v1117
        %1126 = vmatprep.subr.bf16.mxu0 0
        %1127 = vmatpush1.bf16.msra.mxu0 %v1118
        %1128 = vmatprep.subr.bf16.mxu0 0
        %1129 = vmatpush1.bf16.msra.mxu0 0
        %1130 = vmatprep.subr.bf16.mxu0 0
        %1131 = vmatpush1.bf16.msra.mxu0 0
        %1132 = vmatprep.subr.bf16.mxu0 0
        %1133 = vmatpush1.bf16.msra.mxu0 0
        %1134 = vmatprep.subr.bf16.mxu0 0
        %1135 = vmatpush1.bf16.msra.mxu0 0
        %1136 = vmatprep.subr.bf16.mxu0 0
        %1137 = vmatpush1.bf16.msra.mxu0 0
        %1138 = vmatprep.subr.bf16.mxu0 0
        %1139 = vmatpush1.bf16.msra.mxu0 0
        %1140 = vmatprep.subr.bf16.mxu0 0
        %1141 = vmatpush1.bf16.msra.mxu0 0
        %1142 = vmatprep.subr.bf16.mxu0 0
        %1143 = vmatpush1.bf16.msra.mxu0 0
        %1144 = vmatprep.subr.bf16.mxu0 0
        %1145 = vmatpush1.bf16.msra.mxu0 0
        %1146 = vmatprep.subr.bf16.mxu0 0
        %1147 = vmatpush1.bf16.msra.mxu0 0
        %1148 = vmatprep.subr.bf16.mxu0 0
        %1149 = vmatpush1.bf16.msra.mxu0 0
        %1150 = vmatprep.subr.bf16.mxu0 0
        %1151 = vmatpush1.bf16.msra.mxu0 0
        %1152 = vmatprep.subr.bf16.mxu0 0
        %1153 = vmatpush1.bf16.msra.mxu0 0
        %1154 = vmatprep.subr.bf16.mxu0 0
        %1155 = vmatpush1.bf16.msra.mxu0 0
        %1156 = vmatprep.mubr.bf16.mxu0 0
        %1157 = vmatmul.mubr.bf16.gmra.mrb[0].mxu0 %v1122
        %v1158 = vpop.f32.mrb[0].mxu0
        %v1159 = vadd.f32 %v1107, %v1158
        %v1160 = vpop.f32.mrb[0].mxu0
        %v1161 = vpop.f32.mrb[0].mxu0
        %v1162 = vpop.f32.mrb[0].mxu0
        %1163 = vdwg.mxu0
        %v1164 = vmul.f32 %v1159, 0.35355338
        %1167 = vrot.lane.b32.xlu0 %v1042, 32
        %v1168 = vpop.permute.xlu0 %1167
        %1169 = vrot.lane.b32.xlu0 %v1043, 32
        %v1170 = vpop.permute.xlu0 %1169
        %v1173 = vpack.c.bf16 %v1164, %v1164
        %v1174 = vpack.c.bf16 %v1168, %v1159
        %v1175 = vpack.c.bf16 %v1170, %v1170
        %1178 = vrot.lane.b32.xlu0 %v1174, 96
        %v1179 = vpop.permute.xlu0 %1178
        %1180 = vrot.lane.b32.xlu0 %v1175, 96
        %v1181 = vpop.permute.xlu0 %1180
        %vm1182 = vcmask 64512
        %v1184 = vsel %vm1182, %v1173, 0
        %v1187 = vsel %vm1182, %v1179, 0
        %v1190 = vsel %vm1182, %v1181, 0
        %1192 = vmatprep.subr.bf16.mxu0 0
        %1193 = vmatpush1.bf16.xpose.msra.mxu0 %v1187
        %1194 = vmatprep.subr.bf16.mxu0 0
        %1195 = vmatpush1.bf16.xpose.msra.mxu0 %v1190
        %1196 = vmatprep.subr.bf16.mxu0 0
        %1197 = vmatpush1.bf16.xpose.msra.mxu0 0
        %1198 = vmatprep.subr.bf16.mxu0 0
        %1199 = vmatpush1.bf16.xpose.msra.mxu0 0
        %1200 = vmatprep.subr.bf16.mxu0 0
        %1201 = vmatpush1.bf16.xpose.msra.mxu0 0
        %1202 = vmatprep.subr.bf16.mxu0 0
        %1203 = vmatpush1.bf16.xpose.msra.mxu0 0
        %1204 = vmatprep.subr.bf16.mxu0 0
        %1205 = vmatpush1.bf16.xpose.msra.mxu0 0
        %1206 = vmatprep.subr.bf16.mxu0 0
        %1207 = vmatpush1.bf16.xpose.msra.mxu0 0
        %1208 = vmatprep.subr.bf16.mxu0 0
        %1209 = vmatpush1.bf16.xpose.msra.mxu0 0
        %1210 = vmatprep.subr.bf16.mxu0 0
        %1211 = vmatpush1.bf16.xpose.msra.mxu0 0
        %1212 = vmatprep.subr.bf16.mxu0 0
        %1213 = vmatpush1.bf16.xpose.msra.mxu0 0
        %1214 = vmatprep.subr.bf16.mxu0 0
        %1215 = vmatpush1.bf16.xpose.msra.mxu0 0
        %1216 = vmatprep.subr.bf16.mxu0 0
        %1217 = vmatpush1.bf16.xpose.msra.mxu0 0
        %1218 = vmatprep.subr.bf16.mxu0 0
        %1219 = vmatpush1.bf16.xpose.msra.mxu0 0
        %1220 = vmatprep.subr.bf16.mxu0 0
        %1221 = vmatpush1.bf16.xpose.msra.mxu0 0
        %1222 = vmatprep.subr.bf16.mxu0 0
        %1223 = vmatpush1.bf16.xpose.msra.mxu0 0
        %1224 = vmatprep.mubr.bf16.mxu0 0
        %1225 = vmatmul.mubr.bf16.gmra.mrb[0].mxu0 %v1184
        %v1226 = vpop.f32.mrb[0].mxu0
        %v1227 = vadd.f32 0.0, %v1226
        %v1228 = vpop.f32.mrb[0].mxu0
        %v1229 = vpop.f32.mrb[0].mxu0
        %v1230 = vpop.f32.mrb[0].mxu0
        %1231 = vdwg.mxu0
        %v1232 = vlaneseq
        %v1233 = vshrl.u32 %v1232, 7
        %1235 = vrot.lane.b32.xlu0 %v1227, 105
        %v1236 = vpop.permute.xlu0 %1235
        %1238 = vrot.lane.b32.xlu0 %v1227, 121
        %v1239 = vpop.permute.xlu0 %1238
        %vm1241 = vcmask 7168
        %v1242 = vsel %vm1241, %v1236, %v1239
        %v1243 = vand.u32 %v1233, 1
        %vm1244 = vcmp.eq.s32.totalorder %v1243, 1
        %v1245 = vsel %vm1244, 1, 0
        %vm1246 = vcmp.eq.s32.totalorder %v1245, 1
        %1247 = vrot.lane.b32.xlu0 %v1227, 120
        %v1248 = vpop.permute.xlu0 %1247
        %v1250 = vsel %vm1246, %v1242, %v1248
        %1252 = vrot.lane.b32.xlu0 %v1250, 114
        %v1253 = vpop.permute.xlu0 %1252
        %1255 = vrot.lane.b32.xlu0 %v1250, 2
        %v1256 = vpop.permute.xlu0 %1255
        %vm1258 = vcmask 15360
        %v1259 = vsel %vm1258, %v1253, %v1256
        %v1260 = vshra.s32 %v1233, 1
        %v1261 = vand.u32 %v1260, 1
        %vm1262 = vcmp.eq.s32.totalorder %v1261, 1
        %v1263 = vsel %vm1262, 1, 0
        %vm1264 = vcmp.eq.s32.totalorder %v1263, 1
        %v1265 = vsel %vm1264, %v1259, %v1250
        %1267 = vrot.lane.b32.xlu0 %v1265, 116
        %v1268 = vpop.permute.xlu0 %1267
        %1270 = vrot.lane.b32.xlu0 %v1265, 4
        %v1271 = vpop.permute.xlu0 %1270
        %vm1273 = vcmask 31744
        %v1274 = vsel %vm1273, %v1268, %v1271
        %v1275 = vshra.s32 %v1233, 2
        %v1276 = vand.u32 %v1275, 1
        %vm1277 = vcmp.eq.s32.totalorder %v1276, 1
        %v1278 = vsel %vm1277, 1, 0
        %vm1279 = vcmp.eq.s32.totalorder %v1278, 1
        %v1280 = vsel %vm1279, %v1274, %v1265
        %v1281 = vadd.f32 %v1227, %v1280
        %v1282 = vsel %vm1182, %v1281, -inf
        %1283 = vmax.xlane.f32.xlu0 %v1282
        %v1284 = vpop.xlane.xlu0 %1283
        %v1285 = vsub.f32 %v1281, %v1284
        %v1286 = vmul.f32 %v1285, 1.442695
        %v1287 = vpow.pop %v1286
        %v1288 = vsel %vm1182, %v1287, 0.0
        %1289 = vadd.xlane.f32.xlu0 %v1288
        %v1290 = vpop.xlane.xlu0 %1289
        %v1291 = vrcp.pop %v1290
        %v1292 = vmul.f32 %v1287, %v1291
        %v1293 = vpack.c.bf16 %v1292, %v1292
        %v1294 = vpack.c.bf16 %v1159, %v1159
        %1296 = vrot.lane.b32.xlu0 %v1294, 64
        %v1297 = vpop.permute.xlu0 %1296
        %v1299 = vsel %vm1182, %v1293, 0
        %vm1301 = vcmask 1043456
        %v1303 = vsel %vm1301, %v1297, 0
        %1305 = vmatprep.subr.bf16.mxu0 0
        %1306 = vmatpush1.bf16.msra.mxu0 %v1303
        %1307 = vmatprep.subr.bf16.mxu0 0
        %1308 = vmatpush1.bf16.msra.mxu0 0
        %1309 = vmatprep.subr.bf16.mxu0 0
        %1310 = vmatpush1.bf16.msra.mxu0 0
        %1311 = vmatprep.subr.bf16.mxu0 0
        %1312 = vmatpush1.bf16.msra.mxu0 0
        %1313 = vmatprep.subr.bf16.mxu0 0
        %1314 = vmatpush1.bf16.msra.mxu0 0
        %1315 = vmatprep.subr.bf16.mxu0 0
        %1316 = vmatpush1.bf16.msra.mxu0 0
        %1317 = vmatprep.subr.bf16.mxu0 0
        %1318 = vmatpush1.bf16.msra.mxu0 0
        %1319 = vmatprep.subr.bf16.mxu0 0
        %1320 = vmatpush1.bf16.msra.mxu0 0
        %1321 = vmatprep.subr.bf16.mxu0 0
        %1322 = vmatpush1.bf16.msra.mxu0 0
        %1323 = vmatprep.subr.bf16.mxu0 0
        %1324 = vmatpush1.bf16.msra.mxu0 0
        %1325 = vmatprep.subr.bf16.mxu0 0
        %1326 = vmatpush1.bf16.msra.mxu0 0
        %1327 = vmatprep.subr.bf16.mxu0 0
        %1328 = vmatpush1.bf16.msra.mxu0 0
        %1329 = vmatprep.subr.bf16.mxu0 0
        %1330 = vmatpush1.bf16.msra.mxu0 0
        %1331 = vmatprep.subr.bf16.mxu0 0
        %1332 = vmatpush1.bf16.msra.mxu0 0
        %1333 = vmatprep.subr.bf16.mxu0 0
        %1334 = vmatpush1.bf16.msra.mxu0 0
        %1335 = vmatprep.subr.bf16.mxu0 0
        %1336 = vmatpush1.bf16.msra.mxu0 0
        %1337 = vmatprep.mubr.bf16.mxu0 0
        %1338 = vmatmul.mubr.bf16.gmra.mrb[0].mxu0 %v1299
        %v1339 = vpop.f32.mrb[0].mxu0
        %v1340 = vadd.f32 0.0, %v1339
        %v1341 = vpop.f32.mrb[0].mxu0
        %v1342 = vpop.f32.mrb[0].mxu0
        %v1343 = vpop.f32.mrb[0].mxu0
        %1344 = vdwg.mxu0
        %1345 = vrot.lane.b32.xlu0 %v1042, 40
        %v1346 = vpop.permute.xlu0 %1345
        %1347 = vrot.lane.b32.xlu0 %v1043, 40
        %v1348 = vpop.permute.xlu0 %1347
        %v1351 = vpack.c.bf16 %v1346, %v1159
        %v1352 = vpack.c.bf16 %v1348, %v1348
        %1354 = vrot.lane.b32.xlu0 %v1173, 120
        %v1355 = vpop.permute.xlu0 %1354
        %1358 = vrot.lane.b32.xlu0 %v1351, 88
        %v1359 = vpop.permute.xlu0 %1358
        %1360 = vrot.lane.b32.xlu0 %v1352, 88
        %v1361 = vpop.permute.xlu0 %1360
        %v1363 = vsel %vm1182, %v1355, 0
        %v1366 = vsel %vm1182, %v1359, 0
        %v1369 = vsel %vm1182, %v1361, 0
        %1371 = vmatprep.subr.bf16.mxu0 0
        %1372 = vmatpush1.bf16.xpose.msra.mxu0 %v1366
        %1373 = vmatprep.subr.bf16.mxu0 0
        %1374 = vmatpush1.bf16.xpose.msra.mxu0 %v1369
        %1375 = vmatprep.subr.bf16.mxu0 0
        %1376 = vmatpush1.bf16.xpose.msra.mxu0 0
        %1377 = vmatprep.subr.bf16.mxu0 0
        %1378 = vmatpush1.bf16.xpose.msra.mxu0 0
        %1379 = vmatprep.subr.bf16.mxu0 0
        %1380 = vmatpush1.bf16.xpose.msra.mxu0 0
        %1381 = vmatprep.subr.bf16.mxu0 0
        %1382 = vmatpush1.bf16.xpose.msra.mxu0 0
        %1383 = vmatprep.subr.bf16.mxu0 0
        %1384 = vmatpush1.bf16.xpose.msra.mxu0 0
        %1385 = vmatprep.subr.bf16.mxu0 0
        %1386 = vmatpush1.bf16.xpose.msra.mxu0 0
        %1387 = vmatprep.subr.bf16.mxu0 0
        %1388 = vmatpush1.bf16.xpose.msra.mxu0 0
        %1389 = vmatprep.subr.bf16.mxu0 0
        %1390 = vmatpush1.bf16.xpose.msra.mxu0 0
        %1391 = vmatprep.subr.bf16.mxu0 0
        %1392 = vmatpush1.bf16.xpose.msra.mxu0 0
        %1393 = vmatprep.subr.bf16.mxu0 0
        %1394 = vmatpush1.bf16.xpose.msra.mxu0 0
        %1395 = vmatprep.subr.bf16.mxu0 0
        %1396 = vmatpush1.bf16.xpose.msra.mxu0 0
        %1397 = vmatprep.subr.bf16.mxu0 0
        %1398 = vmatpush1.bf16.xpose.msra.mxu0 0
        %1399 = vmatprep.subr.bf16.mxu0 0
        %1400 = vmatpush1.bf16.xpose.msra.mxu0 0
        %1401 = vmatprep.subr.bf16.mxu0 0
        %1402 = vmatpush1.bf16.xpose.msra.mxu0 0
        %1403 = vmatprep.mubr.bf16.mxu0 0
        %1404 = vmatmul.mubr.bf16.gmra.mrb[0].mxu0 %v1363
        %v1405 = vpop.f32.mrb[0].mxu0
        %v1406 = vadd.f32 0.0, %v1405
        %v1407 = vpop.f32.mrb[0].mxu0
        %v1408 = vpop.f32.mrb[0].mxu0
        %v1409 = vpop.f32.mrb[0].mxu0
        %1410 = vdwg.mxu0
        %1412 = vrot.lane.b32.xlu0 %v1406, 105
        %v1413 = vpop.permute.xlu0 %1412
        %1415 = vrot.lane.b32.xlu0 %v1406, 121
        %v1416 = vpop.permute.xlu0 %1415
        %v1418 = vsel %vm1241, %v1413, %v1416
        %1419 = vrot.lane.b32.xlu0 %v1406, 120
        %v1420 = vpop.permute.xlu0 %1419
        %v1422 = vsel %vm1246, %v1418, %v1420
        %1424 = vrot.lane.b32.xlu0 %v1422, 114
        %v1425 = vpop.permute.xlu0 %1424
        %1427 = vrot.lane.b32.xlu0 %v1422, 2
        %v1428 = vpop.permute.xlu0 %1427
        %v1430 = vsel %vm1258, %v1425, %v1428
        %v1431 = vsel %vm1264, %v1430, %v1422
        %1433 = vrot.lane.b32.xlu0 %v1431, 116
        %v1434 = vpop.permute.xlu0 %1433
        %1436 = vrot.lane.b32.xlu0 %v1431, 4
        %v1437 = vpop.permute.xlu0 %1436
        %v1439 = vsel %vm1273, %v1434, %v1437
        %v1440 = vsel %vm1279, %v1439, %v1431
        %v1441 = vadd.f32 %v1406, %v1440
        %v1442 = vsel %vm1182, %v1441, -inf
        %1443 = vmax.xlane.f32.xlu0 %v1442
        %v1444 = vpop.xlane.xlu0 %1443
        %v1445 = vsub.f32 %v1441, %v1444
        %v1446 = vmul.f32 %v1445, 1.442695
        %v1447 = vpow.pop %v1446
        %v1448 = vsel %vm1182, %v1447, 0.0
        %1449 = vadd.xlane.f32.xlu0 %v1448
        %v1450 = vpop.xlane.xlu0 %1449
        %v1451 = vrcp.pop %v1450
        %v1452 = vmul.f32 %v1447, %v1451
        %v1453 = vpack.c.bf16 %v1452, %v1452
        %1454 = vrot.lane.b32.xlu0 %v1294, 56
        %v1455 = vpop.permute.xlu0 %1454
        %v1457 = vsel %vm1182, %v1453, 0
        %v1460 = vsel %vm1301, %v1455, 0
        %1462 = vmatprep.subr.bf16.mxu0 0
        %1463 = vmatpush1.bf16.msra.mxu0 %v1460
        %1464 = vmatprep.subr.bf16.mxu0 0
        %1465 = vmatpush1.bf16.msra.mxu0 0
        %1466 = vmatprep.subr.bf16.mxu0 0
        %1467 = vmatpush1.bf16.msra.mxu0 0
        %1468 = vmatprep.subr.bf16.mxu0 0
        %1469 = vmatpush1.bf16.msra.mxu0 0
        %1470 = vmatprep.subr.bf16.mxu0 0
        %1471 = vmatpush1.bf16.msra.mxu0 0
        %1472 = vmatprep.subr.bf16.mxu0 0
        %1473 = vmatpush1.bf16.msra.mxu0 0
        %1474 = vmatprep.subr.bf16.mxu0 0
        %1475 = vmatpush1.bf16.msra.mxu0 0
        %1476 = vmatprep.subr.bf16.mxu0 0
        %1477 = vmatpush1.bf16.msra.mxu0 0
        %1478 = vmatprep.subr.bf16.mxu0 0
        %1479 = vmatpush1.bf16.msra.mxu0 0
        %1480 = vmatprep.subr.bf16.mxu0 0
        %1481 = vmatpush1.bf16.msra.mxu0 0
        %1482 = vmatprep.subr.bf16.mxu0 0
        %1483 = vmatpush1.bf16.msra.mxu0 0
        %1484 = vmatprep.subr.bf16.mxu0 0
        %1485 = vmatpush1.bf16.msra.mxu0 0
        %1486 = vmatprep.subr.bf16.mxu0 0
        %1487 = vmatpush1.bf16.msra.mxu0 0
        %1488 = vmatprep.subr.bf16.mxu0 0
        %1489 = vmatpush1.bf16.msra.mxu0 0
        %1490 = vmatprep.subr.bf16.mxu0 0
        %1491 = vmatpush1.bf16.msra.mxu0 0
        %1492 = vmatprep.subr.bf16.mxu0 0
        %1493 = vmatpush1.bf16.msra.mxu0 0
        %1494 = vmatprep.mubr.bf16.mxu0 0
        %1495 = vmatmul.mubr.bf16.gmra.mrb[0].mxu0 %v1457
        %v1496 = vpop.f32.mrb[0].mxu0
        %v1497 = vadd.f32 0.0, %v1496
        %v1498 = vpop.f32.mrb[0].mxu0
        %v1499 = vpop.f32.mrb[0].mxu0
        %v1500 = vpop.f32.mrb[0].mxu0
        %1501 = vdwg.mxu0
        %1502 = vrot.lane.b32.xlu0 %v1042, 48
        %v1503 = vpop.permute.xlu0 %1502
        %1504 = vrot.lane.b32.xlu0 %v1043, 48
        %v1505 = vpop.permute.xlu0 %1504
        %v1508 = vpack.c.bf16 %v1503, %v1159
        %v1509 = vpack.c.bf16 %v1505, %v1505
        %1510 = vrot.lane.b32.xlu0 %v1173, 112
        %v1511 = vpop.permute.xlu0 %1510
        %1514 = vrot.lane.b32.xlu0 %v1508, 80
        %v1515 = vpop.permute.xlu0 %1514
        %1516 = vrot.lane.b32.xlu0 %v1509, 80
        %v1517 = vpop.permute.xlu0 %1516
        %v1519 = vsel %vm1182, %v1511, 0
        %v1522 = vsel %vm1182, %v1515, 0
        %v1525 = vsel %vm1182, %v1517, 0
        %1527 = vmatprep.subr.bf16.mxu0 0
        %1528 = vmatpush1.bf16.xpose.msra.mxu0 %v1522
        %1529 = vmatprep.subr.bf16.mxu0 0
        %1530 = vmatpush1.bf16.xpose.msra.mxu0 %v1525
        %1531 = vmatprep.subr.bf16.mxu0 0
        %1532 = vmatpush1.bf16.xpose.msra.mxu0 0
        %1533 = vmatprep.subr.bf16.mxu0 0
        %1534 = vmatpush1.bf16.xpose.msra.mxu0 0
        %1535 = vmatprep.subr.bf16.mxu0 0
        %1536 = vmatpush1.bf16.xpose.msra.mxu0 0
        %1537 = vmatprep.subr.bf16.mxu0 0
        %1538 = vmatpush1.bf16.xpose.msra.mxu0 0
        %1539 = vmatprep.subr.bf16.mxu0 0
        %1540 = vmatpush1.bf16.xpose.msra.mxu0 0
        %1541 = vmatprep.subr.bf16.mxu0 0
        %1542 = vmatpush1.bf16.xpose.msra.mxu0 0
        %1543 = vmatprep.subr.bf16.mxu0 0
        %1544 = vmatpush1.bf16.xpose.msra.mxu0 0
        %1545 = vmatprep.subr.bf16.mxu0 0
        %1546 = vmatpush1.bf16.xpose.msra.mxu0 0
        %1547 = vmatprep.subr.bf16.mxu0 0
        %1548 = vmatpush1.bf16.xpose.msra.mxu0 0
        %1549 = vmatprep.subr.bf16.mxu0 0
        %1550 = vmatpush1.bf16.xpose.msra.mxu0 0
        %1551 = vmatprep.subr.bf16.mxu0 0
        %1552 = vmatpush1.bf16.xpose.msra.mxu0 0
        %1553 = vmatprep.subr.bf16.mxu0 0
        %1554 = vmatpush1.bf16.xpose.msra.mxu0 0
        %1555 = vmatprep.subr.bf16.mxu0 0
        %1556 = vmatpush1.bf16.xpose.msra.mxu0 0
        %1557 = vmatprep.subr.bf16.mxu0 0
        %1558 = vmatpush1.bf16.xpose.msra.mxu0 0
        %1559 = vmatprep.mubr.bf16.mxu0 0
        %1560 = vmatmul.mubr.bf16.gmra.mrb[0].mxu0 %v1519
        %v1561 = vpop.f32.mrb[0].mxu0
        %v1562 = vadd.f32 0.0, %v1561
        %v1563 = vpop.f32.mrb[0].mxu0
        %v1564 = vpop.f32.mrb[0].mxu0
        %v1565 = vpop.f32.mrb[0].mxu0
        %1566 = vdwg.mxu0
        %1568 = vrot.lane.b32.xlu0 %v1562, 105
        %v1569 = vpop.permute.xlu0 %1568
        %1571 = vrot.lane.b32.xlu0 %v1562, 121
        %v1572 = vpop.permute.xlu0 %1571
        %v1574 = vsel %vm1241, %v1569, %v1572
        %1575 = vrot.lane.b32.xlu0 %v1562, 120
        %v1576 = vpop.permute.xlu0 %1575
        %v1578 = vsel %vm1246, %v1574, %v1576
        %1580 = vrot.lane.b32.xlu0 %v1578, 114
        %v1581 = vpop.permute.xlu0 %1580
        %1583 = vrot.lane.b32.xlu0 %v1578, 2
        %v1584 = vpop.permute.xlu0 %1583
        %v1586 = vsel %vm1258, %v1581, %v1584
        %v1587 = vsel %vm1264, %v1586, %v1578
        %1589 = vrot.lane.b32.xlu0 %v1587, 116
        %v1590 = vpop.permute.xlu0 %1589
        %1592 = vrot.lane.b32.xlu0 %v1587, 4
        %v1593 = vpop.permute.xlu0 %1592
        %v1595 = vsel %vm1273, %v1590, %v1593
        %v1596 = vsel %vm1279, %v1595, %v1587
        %v1597 = vadd.f32 %v1562, %v1596
        %v1598 = vsel %vm1182, %v1597, -inf
        %1599 = vmax.xlane.f32.xlu0 %v1598
        %v1600 = vpop.xlane.xlu0 %1599
        %v1601 = vsub.f32 %v1597, %v1600
        %v1602 = vmul.f32 %v1601, 1.442695
        %v1603 = vpow.pop %v1602
        %v1604 = vsel %vm1182, %v1603, 0.0
        %1605 = vadd.xlane.f32.xlu0 %v1604
        %v1606 = vpop.xlane.xlu0 %1605
        %v1607 = vrcp.pop %v1606
        %v1608 = vmul.f32 %v1603, %v1607
        %v1609 = vpack.c.bf16 %v1608, %v1608
        %1610 = vrot.lane.b32.xlu0 %v1294, 48
        %v1611 = vpop.permute.xlu0 %1610
        %v1613 = vsel %vm1182, %v1609, 0
        %v1616 = vsel %vm1301, %v1611, 0
        %1618 = vmatprep.subr.bf16.mxu0 0
        %1619 = vmatpush1.bf16.msra.mxu0 %v1616
        %1620 = vmatprep.subr.bf16.mxu0 0
        %1621 = vmatpush1.bf16.msra.mxu0 0
        %1622 = vmatprep.subr.bf16.mxu0 0
        %1623 = vmatpush1.bf16.msra.mxu0 0
        %1624 = vmatprep.subr.bf16.mxu0 0
        %1625 = vmatpush1.bf16.msra.mxu0 0
        %1626 = vmatprep.subr.bf16.mxu0 0
        %1627 = vmatpush1.bf16.msra.mxu0 0
        %1628 = vmatprep.subr.bf16.mxu0 0
        %1629 = vmatpush1.bf16.msra.mxu0 0
        %1630 = vmatprep.subr.bf16.mxu0 0
        %1631 = vmatpush1.bf16.msra.mxu0 0
        %1632 = vmatprep.subr.bf16.mxu0 0
        %1633 = vmatpush1.bf16.msra.mxu0 0
        %1634 = vmatprep.subr.bf16.mxu0 0
        %1635 = vmatpush1.bf16.msra.mxu0 0
        %1636 = vmatprep.subr.bf16.mxu0 0
        %1637 = vmatpush1.bf16.msra.mxu0 0
        %1638 = vmatprep.subr.bf16.mxu0 0
        %1639 = vmatpush1.bf16.msra.mxu0 0
        %1640 = vmatprep.subr.bf16.mxu0 0
        %1641 = vmatpush1.bf16.msra.mxu0 0
        %1642 = vmatprep.subr.bf16.mxu0 0
        %1643 = vmatpush1.bf16.msra.mxu0 0
        %1644 = vmatprep.subr.bf16.mxu0 0
        %1645 = vmatpush1.bf16.msra.mxu0 0
        %1646 = vmatprep.subr.bf16.mxu0 0
        %1647 = vmatpush1.bf16.msra.mxu0 0
        %1648 = vmatprep.subr.bf16.mxu0 0
        %1649 = vmatpush1.bf16.msra.mxu0 0
        %1650 = vmatprep.mubr.bf16.mxu0 0
        %1651 = vmatmul.mubr.bf16.gmra.mrb[0].mxu0 %v1613
        %v1652 = vpop.f32.mrb[0].mxu0
        %v1653 = vadd.f32 0.0, %v1652
        %v1654 = vpop.f32.mrb[0].mxu0
        %v1655 = vpop.f32.mrb[0].mxu0
        %v1656 = vpop.f32.mrb[0].mxu0
        %1657 = vdwg.mxu0
        %1658 = vrot.lane.b32.xlu0 %v1042, 56
        %v1659 = vpop.permute.xlu0 %1658
        %1660 = vrot.lane.b32.xlu0 %v1043, 56
        %v1661 = vpop.permute.xlu0 %1660
        %v1664 = vpack.c.bf16 %v1659, %v1159
        %v1665 = vpack.c.bf16 %v1661, %v1661
        %1666 = vrot.lane.b32.xlu0 %v1173, 104
        %v1667 = vpop.permute.xlu0 %1666
        %1670 = vrot.lane.b32.xlu0 %v1664, 72
        %v1671 = vpop.permute.xlu0 %1670
        %1672 = vrot.lane.b32.xlu0 %v1665, 72
        %v1673 = vpop.permute.xlu0 %1672
        %v1675 = vsel %vm1182, %v1667, 0
        %v1678 = vsel %vm1182, %v1671, 0
        %v1681 = vsel %vm1182, %v1673, 0
        %1683 = vmatprep.subr.bf16.mxu0 0
        %1684 = vmatpush1.bf16.xpose.msra.mxu0 %v1678
        %1685 = vmatprep.subr.bf16.mxu0 0
        %1686 = vmatpush1.bf16.xpose.msra.mxu0 %v1681
        %1687 = vmatprep.subr.bf16.mxu0 0
        %1688 = vmatpush1.bf16.xpose.msra.mxu0 0
        %1689 = vmatprep.subr.bf16.mxu0 0
        %1690 = vmatpush1.bf16.xpose.msra.mxu0 0
        %1691 = vmatprep.subr.bf16.mxu0 0
        %1692 = vmatpush1.bf16.xpose.msra.mxu0 0
        %1693 = vmatprep.subr.bf16.mxu0 0
        %1694 = vmatpush1.bf16.xpose.msra.mxu0 0
        %1695 = vmatprep.subr.bf16.mxu0 0
        %1696 = vmatpush1.bf16.xpose.msra.mxu0 0
        %1697 = vmatprep.subr.bf16.mxu0 0
        %1698 = vmatpush1.bf16.xpose.msra.mxu0 0
        %1699 = vmatprep.subr.bf16.mxu0 0
        %1700 = vmatpush1.bf16.xpose.msra.mxu0 0
        %1701 = vmatprep.subr.bf16.mxu0 0
        %1702 = vmatpush1.bf16.xpose.msra.mxu0 0
        %1703 = vmatprep.subr.bf16.mxu0 0
        %1704 = vmatpush1.bf16.xpose.msra.mxu0 0
        %1705 = vmatprep.subr.bf16.mxu0 0
        %1706 = vmatpush1.bf16.xpose.msra.mxu0 0
        %1707 = vmatprep.subr.bf16.mxu0 0
        %1708 = vmatpush1.bf16.xpose.msra.mxu0 0
        %1709 = vmatprep.subr.bf16.mxu0 0
        %1710 = vmatpush1.bf16.xpose.msra.mxu0 0
        %1711 = vmatprep.subr.bf16.mxu0 0
        %1712 = vmatpush1.bf16.xpose.msra.mxu0 0
        %1713 = vmatprep.subr.bf16.mxu0 0
        %1714 = vmatpush1.bf16.xpose.msra.mxu0 0
        %1715 = vmatprep.mubr.bf16.mxu0 0
        %1716 = vmatmul.mubr.bf16.gmra.mrb[0].mxu0 %v1675
        %v1717 = vpop.f32.mrb[0].mxu0
        %v1718 = vadd.f32 0.0, %v1717
        %v1719 = vpop.f32.mrb[0].mxu0
        %v1720 = vpop.f32.mrb[0].mxu0
        %v1721 = vpop.f32.mrb[0].mxu0
        %1722 = vdwg.mxu0
        %1724 = vrot.lane.b32.xlu0 %v1718, 105
        %v1725 = vpop.permute.xlu0 %1724
        %1727 = vrot.lane.b32.xlu0 %v1718, 121
        %v1728 = vpop.permute.xlu0 %1727
        %v1730 = vsel %vm1241, %v1725, %v1728
        %1731 = vrot.lane.b32.xlu0 %v1718, 120
        %v1732 = vpop.permute.xlu0 %1731
        %v1734 = vsel %vm1246, %v1730, %v1732
        %1736 = vrot.lane.b32.xlu0 %v1734, 114
        %v1737 = vpop.permute.xlu0 %1736
        %1739 = vrot.lane.b32.xlu0 %v1734, 2
        %v1740 = vpop.permute.xlu0 %1739
        %v1742 = vsel %vm1258, %v1737, %v1740
        %v1743 = vsel %vm1264, %v1742, %v1734
        %1745 = vrot.lane.b32.xlu0 %v1743, 116
        %v1746 = vpop.permute.xlu0 %1745
        %1748 = vrot.lane.b32.xlu0 %v1743, 4
        %v1749 = vpop.permute.xlu0 %1748
        %v1751 = vsel %vm1273, %v1746, %v1749
        %v1752 = vsel %vm1279, %v1751, %v1743
        %v1753 = vadd.f32 %v1718, %v1752
        %v1754 = vsel %vm1182, %v1753, -inf
        %1755 = vmax.xlane.f32.xlu0 %v1754
        %v1756 = vpop.xlane.xlu0 %1755
        %v1757 = vsub.f32 %v1753, %v1756
        %v1758 = vmul.f32 %v1757, 1.442695
        %v1759 = vpow.pop %v1758
        %v1760 = vsel %vm1182, %v1759, 0.0
        %1761 = vadd.xlane.f32.xlu0 %v1760
        %v1762 = vpop.xlane.xlu0 %1761
        %v1763 = vrcp.pop %v1762
        %v1764 = vmul.f32 %v1759, %v1763
        %v1765 = vpack.c.bf16 %v1764, %v1764
        %1766 = vrot.lane.b32.xlu0 %v1294, 40
        %v1767 = vpop.permute.xlu0 %1766
        %v1769 = vsel %vm1182, %v1765, 0
        %v1772 = vsel %vm1301, %v1767, 0
        %1774 = vmatprep.subr.bf16.mxu0 0
        %1775 = vmatpush1.bf16.msra.mxu0 %v1772
        %1776 = vmatprep.subr.bf16.mxu0 0
        %1777 = vmatpush1.bf16.msra.mxu0 0
        %1778 = vmatprep.subr.bf16.mxu0 0
        %1779 = vmatpush1.bf16.msra.mxu0 0
        %1780 = vmatprep.subr.bf16.mxu0 0
        %1781 = vmatpush1.bf16.msra.mxu0 0
        %1782 = vmatprep.subr.bf16.mxu0 0
        %1783 = vmatpush1.bf16.msra.mxu0 0
        %1784 = vmatprep.subr.bf16.mxu0 0
        %1785 = vmatpush1.bf16.msra.mxu0 0
        %1786 = vmatprep.subr.bf16.mxu0 0
        %1787 = vmatpush1.bf16.msra.mxu0 0
        %1788 = vmatprep.subr.bf16.mxu0 0
        %1789 = vmatpush1.bf16.msra.mxu0 0
        %1790 = vmatprep.subr.bf16.mxu0 0
        %1791 = vmatpush1.bf16.msra.mxu0 0
        %1792 = vmatprep.subr.bf16.mxu0 0
        %1793 = vmatpush1.bf16.msra.mxu0 0
        %1794 = vmatprep.subr.bf16.mxu0 0
        %1795 = vmatpush1.bf16.msra.mxu0 0
        %1796 = vmatprep.subr.bf16.mxu0 0
        %1797 = vmatpush1.bf16.msra.mxu0 0
        %1798 = vmatprep.subr.bf16.mxu0 0
        %1799 = vmatpush1.bf16.msra.mxu0 0
        %1800 = vmatprep.subr.bf16.mxu0 0
        %1801 = vmatpush1.bf16.msra.mxu0 0
        %1802 = vmatprep.subr.bf16.mxu0 0
        %1803 = vmatpush1.bf16.msra.mxu0 0
        %1804 = vmatprep.subr.bf16.mxu0 0
        %1805 = vmatpush1.bf16.msra.mxu0 0
        %1806 = vmatprep.mubr.bf16.mxu0 0
        %1807 = vmatmul.mubr.bf16.gmra.mrb[0].mxu0 %v1769
        %v1808 = vpop.f32.mrb[0].mxu0
        %v1809 = vadd.f32 0.0, %v1808
        %v1810 = vpop.f32.mrb[0].mxu0
        %v1811 = vpop.f32.mrb[0].mxu0
        %v1812 = vpop.f32.mrb[0].mxu0
        %1813 = vdwg.mxu0
        %1815 = vrot.lane.b32.xlu0 %v1497, 8
        %v1816 = vpop.permute.xlu0 %1815
        %1819 = vrot.lane.b32.xlu0 %v1653, 16
        %v1820 = vpop.permute.xlu0 %1819
        %1823 = vrot.lane.b32.xlu0 %v1809, 24
        %v1824 = vpop.permute.xlu0 %1823
        %v1826 = vsel %vm1182, %v1340, %v1816
        %vm1827 = vcmask 130048
        %v1828 = vsel %vm1827, %v1826, %v1820
        %vm1829 = vcmask 195584
        %v1830 = vsel %vm1829, %v1828, %v1824
        %v1831 = vpack.c.bf16 %v1830, %v1830
        %v1836 = vunpack.c.l.b16 %v1053
        %v1837 = vunpack.c.l.b16 %v1054
        %v1838 = vunpack.c.l.b16 %v1055
        %v1839 = vunpack.c.l.b16 %v1056
        %v1840 = vpack.c.b16 %v1837, %v1836
        %v1841 = vpack.c.b16 %v1839, %v1838
        %v1845 = vsel %vm1073, %v1831, 0
        %1847 = vmatprep.subr.bf16.mxu0 0
        %1848 = vmatpush1.bf16.msra.mxu0 %v1840
        %1849 = vmatprep.subr.bf16.mxu0 0
        %1850 = vmatpush1.bf16.msra.mxu0 %v1841
        %1851 = vmatprep.subr.bf16.mxu0 0
        %1852 = vmatpush1.bf16.msra.mxu0 0
        %1853 = vmatprep.subr.bf16.mxu0 0
        %1854 = vmatpush1.bf16.msra.mxu0 0
        %1855 = vmatprep.subr.bf16.mxu0 0
        %1856 = vmatpush1.bf16.msra.mxu0 0
        %1857 = vmatprep.subr.bf16.mxu0 0
        %1858 = vmatpush1.bf16.msra.mxu0 0
        %1859 = vmatprep.subr.bf16.mxu0 0
        %1860 = vmatpush1.bf16.msra.mxu0 0
        %1861 = vmatprep.subr.bf16.mxu0 0
        %1862 = vmatpush1.bf16.msra.mxu0 0
        %1863 = vmatprep.subr.bf16.mxu0 0
        %1864 = vmatpush1.bf16.msra.mxu0 0
        %1865 = vmatprep.subr.bf16.mxu0 0
        %1866 = vmatpush1.bf16.msra.mxu0 0
        %1867 = vmatprep.subr.bf16.mxu0 0
        %1868 = vmatpush1.bf16.msra.mxu0 0
        %1869 = vmatprep.subr.bf16.mxu0 0
        %1870 = vmatpush1.bf16.msra.mxu0 0
        %1871 = vmatprep.subr.bf16.mxu0 0
        %1872 = vmatpush1.bf16.msra.mxu0 0
        %1873 = vmatprep.subr.bf16.mxu0 0
        %1874 = vmatpush1.bf16.msra.mxu0 0
        %1875 = vmatprep.subr.bf16.mxu0 0
        %1876 = vmatpush1.bf16.msra.mxu0 0
        %1877 = vmatprep.subr.bf16.mxu0 0
        %1878 = vmatpush1.bf16.msra.mxu0 0
        %1879 = vmatprep.mubr.bf16.mxu0 0
        %1880 = vmatmul.mubr.bf16.gmra.mrb[0].mxu0 %v1845
        %v1881 = vpop.f32.mrb[0].mxu0
        %v1882 = vadd.f32 0.0, %v1881
        %v1883 = vpop.f32.mrb[0].mxu0
        %v1884 = vpop.f32.mrb[0].mxu0
        %v1885 = vpop.f32.mrb[0].mxu0
        %1886 = vdwg.mxu0
        %v1887 = vadd.f32 %v1072, %v1882
        %v1889 = vlaneseq
        %v1890 = vshrl.u32 %v1889, 7
        %v1891 = vsub.s32 0, %v1890
        %v1892 = vrot.slane %v1057, %v1891
        %v1894 = vadd.f32 %v1887, %v1892
        %v1895 = vsel %vm1073, %v1894, 0.0
        %1896 = vadd.xlane.f32.xlu0 %v1895
        %v1897 = vpop.xlane.xlu0 %1896
        %v1898 = vmul.f32 %v1897, %v1077
        %v1899 = vsub.f32 %v1894, %v1898
        %v1900 = vmul.f32 %v1899, %v1899
        %v1901 = vsel %vm1073, %v1900, 0.0
        %1902 = vadd.xlane.f32.xlu0 %v1901
        %v1903 = vpop.xlane.xlu0 %1902
        %v1904 = vmul.f32 %v1903, %v1077
        %v1905 = vadd.f32 %v1904, 1e-05
        %v1906 = vrsqrt.pop %v1905
        %v1907 = vmul.f32 %v1899, %v1906
        %v1909 = vlaneseq
        %v1910 = vshrl.u32 %v1909, 7
        %v1911 = vsub.s32 0, %v1910
        %v1912 = vrot.slane %v1046, %v1911
        %v1914 = vmul.f32 %v1907, %v1912
        %v1916 = vlaneseq
        %v1917 = vshrl.u32 %v1916, 7
        %v1918 = vsub.s32 0, %v1917
        %v1919 = vrot.slane %v1047, %v1918
        %v1921 = vadd.f32 %v1914, %v1919
        %v1922 = vpack.c.bf16 %v1921, %v1921
        %v1924 = vlaneseq
        %v1925 = vshrl.u32 %v1924, 7
        %v1926 = vsub.s32 0, %v1925
        %v1927 = vrot.slane %v1062, %v1926
        %v1933 = vunpack.c.l.b16 %v1058
        %v1934 = vunpack.c.l.b16 %v1059
        %v1935 = vunpack.c.l.b16 %v1060
        %v1936 = vunpack.c.l.b16 %v1061
        %v1937 = vpack.c.b16 %v1934, %v1933
        %v1938 = vpack.c.b16 %v1936, %v1935
        %v1942 = vsel %vm1073, %v1922, 0
        %1944 = vmatprep.subr.bf16.mxu0 0
        %1945 = vmatpush1.bf16.msra.mxu0 %v1937
        %1946 = vmatprep.subr.bf16.mxu0 0
        %1947 = vmatpush1.bf16.msra.mxu0 %v1938
        %1948 = vmatprep.subr.bf16.mxu0 0
        %1949 = vmatpush1.bf16.msra.mxu0 0
        %1950 = vmatprep.subr.bf16.mxu0 0
        %1951 = vmatpush1.bf16.msra.mxu0 0
        %1952 = vmatprep.subr.bf16.mxu0 0
        %1953 = vmatpush1.bf16.msra.mxu0 0
        %1954 = vmatprep.subr.bf16.mxu0 0
        %1955 = vmatpush1.bf16.msra.mxu0 0
        %1956 = vmatprep.subr.bf16.mxu0 0
        %1957 = vmatpush1.bf16.msra.mxu0 0
        %1958 = vmatprep.subr.bf16.mxu0 0
        %1959 = vmatpush1.bf16.msra.mxu0 0
        %1960 = vmatprep.subr.bf16.mxu0 0
        %1961 = vmatpush1.bf16.msra.mxu0 0
        %1962 = vmatprep.subr.bf16.mxu0 0
        %1963 = vmatpush1.bf16.msra.mxu0 0
        %1964 = vmatprep.subr.bf16.mxu0 0
        %1965 = vmatpush1.bf16.msra.mxu0 0
        %1966 = vmatprep.subr.bf16.mxu0 0
        %1967 = vmatpush1.bf16.msra.mxu0 0
        %1968 = vmatprep.subr.bf16.mxu0 0
        %1969 = vmatpush1.bf16.msra.mxu0 0
        %1970 = vmatprep.subr.bf16.mxu0 0
        %1971 = vmatpush1.bf16.msra.mxu0 0
        %1972 = vmatprep.subr.bf16.mxu0 0
        %1973 = vmatpush1.bf16.msra.mxu0 0
        %1974 = vmatprep.subr.bf16.mxu0 0
        %1975 = vmatpush1.bf16.msra.mxu0 0
        %1976 = vmatprep.mubr.bf16.mxu0 0
        %1977 = vmatmul.mubr.bf16.gmra.mrb[0].mxu0 %v1942
        %v1978 = vpop.f32.mrb[0].mxu0
        %v1979 = vadd.f32 %v1927, %v1978
        %v1980 = vpop.f32.mrb[0].mxu0
        %v1981 = vpop.f32.mrb[0].mxu0
        %v1982 = vpop.f32.mrb[0].mxu0
        %1983 = vdwg.mxu0
        %v1984 = vmax.f32 %v1979, 0.0
        %v1985 = vpack.c.bf16 %v1984, %v1984
        %v1994 = vunpack.c.l.b16 %v1063
        %v1995 = vunpack.c.l.b16 %v1064
        %v1996 = vunpack.c.l.b16 %v1065
        %v1997 = vunpack.c.l.b16 %v1066
        %v1998 = vunpack.c.l.b16 %v1067
        %v1999 = vunpack.c.l.b16 %v1068
        %v2000 = vunpack.c.l.b16 %v1069
        %v2001 = vunpack.c.l.b16 %v1070
        %v2002 = vpack.c.b16 %v1995, %v1994
        %v2003 = vpack.c.b16 %v1997, %v1996
        %v2004 = vpack.c.b16 %v1999, %v1998
        %v2005 = vpack.c.b16 %v2001, %v2000
        %vm2010 = vcmask 523264
        %v2012 = vsel %vm2010, %v1985, 0
        %2014 = vmatprep.subr.bf16.mxu0 0
        %2015 = vmatpush1.bf16.msra.mxu0 %v2002
        %2016 = vmatprep.subr.bf16.mxu0 0
        %2017 = vmatpush1.bf16.msra.mxu0 %v2003
        %2018 = vmatprep.subr.bf16.mxu0 0
        %2019 = vmatpush1.bf16.msra.mxu0 %v2004
        %2020 = vmatprep.subr.bf16.mxu0 0
        %2021 = vmatpush1.bf16.msra.mxu0 %v2005
        %2022 = vmatprep.subr.bf16.mxu0 0
        %2023 = vmatpush1.bf16.msra.mxu0 0
        %2024 = vmatprep.subr.bf16.mxu0 0
        %2025 = vmatpush1.bf16.msra.mxu0 0
        %2026 = vmatprep.subr.bf16.mxu0 0
        %2027 = vmatpush1.bf16.msra.mxu0 0
        %2028 = vmatprep.subr.bf16.mxu0 0
        %2029 = vmatpush1.bf16.msra.mxu0 0
        %2030 = vmatprep.subr.bf16.mxu0 0
        %2031 = vmatpush1.bf16.msra.mxu0 0
        %2032 = vmatprep.subr.bf16.mxu0 0
        %2033 = vmatpush1.bf16.msra.mxu0 0
        %2034 = vmatprep.subr.bf16.mxu0 0
        %2035 = vmatpush1.bf16.msra.mxu0 0
        %2036 = vmatprep.subr.bf16.mxu0 0
        %2037 = vmatpush1.bf16.msra.mxu0 0
        %2038 = vmatprep.subr.bf16.mxu0 0
        %2039 = vmatpush1.bf16.msra.mxu0 0
        %2040 = vmatprep.subr.bf16.mxu0 0
        %2041 = vmatpush1.bf16.msra.mxu0 0
        %2042 = vmatprep.subr.bf16.mxu0 0
        %2043 = vmatpush1.bf16.msra.mxu0 0
        %2044 = vmatprep.subr.bf16.mxu0 0
        %2045 = vmatpush1.bf16.msra.mxu0 0
        %2046 = vmatprep.mubr.bf16.mxu0 0
        %2047 = vmatmul.mubr.bf16.gmra.mrb[0].mxu0 %v2012
        %v2048 = vpop.f32.mrb[0].mxu0
        %v2049 = vadd.f32 0.0, %v2048
        %v2050 = vpop.f32.mrb[0].mxu0
        %v2051 = vpop.f32.mrb[0].mxu0
        %v2052 = vpop.f32.mrb[0].mxu0
        %2053 = vdwg.mxu0
        %v2054 = vadd.f32 %v1894, %v2049
        %v2056 = vlaneseq
        %v2057 = vshrl.u32 %v2056, 7
        %v2058 = vsub.s32 0, %v2057
        %v2059 = vrot.slane %v1071, %v2058
        %v2061 = vadd.f32 %v2054, %v2059
        %2062 = vst.msk [vmem:[#allocation10] sm:$0xff] %vm1073, %v2061
        %s2063 = scalar_lea.vmem [#allocation10], 8
        %v2064 = vld [vmem:[%s2063] sm:$0xff]
        %v2065 = vsel %vm1073, %v2064, 0.0
        %2066 = vadd.xlane.f32.xlu0 %v2065
        %v2067 = vpop.xlane.xlu0 %2066
        %v2068 = vmul.f32 %v2067, %v1077
        %v2069 = vsub.f32 %v2064, %v2068
        %v2070 = vmul.f32 %v2069, %v2069
        %v2071 = vsel %vm1073, %v2070, 0.0
        %2072 = vadd.xlane.f32.xlu0 %v2071
        %v2073 = vpop.xlane.xlu0 %2072
        %v2074 = vmul.f32 %v2073, %v1077
        %v2075 = vadd.f32 %v2074, 1e-05
        %v2076 = vrsqrt.pop %v2075
        %v2077 = vmul.f32 %v2069, %v2076
        %v2078 = vmul.f32 %v2077, %v1092
        %v2079 = vadd.f32 %v2078, %v1099
        %v2080 = vpack.c.bf16 %v2079, %v2079
        %v2082 = vsel %vm1073, %v2080, 0
        %2084 = vmatprep.subr.bf16.mxu0 0
        %2085 = vmatpush1.bf16.msra.mxu0 %v1117
        %2086 = vmatprep.subr.bf16.mxu0 0
        %2087 = vmatpush1.bf16.msra.mxu0 %v1118
        %2088 = vmatprep.subr.bf16.mxu0 0
        %2089 = vmatpush1.bf16.msra.mxu0 0
        %2090 = vmatprep.subr.bf16.mxu0 0
        %2091 = vmatpush1.bf16.msra.mxu0 0
        %2092 = vmatprep.subr.bf16.mxu0 0
        %2093 = vmatpush1.bf16.msra.mxu0 0
        %2094 = vmatprep.subr.bf16.mxu0 0
        %2095 = vmatpush1.bf16.msra.mxu0 0
        %2096 = vmatprep.subr.bf16.mxu0 0
        %2097 = vmatpush1.bf16.msra.mxu0 0
        %2098 = vmatprep.subr.bf16.mxu0 0
        %2099 = vmatpush1.bf16.msra.mxu0 0
        %2100 = vmatprep.subr.bf16.mxu0 0
        %2101 = vmatpush1.bf16.msra.mxu0 0
        %2102 = vmatprep.subr.bf16.mxu0 0
        %2103 = vmatpush1.bf16.msra.mxu0 0
        %2104 = vmatprep.subr.bf16.mxu0 0
        %2105 = vmatpush1.bf16.msra.mxu0 0
        %2106 = vmatprep.subr.bf16.mxu0 0
        %2107 = vmatpush1.bf16.msra.mxu0 0
        %2108 = vmatprep.subr.bf16.mxu0 0
        %2109 = vmatpush1.bf16.msra.mxu0 0
        %2110 = vmatprep.subr.bf16.mxu0 0
        %2111 = vmatpush1.bf16.msra.mxu0 0
        %2112 = vmatprep.subr.bf16.mxu0 0
        %2113 = vmatpush1.bf16.msra.mxu0 0
        %2114 = vmatprep.subr.bf16.mxu0 0
        %2115 = vmatpush1.bf16.msra.mxu0 0
        %2116 = vmatprep.mubr.bf16.mxu0 0
        %2117 = vmatmul.mubr.bf16.gmra.mrb[0].mxu0 %v2082
        %v2118 = vpop.f32.mrb[0].mxu0
        %v2119 = vadd.f32 %v1107, %v2118
        %v2120 = vpop.f32.mrb[0].mxu0
        %v2121 = vpop.f32.mrb[0].mxu0
        %v2122 = vpop.f32.mrb[0].mxu0
        %2123 = vdwg.mxu0
        %v2124 = vmul.f32 %v2119, 0.35355338
        %v2125 = vpack.c.bf16 %v2124, %v2124
        %v2126 = vpack.c.bf16 %v1168, %v2119
        %2128 = vrot.lane.b32.xlu0 %v2126, 96
        %v2129 = vpop.permute.xlu0 %2128
        %v2131 = vsel %vm1182, %v2125, 0
        %v2134 = vsel %vm1182, %v2129, 0
        %2136 = vmatprep.subr.bf16.mxu0 0
        %2137 = vmatpush1.bf16.xpose.msra.mxu0 %v2134
        %2138 = vmatprep.subr.bf16.mxu0 0
        %2139 = vmatpush1.bf16.xpose.msra.mxu0 %v1190
        %2140 = vmatprep.subr.bf16.mxu0 0
        %2141 = vmatpush1.bf16.xpose.msra.mxu0 0
        %2142 = vmatprep.subr.bf16.mxu0 0
        %2143 = vmatpush1.bf16.xpose.msra.mxu0 0
        %2144 = vmatprep.subr.bf16.mxu0 0
        %2145 = vmatpush1.bf16.xpose.msra.mxu0 0
        %2146 = vmatprep.subr.bf16.mxu0 0
        %2147 = vmatpush1.bf16.xpose.msra.mxu0 0
        %2148 = vmatprep.subr.bf16.mxu0 0
        %2149 = vmatpush1.bf16.xpose.msra.mxu0 0
        %2150 = vmatprep.subr.bf16.mxu0 0
        %2151 = vmatpush1.bf16.xpose.msra.mxu0 0
        %2152 = vmatprep.subr.bf16.mxu0 0
        %2153 = vmatpush1.bf16.xpose.msra.mxu0 0
        %2154 = vmatprep.subr.bf16.mxu0 0
        %2155 = vmatpush1.bf16.xpose.msra.mxu0 0
        %2156 = vmatprep.subr.bf16.mxu0 0
        %2157 = vmatpush1.bf16.xpose.msra.mxu0 0
        %2158 = vmatprep.subr.bf16.mxu0 0
        %2159 = vmatpush1.bf16.xpose.msra.mxu0 0
        %2160 = vmatprep.subr.bf16.mxu0 0
        %2161 = vmatpush1.bf16.xpose.msra.mxu0 0
        %2162 = vmatprep.subr.bf16.mxu0 0
        %2163 = vmatpush1.bf16.xpose.msra.mxu0 0
        %2164 = vmatprep.subr.bf16.mxu0 0
        %2165 = vmatpush1.bf16.xpose.msra.mxu0 0
        %2166 = vmatprep.subr.bf16.mxu0 0
        %2167 = vmatpush1.bf16.xpose.msra.mxu0 0
        %2168 = vmatprep.mubr.bf16.mxu0 0
        %2169 = vmatmul.mubr.bf16.gmra.mrb[0].mxu0 %v2131
        %v2170 = vpop.f32.mrb[0].mxu0
        %v2171 = vadd.f32 0.0, %v2170
        %v2172 = vpop.f32.mrb[0].mxu0
        %v2173 = vpop.f32.mrb[0].mxu0
        %v2174 = vpop.f32.mrb[0].mxu0
        %2175 = vdwg.mxu0
        %2177 = vrot.lane.b32.xlu0 %v2171, 105
        %v2178 = vpop.permute.xlu0 %2177
        %2180 = vrot.lane.b32.xlu0 %v2171, 121
        %v2181 = vpop.permute.xlu0 %2180
        %v2183 = vsel %vm1241, %v2178, %v2181
        %2184 = vrot.lane.b32.xlu0 %v2171, 120
        %v2185 = vpop.permute.xlu0 %2184
        %v2187 = vsel %vm1246, %v2183, %v2185
        %2189 = vrot.lane.b32.xlu0 %v2187, 114
        %v2190 = vpop.permute.xlu0 %2189
        %2192 = vrot.lane.b32.xlu0 %v2187, 2
        %v2193 = vpop.permute.xlu0 %2192
        %v2195 = vsel %vm1258, %v2190, %v2193
        %v2196 = vsel %vm1264, %v2195, %v2187
        %2198 = vrot.lane.b32.xlu0 %v2196, 116
        %v2199 = vpop.permute.xlu0 %2198
        %2201 = vrot.lane.b32.xlu0 %v2196, 4
        %v2202 = vpop.permute.xlu0 %2201
        %v2204 = vsel %vm1273, %v2199, %v2202
        %v2205 = vsel %vm1279, %v2204, %v2196
        %v2206 = vadd.f32 %v2171, %v2205
        %v2207 = vsel %vm1182, %v2206, -inf
        %2208 = vmax.xlane.f32.xlu0 %v2207
        %v2209 = vpop.xlane.xlu0 %2208
        %v2210 = vsub.f32 %v2206, %v2209
        %v2211 = vmul.f32 %v2210, 1.442695
        %v2212 = vpow.pop %v2211
        %v2213 = vsel %vm1182, %v2212, 0.0
        %2214 = vadd.xlane.f32.xlu0 %v2213
        %v2215 = vpop.xlane.xlu0 %2214
        %v2216 = vrcp.pop %v2215
        %v2217 = vmul.f32 %v2212, %v2216
        %v2218 = vpack.c.bf16 %v2217, %v2217
        %v2219 = vpack.c.bf16 %v2119, %v2119
        %2221 = vrot.lane.b32.xlu0 %v2219, 64
        %v2222 = vpop.permute.xlu0 %2221
        %v2224 = vsel %vm1182, %v2218, 0
        %v2227 = vsel %vm1301, %v2222, 0
        %2229 = vmatprep.subr.bf16.mxu0 0
        %2230 = vmatpush1.bf16.msra.mxu0 %v2227
        %2231 = vmatprep.subr.bf16.mxu0 0
        %2232 = vmatpush1.bf16.msra.mxu0 0
        %2233 = vmatprep.subr.bf16.mxu0 0
        %2234 = vmatpush1.bf16.msra.mxu0 0
        %2235 = vmatprep.subr.bf16.mxu0 0
        %2236 = vmatpush1.bf16.msra.mxu0 0
        %2237 = vmatprep.subr.bf16.mxu0 0
        %2238 = vmatpush1.bf16.msra.mxu0 0
        %2239 = vmatprep.subr.bf16.mxu0 0
        %2240 = vmatpush1.bf16.msra.mxu0 0
        %2241 = vmatprep.subr.bf16.mxu0 0
        %2242 = vmatpush1.bf16.msra.mxu0 0
        %2243 = vmatprep.subr.bf16.mxu0 0
        %2244 = vmatpush1.bf16.msra.mxu0 0
        %2245 = vmatprep.subr.bf16.mxu0 0
        %2246 = vmatpush1.bf16.msra.mxu0 0
        %2247 = vmatprep.subr.bf16.mxu0 0
        %2248 = vmatpush1.bf16.msra.mxu0 0
        %2249 = vmatprep.subr.bf16.mxu0 0
        %2250 = vmatpush1.bf16.msra.mxu0 0
        %2251 = vmatprep.subr.bf16.mxu0 0
        %2252 = vmatpush1.bf16.msra.mxu0 0
        %2253 = vmatprep.subr.bf16.mxu0 0
        %2254 = vmatpush1.bf16.msra.mxu0 0
        %2255 = vmatprep.subr.bf16.mxu0 0
        %2256 = vmatpush1.bf16.msra.mxu0 0
        %2257 = vmatprep.subr.bf16.mxu0 0
        %2258 = vmatpush1.bf16.msra.mxu0 0
        %2259 = vmatprep.subr.bf16.mxu0 0
        %2260 = vmatpush1.bf16.msra.mxu0 0
        %2261 = vmatprep.mubr.bf16.mxu0 0
        %2262 = vmatmul.mubr.bf16.gmra.mrb[0].mxu0 %v2224
        %v2263 = vpop.f32.mrb[0].mxu0
        %v2264 = vadd.f32 0.0, %v2263
        %v2265 = vpop.f32.mrb[0].mxu0
        %v2266 = vpop.f32.mrb[0].mxu0
        %v2267 = vpop.f32.mrb[0].mxu0
        %2268 = vdwg.mxu0
        %v2269 = vpack.c.bf16 %v1346, %v2119
        %2271 = vrot.lane.b32.xlu0 %v2125, 120
        %v2272 = vpop.permute.xlu0 %2271
        %2274 = vrot.lane.b32.xlu0 %v2269, 88
        %v2275 = vpop.permute.xlu0 %2274
        %v2277 = vsel %vm1182, %v2272, 0
        %v2280 = vsel %vm1182, %v2275, 0
        %2282 = vmatprep.subr.bf16.mxu0 0
        %2283 = vmatpush1.bf16.xpose.msra.mxu0 %v2280
        %2284 = vmatprep.subr.bf16.mxu0 0
        %2285 = vmatpush1.bf16.xpose.msra.mxu0 %v1369
        %2286 = vmatprep.subr.bf16.mxu0 0
        %2287 = vmatpush1.bf16.xpose.msra.mxu0 0
        %2288 = vmatprep.subr.bf16.mxu0 0
        %2289 = vmatpush1.bf16.xpose.msra.mxu0 0
        %2290 = vmatprep.subr.bf16.mxu0 0
        %2291 = vmatpush1.bf16.xpose.msra.mxu0 0
        %2292 = vmatprep.subr.bf16.mxu0 0
        %2293 = vmatpush1.bf16.xpose.msra.mxu0 0
        %2294 = vmatprep.subr.bf16.mxu0 0
        %2295 = vmatpush1.bf16.xpose.msra.mxu0 0
        %2296 = vmatprep.subr.bf16.mxu0 0
        %2297 = vmatpush1.bf16.xpose.msra.mxu0 0
        %2298 = vmatprep.subr.bf16.mxu0 0
        %2299 = vmatpush1.bf16.xpose.msra.mxu0 0
        %2300 = vmatprep.subr.bf16.mxu0 0
        %2301 = vmatpush1.bf16.xpose.msra.mxu0 0
        %2302 = vmatprep.subr.bf16.mxu0 0
        %2303 = vmatpush1.bf16.xpose.msra.mxu0 0
        %2304 = vmatprep.subr.bf16.mxu0 0
        %2305 = vmatpush1.bf16.xpose.msra.mxu0 0
        %2306 = vmatprep.subr.bf16.mxu0 0
        %2307 = vmatpush1.bf16.xpose.msra.mxu0 0
        %2308 = vmatprep.subr.bf16.mxu0 0
        %2309 = vmatpush1.bf16.xpose.msra.mxu0 0
        %2310 = vmatprep.subr.bf16.mxu0 0
        %2311 = vmatpush1.bf16.xpose.msra.mxu0 0
        %2312 = vmatprep.subr.bf16.mxu0 0
        %2313 = vmatpush1.bf16.xpose.msra.mxu0 0
        %2314 = vmatprep.mubr.bf16.mxu0 0
        %2315 = vmatmul.mubr.bf16.gmra.mrb[0].mxu0 %v2277
        %v2316 = vpop.f32.mrb[0].mxu0
        %v2317 = vadd.f32 0.0, %v2316
        %v2318 = vpop.f32.mrb[0].mxu0
        %v2319 = vpop.f32.mrb[0].mxu0
        %v2320 = vpop.f32.mrb[0].mxu0
        %2321 = vdwg.mxu0
        %2323 = vrot.lane.b32.xlu0 %v2317, 105
        %v2324 = vpop.permute.xlu0 %2323
        %2326 = vrot.lane.b32.xlu0 %v2317, 121
        %v2327 = vpop.permute.xlu0 %2326
        %v2329 = vsel %vm1241, %v2324, %v2327
        %2330 = vrot.lane.b32.xlu0 %v2317, 120
        %v2331 = vpop.permute.xlu0 %2330
        %v2333 = vsel %vm1246, %v2329, %v2331
        %2335 = vrot.lane.b32.xlu0 %v2333, 114
        %v2336 = vpop.permute.xlu0 %2335
        %2338 = vrot.lane.b32.xlu0 %v2333, 2
        %v2339 = vpop.permute.xlu0 %2338
        %v2341 = vsel %vm1258, %v2336, %v2339
        %v2342 = vsel %vm1264, %v2341, %v2333
        %2344 = vrot.lane.b32.xlu0 %v2342, 116
        %v2345 = vpop.permute.xlu0 %2344
        %2347 = vrot.lane.b32.xlu0 %v2342, 4
        %v2348 = vpop.permute.xlu0 %2347
        %v2350 = vsel %vm1273, %v2345, %v2348
        %v2351 = vsel %vm1279, %v2350, %v2342
        %v2352 = vadd.f32 %v2317, %v2351
        %v2353 = vsel %vm1182, %v2352, -inf
        %2354 = vmax.xlane.f32.xlu0 %v2353
        %v2355 = vpop.xlane.xlu0 %2354
        %v2356 = vsub.f32 %v2352, %v2355
        %v2357 = vmul.f32 %v2356, 1.442695
        %v2358 = vpow.pop %v2357
        %v2359 = vsel %vm1182, %v2358, 0.0
        %2360 = vadd.xlane.f32.xlu0 %v2359
        %v2361 = vpop.xlane.xlu0 %2360
        %v2362 = vrcp.pop %v2361
        %v2363 = vmul.f32 %v2358, %v2362
        %v2364 = vpack.c.bf16 %v2363, %v2363
        %2365 = vrot.lane.b32.xlu0 %v2219, 56
        %v2366 = vpop.permute.xlu0 %2365
        %v2368 = vsel %vm1182, %v2364, 0
        %v2371 = vsel %vm1301, %v2366, 0
        %2373 = vmatprep.subr.bf16.mxu0 0
        %2374 = vmatpush1.bf16.msra.mxu0 %v2371
        %2375 = vmatprep.subr.bf16.mxu0 0
        %2376 = vmatpush1.bf16.msra.mxu0 0
        %2377 = vmatprep.subr.bf16.mxu0 0
        %2378 = vmatpush1.bf16.msra.mxu0 0
        %2379 = vmatprep.subr.bf16.mxu0 0
        %2380 = vmatpush1.bf16.msra.mxu0 0
        %2381 = vmatprep.subr.bf16.mxu0 0
        %2382 = vmatpush1.bf16.msra.mxu0 0
        %2383 = vmatprep.subr.bf16.mxu0 0
        %2384 = vmatpush1.bf16.msra.mxu0 0
        %2385 = vmatprep.subr.bf16.mxu0 0
        %2386 = vmatpush1.bf16.msra.mxu0 0
        %2387 = vmatprep.subr.bf16.mxu0 0
        %2388 = vmatpush1.bf16.msra.mxu0 0
        %2389 = vmatprep.subr.bf16.mxu0 0
        %2390 = vmatpush1.bf16.msra.mxu0 0
        %2391 = vmatprep.subr.bf16.mxu0 0
        %2392 = vmatpush1.bf16.msra.mxu0 0
        %2393 = vmatprep.subr.bf16.mxu0 0
        %2394 = vmatpush1.bf16.msra.mxu0 0
        %2395 = vmatprep.subr.bf16.mxu0 0
        %2396 = vmatpush1.bf16.msra.mxu0 0
        %2397 = vmatprep.subr.bf16.mxu0 0
        %2398 = vmatpush1.bf16.msra.mxu0 0
        %2399 = vmatprep.subr.bf16.mxu0 0
        %2400 = vmatpush1.bf16.msra.mxu0 0
        %2401 = vmatprep.subr.bf16.mxu0 0
        %2402 = vmatpush1.bf16.msra.mxu0 0
        %2403 = vmatprep.subr.bf16.mxu0 0
        %2404 = vmatpush1.bf16.msra.mxu0 0
        %2405 = vmatprep.mubr.bf16.mxu0 0
        %2406 = vmatmul.mubr.bf16.gmra.mrb[0].mxu0 %v2368
        %v2407 = vpop.f32.mrb[0].mxu0
        %v2408 = vadd.f32 0.0, %v2407
        %v2409 = vpop.f32.mrb[0].mxu0
        %v2410 = vpop.f32.mrb[0].mxu0
        %v2411 = vpop.f32.mrb[0].mxu0
        %2412 = vdwg.mxu0
        %v2413 = vpack.c.bf16 %v1503, %v2119
        %2414 = vrot.lane.b32.xlu0 %v2125, 112
        %v2415 = vpop.permute.xlu0 %2414
        %2417 = vrot.lane.b32.xlu0 %v2413, 80
        %v2418 = vpop.permute.xlu0 %2417
        %v2420 = vsel %vm1182, %v2415, 0
        %v2423 = vsel %vm1182, %v2418, 0
        %2425 = vmatprep.subr.bf16.mxu0 0
        %2426 = vmatpush1.bf16.xpose.msra.mxu0 %v2423
        %2427 = vmatprep.subr.bf16.mxu0 0
        %2428 = vmatpush1.bf16.xpose.msra.mxu0 %v1525
        %2429 = vmatprep.subr.bf16.mxu0 0
        %2430 = vmatpush1.bf16.xpose.msra.mxu0 0
        %2431 = vmatprep.subr.bf16.mxu0 0
        %2432 = vmatpush1.bf16.xpose.msra.mxu0 0
        %2433 = vmatprep.subr.bf16.mxu0 0
        %2434 = vmatpush1.bf16.xpose.msra.mxu0 0
        %2435 = vmatprep.subr.bf16.mxu0 0
        %2436 = vmatpush1.bf16.xpose.msra.mxu0 0
        %2437 = vmatprep.subr.bf16.mxu0 0
        %2438 = vmatpush1.bf16.xpose.msra.mxu0 0
        %2439 = vmatprep.subr.bf16.mxu0 0
        %2440 = vmatpush1.bf16.xpose.msra.mxu0 0
        %2441 = vmatprep.subr.bf16.mxu0 0
        %2442 = vmatpush1.bf16.xpose.msra.mxu0 0
        %2443 = vmatprep.subr.bf16.mxu0 0
        %2444 = vmatpush1.bf16.xpose.msra.mxu0 0
        %2445 = vmatprep.subr.bf16.mxu0 0
        %2446 = vmatpush1.bf16.xpose.msra.mxu0 0
        %2447 = vmatprep.subr.bf16.mxu0 0
        %2448 = vmatpush1.bf16.xpose.msra.mxu0 0
        %2449 = vmatprep.subr.bf16.mxu0 0
        %2450 = vmatpush1.bf16.xpose.msra.mxu0 0
        %2451 = vmatprep.subr.bf16.mxu0 0
        %2452 = vmatpush1.bf16.xpose.msra.mxu0 0
        %2453 = vmatprep.subr.bf16.mxu0 0
        %2454 = vmatpush1.bf16.xpose.msra.mxu0 0
        %2455 = vmatprep.subr.bf16.mxu0 0
        %2456 = vmatpush1.bf16.xpose.msra.mxu0 0
        %2457 = vmatprep.mubr.bf16.mxu0 0
        %2458 = vmatmul.mubr.bf16.gmra.mrb[0].mxu0 %v2420
        %v2459 = vpop.f32.mrb[0].mxu0
        %v2460 = vadd.f32 0.0, %v2459
        %v2461 = vpop.f32.mrb[0].mxu0
        %v2462 = vpop.f32.mrb[0].mxu0
        %v2463 = vpop.f32.mrb[0].mxu0
        %2464 = vdwg.mxu0
        %2466 = vrot.lane.b32.xlu0 %v2460, 105
        %v2467 = vpop.permute.xlu0 %2466
        %2469 = vrot.lane.b32.xlu0 %v2460, 121
        %v2470 = vpop.permute.xlu0 %2469
        %v2472 = vsel %vm1241, %v2467, %v2470
        %2473 = vrot.lane.b32.xlu0 %v2460, 120
        %v2474 = vpop.permute.xlu0 %2473
        %v2476 = vsel %vm1246, %v2472, %v2474
        %2478 = vrot.lane.b32.xlu0 %v2476, 114
        %v2479 = vpop.permute.xlu0 %2478
        %2481 = vrot.lane.b32.xlu0 %v2476, 2
        %v2482 = vpop.permute.xlu0 %2481
        %v2484 = vsel %vm1258, %v2479, %v2482
        %v2485 = vsel %vm1264, %v2484, %v2476
        %2487 = vrot.lane.b32.xlu0 %v2485, 116
        %v2488 = vpop.permute.xlu0 %2487
        %2490 = vrot.lane.b32.xlu0 %v2485, 4
        %v2491 = vpop.permute.xlu0 %2490
        %v2493 = vsel %vm1273, %v2488, %v2491
        %v2494 = vsel %vm1279, %v2493, %v2485
        %v2495 = vadd.f32 %v2460, %v2494
        %v2496 = vsel %vm1182, %v2495, -inf
        %2497 = vmax.xlane.f32.xlu0 %v2496
        %v2498 = vpop.xlane.xlu0 %2497
        %v2499 = vsub.f32 %v2495, %v2498
        %v2500 = vmul.f32 %v2499, 1.442695
        %v2501 = vpow.pop %v2500
        %v2502 = vsel %vm1182, %v2501, 0.0
        %2503 = vadd.xlane.f32.xlu0 %v2502
        %v2504 = vpop.xlane.xlu0 %2503
        %v2505 = vrcp.pop %v2504
        %v2506 = vmul.f32 %v2501, %v2505
        %v2507 = vpack.c.bf16 %v2506, %v2506
        %2508 = vrot.lane.b32.xlu0 %v2219, 48
        %v2509 = vpop.permute.xlu0 %2508
        %v2511 = vsel %vm1182, %v2507, 0
        %v2514 = vsel %vm1301, %v2509, 0
        %2516 = vmatprep.subr.bf16.mxu0 0
        %2517 = vmatpush1.bf16.msra.mxu0 %v2514
        %2518 = vmatprep.subr.bf16.mxu0 0
        %2519 = vmatpush1.bf16.msra.mxu0 0
        %2520 = vmatprep.subr.bf16.mxu0 0
        %2521 = vmatpush1.bf16.msra.mxu0 0
        %2522 = vmatprep.subr.bf16.mxu0 0
        %2523 = vmatpush1.bf16.msra.mxu0 0
        %2524 = vmatprep.subr.bf16.mxu0 0
        %2525 = vmatpush1.bf16.msra.mxu0 0
        %2526 = vmatprep.subr.bf16.mxu0 0
        %2527 = vmatpush1.bf16.msra.mxu0 0
        %2528 = vmatprep.subr.bf16.mxu0 0
        %2529 = vmatpush1.bf16.msra.mxu0 0
        %2530 = vmatprep.subr.bf16.mxu0 0
        %2531 = vmatpush1.bf16.msra.mxu0 0
        %2532 = vmatprep.subr.bf16.mxu0 0
        %2533 = vmatpush1.bf16.msra.mxu0 0
        %2534 = vmatprep.subr.bf16.mxu0 0
        %2535 = vmatpush1.bf16.msra.mxu0 0
        %2536 = vmatprep.subr.bf16.mxu0 0
        %2537 = vmatpush1.bf16.msra.mxu0 0
        %2538 = vmatprep.subr.bf16.mxu0 0
        %2539 = vmatpush1.bf16.msra.mxu0 0
        %2540 = vmatprep.subr.bf16.mxu0 0
        %2541 = vmatpush1.bf16.msra.mxu0 0
        %2542 = vmatprep.subr.bf16.mxu0 0
        %2543 = vmatpush1.bf16.msra.mxu0 0
        %2544 = vmatprep.subr.bf16.mxu0 0
        %2545 = vmatpush1.bf16.msra.mxu0 0
        %2546 = vmatprep.subr.bf16.mxu0 0
        %2547 = vmatpush1.bf16.msra.mxu0 0
        %2548 = vmatprep.mubr.bf16.mxu0 0
        %2549 = vmatmul.mubr.bf16.gmra.mrb[0].mxu0 %v2511
        %v2550 = vpop.f32.mrb[0].mxu0
        %v2551 = vadd.f32 0.0, %v2550
        %v2552 = vpop.f32.mrb[0].mxu0
        %v2553 = vpop.f32.mrb[0].mxu0
        %v2554 = vpop.f32.mrb[0].mxu0
        %2555 = vdwg.mxu0
        %v2556 = vpack.c.bf16 %v1659, %v2119
        %2557 = vrot.lane.b32.xlu0 %v2125, 104
        %v2558 = vpop.permute.xlu0 %2557
        %2560 = vrot.lane.b32.xlu0 %v2556, 72
        %v2561 = vpop.permute.xlu0 %2560
        %v2563 = vsel %vm1182, %v2558, 0
        %v2566 = vsel %vm1182, %v2561, 0
        %2568 = vmatprep.subr.bf16.mxu0 0
        %2569 = vmatpush1.bf16.xpose.msra.mxu0 %v2566
        %2570 = vmatprep.subr.bf16.mxu0 0
        %2571 = vmatpush1.bf16.xpose.msra.mxu0 %v1681
        %2572 = vmatprep.subr.bf16.mxu0 0
        %2573 = vmatpush1.bf16.xpose.msra.mxu0 0
        %2574 = vmatprep.subr.bf16.mxu0 0
        %2575 = vmatpush1.bf16.xpose.msra.mxu0 0
        %2576 = vmatprep.subr.bf16.mxu0 0
        %2577 = vmatpush1.bf16.xpose.msra.mxu0 0
        %2578 = vmatprep.subr.bf16.mxu0 0
        %2579 = vmatpush1.bf16.xpose.msra.mxu0 0
        %2580 = vmatprep.subr.bf16.mxu0 0
        %2581 = vmatpush1.bf16.xpose.msra.mxu0 0
        %2582 = vmatprep.subr.bf16.mxu0 0
        %2583 = vmatpush1.bf16.xpose.msra.mxu0 0
        %2584 = vmatprep.subr.bf16.mxu0 0
        %2585 = vmatpush1.bf16.xpose.msra.mxu0 0
        %2586 = vmatprep.subr.bf16.mxu0 0
        %2587 = vmatpush1.bf16.xpose.msra.mxu0 0
        %2588 = vmatprep.subr.bf16.mxu0 0
        %2589 = vmatpush1.bf16.xpose.msra.mxu0 0
        %2590 = vmatprep.subr.bf16.mxu0 0
        %2591 = vmatpush1.bf16.xpose.msra.mxu0 0
        %2592 = vmatprep.subr.bf16.mxu0 0
        %2593 = vmatpush1.bf16.xpose.msra.mxu0 0
        %2594 = vmatprep.subr.bf16.mxu0 0
        %2595 = vmatpush1.bf16.xpose.msra.mxu0 0
        %2596 = vmatprep.subr.bf16.mxu0 0
        %2597 = vmatpush1.bf16.xpose.msra.mxu0 0
        %2598 = vmatprep.subr.bf16.mxu0 0
        %2599 = vmatpush1.bf16.xpose.msra.mxu0 0
        %2600 = vmatprep.mubr.bf16.mxu0 0
        %2601 = vmatmul.mubr.bf16.gmra.mrb[0].mxu0 %v2563
        %v2602 = vpop.f32.mrb[0].mxu0
        %v2603 = vadd.f32 0.0, %v2602
        %v2604 = vpop.f32.mrb[0].mxu0
        %v2605 = vpop.f32.mrb[0].mxu0
        %v2606 = vpop.f32.mrb[0].mxu0
        %2607 = vdwg.mxu0
        %2609 = vrot.lane.b32.xlu0 %v2603, 105
        %v2610 = vpop.permute.xlu0 %2609
        %2612 = vrot.lane.b32.xlu0 %v2603, 121
        %v2613 = vpop.permute.xlu0 %2612
        %v2615 = vsel %vm1241, %v2610, %v2613
        %2616 = vrot.lane.b32.xlu0 %v2603, 120
        %v2617 = vpop.permute.xlu0 %2616
        %v2619 = vsel %vm1246, %v2615, %v2617
        %2621 = vrot.lane.b32.xlu0 %v2619, 114
        %v2622 = vpop.permute.xlu0 %2621
        %2624 = vrot.lane.b32.xlu0 %v2619, 2
        %v2625 = vpop.permute.xlu0 %2624
        %v2627 = vsel %vm1258, %v2622, %v2625
        %v2628 = vsel %vm1264, %v2627, %v2619
        %2630 = vrot.lane.b32.xlu0 %v2628, 116
        %v2631 = vpop.permute.xlu0 %2630
        %2633 = vrot.lane.b32.xlu0 %v2628, 4
        %v2634 = vpop.permute.xlu0 %2633
        %v2636 = vsel %vm1273, %v2631, %v2634
        %v2637 = vsel %vm1279, %v2636, %v2628
        %v2638 = vadd.f32 %v2603, %v2637
        %v2639 = vsel %vm1182, %v2638, -inf
        %2640 = vmax.xlane.f32.xlu0 %v2639
        %v2641 = vpop.xlane.xlu0 %2640
        %v2642 = vsub.f32 %v2638, %v2641
        %v2643 = vmul.f32 %v2642, 1.442695
        %v2644 = vpow.pop %v2643
        %v2645 = vsel %vm1182, %v2644, 0.0
        %2646 = vadd.xlane.f32.xlu0 %v2645
        %v2647 = vpop.xlane.xlu0 %2646
        %v2648 = vrcp.pop %v2647
        %v2649 = vmul.f32 %v2644, %v2648
        %v2650 = vpack.c.bf16 %v2649, %v2649
        %2651 = vrot.lane.b32.xlu0 %v2219, 40
        %v2652 = vpop.permute.xlu0 %2651
        %v2654 = vsel %vm1182, %v2650, 0
        %v2657 = vsel %vm1301, %v2652, 0
        %2659 = vmatprep.subr.bf16.mxu0 0
        %2660 = vmatpush1.bf16.msra.mxu0 %v2657
        %2661 = vmatprep.subr.bf16.mxu0 0
        %2662 = vmatpush1.bf16.msra.mxu0 0
        %2663 = vmatprep.subr.bf16.mxu0 0
        %2664 = vmatpush1.bf16.msra.mxu0 0
        %2665 = vmatprep.subr.bf16.mxu0 0
        %2666 = vmatpush1.bf16.msra.mxu0 0
        %2667 = vmatprep.subr.bf16.mxu0 0
        %2668 = vmatpush1.bf16.msra.mxu0 0
        %2669 = vmatprep.subr.bf16.mxu0 0
        %2670 = vmatpush1.bf16.msra.mxu0 0
        %2671 = vmatprep.subr.bf16.mxu0 0
        %2672 = vmatpush1.bf16.msra.mxu0 0
        %2673 = vmatprep.subr.bf16.mxu0 0
        %2674 = vmatpush1.bf16.msra.mxu0 0
        %2675 = vmatprep.subr.bf16.mxu0 0
        %2676 = vmatpush1.bf16.msra.mxu0 0
        %2677 = vmatprep.subr.bf16.mxu0 0
        %2678 = vmatpush1.bf16.msra.mxu0 0
        %2679 = vmatprep.subr.bf16.mxu0 0
        %2680 = vmatpush1.bf16.msra.mxu0 0
        %2681 = vmatprep.subr.bf16.mxu0 0
        %2682 = vmatpush1.bf16.msra.mxu0 0
        %2683 = vmatprep.subr.bf16.mxu0 0
        %2684 = vmatpush1.bf16.msra.mxu0 0
        %2685 = vmatprep.subr.bf16.mxu0 0
        %2686 = vmatpush1.bf16.msra.mxu0 0
        %2687 = vmatprep.subr.bf16.mxu0 0
        %2688 = vmatpush1.bf16.msra.mxu0 0
        %2689 = vmatprep.subr.bf16.mxu0 0
        %2690 = vmatpush1.bf16.msra.mxu0 0
        %2691 = vmatprep.mubr.bf16.mxu0 0
        %2692 = vmatmul.mubr.bf16.gmra.mrb[0].mxu0 %v2654
        %v2693 = vpop.f32.mrb[0].mxu0
        %v2694 = vadd.f32 0.0, %v2693
        %v2695 = vpop.f32.mrb[0].mxu0
        %v2696 = vpop.f32.mrb[0].mxu0
        %v2697 = vpop.f32.mrb[0].mxu0
        %2698 = vdwg.mxu0
        %2700 = vrot.lane.b32.xlu0 %v2408, 8
        %v2701 = vpop.permute.xlu0 %2700
        %2704 = vrot.lane.b32.xlu0 %v2551, 16
        %v2705 = vpop.permute.xlu0 %2704
        %2708 = vrot.lane.b32.xlu0 %v2694, 24
        %v2709 = vpop.permute.xlu0 %2708
        %v2711 = vsel %vm1182, %v2264, %v2701
        %v2712 = vsel %vm1827, %v2711, %v2705
        %v2713 = vsel %vm1829, %v2712, %v2709
        %v2714 = vpack.c.bf16 %v2713, %v2713
        %v2716 = vsel %vm1073, %v2714, 0
        %2718 = vmatprep.subr.bf16.mxu0 0
        %2719 = vmatpush1.bf16.msra.mxu0 %v1840
        %2720 = vmatprep.subr.bf16.mxu0 0
        %2721 = vmatpush1.bf16.msra.mxu0 %v1841
        %2722 = vmatprep.subr.bf16.mxu0 0
        %2723 = vmatpush1.bf16.msra.mxu0 0
        %2724 = vmatprep.subr.bf16.mxu0 0
        %2725 = vmatpush1.bf16.msra.mxu0 0
        %2726 = vmatprep.subr.bf16.mxu0 0
        %2727 = vmatpush1.bf16.msra.mxu0 0
        %2728 = vmatprep.subr.bf16.mxu0 0
        %2729 = vmatpush1.bf16.msra.mxu0 0
        %2730 = vmatprep.subr.bf16.mxu0 0
        %2731 = vmatpush1.bf16.msra.mxu0 0
        %2732 = vmatprep.subr.bf16.mxu0 0
        %2733 = vmatpush1.bf16.msra.mxu0 0
        %2734 = vmatprep.subr.bf16.mxu0 0
        %2735 = vmatpush1.bf16.msra.mxu0 0
        %2736 = vmatprep.subr.bf16.mxu0 0
        %2737 = vmatpush1.bf16.msra.mxu0 0
        %2738 = vmatprep.subr.bf16.mxu0 0
        %2739 = vmatpush1.bf16.msra.mxu0 0
        %2740 = vmatprep.subr.bf16.mxu0 0
        %2741 = vmatpush1.bf16.msra.mxu0 0
        %2742 = vmatprep.subr.bf16.mxu0 0
        %2743 = vmatpush1.bf16.msra.mxu0 0
        %2744 = vmatprep.subr.bf16.mxu0 0
        %2745 = vmatpush1.bf16.msra.mxu0 0
        %2746 = vmatprep.subr.bf16.mxu0 0
        %2747 = vmatpush1.bf16.msra.mxu0 0
        %2748 = vmatprep.subr.bf16.mxu0 0
        %2749 = vmatpush1.bf16.msra.mxu0 0
        %2750 = vmatprep.mubr.bf16.mxu0 0
        %2751 = vmatmul.mubr.bf16.gmra.mrb[0].mxu0 %v2716
        %v2752 = vpop.f32.mrb[0].mxu0
        %v2753 = vadd.f32 0.0, %v2752
        %v2754 = vpop.f32.mrb[0].mxu0
        %v2755 = vpop.f32.mrb[0].mxu0
        %v2756 = vpop.f32.mrb[0].mxu0
        %2757 = vdwg.mxu0
        %v2758 = vadd.f32 %v2064, %v2753
        %v2759 = vadd.f32 %v2758, %v1892
        %v2760 = vsel %vm1073, %v2759, 0.0
        %2761 = vadd.xlane.f32.xlu0 %v2760
        %v2762 = vpop.xlane.xlu0 %2761
        %v2763 = vmul.f32 %v2762, %v1077
        %v2764 = vsub.f32 %v2759, %v2763
        %v2765 = vmul.f32 %v2764, %v2764
        %v2766 = vsel %vm1073, %v2765, 0.0
        %2767 = vadd.xlane.f32.xlu0 %v2766
        %v2768 = vpop.xlane.xlu0 %2767
        %v2769 = vmul.f32 %v2768, %v1077
        %v2770 = vadd.f32 %v2769, 1e-05
        %v2771 = vrsqrt.pop %v2770
        %v2772 = vmul.f32 %v2764, %v2771
        %v2773 = vmul.f32 %v2772, %v1912
        %v2774 = vadd.f32 %v2773, %v1919
        %v2775 = vpack.c.bf16 %v2774, %v2774
        %v2777 = vsel %vm1073, %v2775, 0
        %2779 = vmatprep.subr.bf16.mxu0 0
        %2780 = vmatpush1.bf16.msra.mxu0 %v1937
        %2781 = vmatprep.subr.bf16.mxu0 0
        %2782 = vmatpush1.bf16.msra.mxu0 %v1938
        %2783 = vmatprep.subr.bf16.mxu0 0
        %2784 = vmatpush1.bf16.msra.mxu0 0
        %2785 = vmatprep.subr.bf16.mxu0 0
        %2786 = vmatpush1.bf16.msra.mxu0 0
        %2787 = vmatprep.subr.bf16.mxu0 0
        %2788 = vmatpush1.bf16.msra.mxu0 0
        %2789 = vmatprep.subr.bf16.mxu0 0
        %2790 = vmatpush1.bf16.msra.mxu0 0
        %2791 = vmatprep.subr.bf16.mxu0 0
        %2792 = vmatpush1.bf16.msra.mxu0 0
        %2793 = vmatprep.subr.bf16.mxu0 0
        %2794 = vmatpush1.bf16.msra.mxu0 0
        %2795 = vmatprep.subr.bf16.mxu0 0
        %2796 = vmatpush1.bf16.msra.mxu0 0
        %2797 = vmatprep.subr.bf16.mxu0 0
        %2798 = vmatpush1.bf16.msra.mxu0 0
        %2799 = vmatprep.subr.bf16.mxu0 0
        %2800 = vmatpush1.bf16.msra.mxu0 0
        %2801 = vmatprep.subr.bf16.mxu0 0
        %2802 = vmatpush1.bf16.msra.mxu0 0
        %2803 = vmatprep.subr.bf16.mxu0 0
        %2804 = vmatpush1.bf16.msra.mxu0 0
        %2805 = vmatprep.subr.bf16.mxu0 0
        %2806 = vmatpush1.bf16.msra.mxu0 0
        %2807 = vmatprep.subr.bf16.mxu0 0
        %2808 = vmatpush1.bf16.msra.mxu0 0
        %2809 = vmatprep.subr.bf16.mxu0 0
        %2810 = vmatpush1.bf16.msra.mxu0 0
        %2811 = vmatprep.mubr.bf16.mxu0 0
        %2812 = vmatmul.mubr.bf16.gmra.mrb[0].mxu0 %v2777
        %v2813 = vpop.f32.mrb[0].mxu0
        %v2814 = vadd.f32 %v1927, %v2813
        %v2815 = vpop.f32.mrb[0].mxu0
        %v2816 = vpop.f32.mrb[0].mxu0
        %v2817 = vpop.f32.mrb[0].mxu0
        %2818 = vdwg.mxu0
        %v2819 = vmax.f32 %v2814, 0.0
        %v2820 = vpack.c.bf16 %v2819, %v2819
        %v2822 = vsel %vm2010, %v2820, 0
        %2824 = vmatprep.subr.bf16.mxu0 0
        %2825 = vmatpush1.bf16.msra.mxu0 %v2002
        %2826 = vmatprep.subr.bf16.mxu0 0
        %2827 = vmatpush1.bf16.msra.mxu0 %v2003
        %2828 = vmatprep.subr.bf16.mxu0 0
        %2829 = vmatpush1.bf16.msra.mxu0 %v2004
        %2830 = vmatprep.subr.bf16.mxu0 0
        %2831 = vmatpush1.bf16.msra.mxu0 %v2005
        %2832 = vmatprep.subr.bf16.mxu0 0
        %2833 = vmatpush1.bf16.msra.mxu0 0
        %2834 = vmatprep.subr.bf16.mxu0 0
        %2835 = vmatpush1.bf16.msra.mxu0 0
        %2836 = vmatprep.subr.bf16.mxu0 0
        %2837 = vmatpush1.bf16.msra.mxu0 0
        %2838 = vmatprep.subr.bf16.mxu0 0
        %2839 = vmatpush1.bf16.msra.mxu0 0
        %2840 = vmatprep.subr.bf16.mxu0 0
        %2841 = vmatpush1.bf16.msra.mxu0 0
        %2842 = vmatprep.subr.bf16.mxu0 0
        %2843 = vmatpush1.bf16.msra.mxu0 0
        %2844 = vmatprep.subr.bf16.mxu0 0
        %2845 = vmatpush1.bf16.msra.mxu0 0
        %2846 = vmatprep.subr.bf16.mxu0 0
        %2847 = vmatpush1.bf16.msra.mxu0 0
        %2848 = vmatprep.subr.bf16.mxu0 0
        %2849 = vmatpush1.bf16.msra.mxu0 0
        %2850 = vmatprep.subr.bf16.mxu0 0
        %2851 = vmatpush1.bf16.msra.mxu0 0
        %2852 = vmatprep.subr.bf16.mxu0 0
        %2853 = vmatpush1.bf16.msra.mxu0 0
        %2854 = vmatprep.subr.bf16.mxu0 0
        %2855 = vmatpush1.bf16.msra.mxu0 0
        %2856 = vmatprep.mubr.bf16.mxu0 0
        %2857 = vmatmul.mubr.bf16.gmra.mrb[0].mxu0 %v2822
        %v2858 = vpop.f32.mrb[0].mxu0
        %v2859 = vadd.f32 0.0, %v2858
        %v2860 = vpop.f32.mrb[0].mxu0
        %v2861 = vpop.f32.mrb[0].mxu0
        %v2862 = vpop.f32.mrb[0].mxu0
        %2863 = vdwg.mxu0
        %v2864 = vadd.f32 %v2759, %v2859
        %v2865 = vadd.f32 %v2864, %v2059
        %2866 = vst.msk [vmem:[%s2063] sm:$0xff] %vm1073, %v2865
        %p2867 = scmp.eq.s32.totalorder %s40, 1
        // Predicated region
        $region121: #{tpu_custom_call.1} parent=99 // pred_check
          %p2868 = pneg %p2867
        $region122: #{tpu_custom_call.1} parent=99 // pred_check_branch
          %2870 = sbr.rel (%p2868) target = $region124
        $region123: #{tpu_custom_call.1} parent=99 // pred_region
          %v2871 = vld [vmem:[#allocation7] sm:$0x1]
          %v2872 = vld [vmem:[#allocation8] sm:$0x1]
          %v2873 = vld [vmem:[#allocation10] sm:$0xff]
          %v2874 = vsel %vm1073, %v2873, 0.0
          %2875 = vadd.xlane.f32.xlu0 %v2874
          %v2876 = vpop.xlane.xlu0 %2875
          %v2877 = vmul.f32 %v2876, %v1077
          %v2878 = vsub.f32 %v2873, %v2877
          %v2879 = vmul.f32 %v2878, %v2878
          %v2880 = vsel %vm1073, %v2879, 0.0
          %2881 = vadd.xlane.f32.xlu0 %v2880
          %v2882 = vpop.xlane.xlu0 %2881
          %v2883 = vmul.f32 %v2882, %v1077
          %v2884 = vadd.f32 %v2883, 1e-05
          %v2885 = vrsqrt.pop %v2884
          %v2886 = vmul.f32 %v2878, %v2885
          %v2888 = vlaneseq
          %v2889 = vshrl.u32 %v2888, 7
          %v2890 = vsub.s32 0, %v2889
          %v2891 = vrot.slane %v2871, %v2890
          %v2893 = vmul.f32 %v2886, %v2891
          %v2895 = vlaneseq
          %v2896 = vshrl.u32 %v2895, 7
          %v2897 = vsub.s32 0, %v2896
          %v2898 = vrot.slane %v2872, %v2897
          %v2900 = vadd.f32 %v2893, %v2898
          %2901 = vst.msk [vmem:[#allocation10] sm:$0xff] %vm1073, %v2900
          %v2902 = vld [vmem:[%s2063] sm:$0xff]
          %v2903 = vsel %vm1073, %v2902, 0.0
          %2904 = vadd.xlane.f32.xlu0 %v2903
          %v2905 = vpop.xlane.xlu0 %2904
          %v2906 = vmul.f32 %v2905, %v1077
          %v2907 = vsub.f32 %v2902, %v2906
          %v2908 = vmul.f32 %v2907, %v2907
          %v2909 = vsel %vm1073, %v2908, 0.0
          %2910 = vadd.xlane.f32.xlu0 %v2909
          %v2911 = vpop.xlane.xlu0 %2910
          %v2912 = vmul.f32 %v2911, %v1077
          %v2913 = vadd.f32 %v2912, 1e-05
          %v2914 = vrsqrt.pop %v2913
          %v2915 = vmul.f32 %v2907, %v2914
          %v2916 = vmul.f32 %v2915, %v2891
          %v2917 = vadd.f32 %v2916, %v2898
          %2918 = vst.msk [vmem:[%s2063] sm:$0xff] %vm1073, %v2917
        $region124: #{tpu_custom_call.1} parent=99 // pred_fallthru
          _
        // Predicated region
        $region125: #{tpu_custom_call.1} parent=99 // pred_check
          %p2919 = pneg %p550
        $region126: #{tpu_custom_call.1} parent=99 // pred_check_branch
          %2921 = sbr.rel (%p2919) target = $region128
        $region127: #{tpu_custom_call.1} parent=99 // pred_region
          %s2922 = smul.u32 2, %s39
          %s2924 = ssub.s32 256, 256
          %2925 = vsyncadd [#allocation4], %s2924
          %s2926 = smul.addr %s2922, 128
          %s2927 = scalar_lea.hbm %s20, %s2926
          %s2928 = sshll.u32 [#allocation10], 4
          %s2929 = int_to_ptr.vmem [resolvable:$true] %s2928
          %2934 = dma.vmem_to_hbm [thread:$0]  %s2929, 256, %s2927, [#allocation4], 128, 128, 8
        $region128: #{tpu_custom_call.1} parent=99 // pred_fallthru
          _
        // Predicated region
        $region129: #{tpu_custom_call.1} parent=99 // pred_check
          %p2935 = pneg %p550
        $region130: #{tpu_custom_call.1} parent=99 // pred_check_branch
          %2937 = sbr.rel (%p2935) target = $region132
        $region131: #{tpu_custom_call.1} parent=99 // pred_region
          %2938 = dma.done [#allocation4], 256
        $region132: #{tpu_custom_call.1} parent=99 // pred_fallthru
          _
      $region100: #{tpu_custom_call.1} parent=5 // pred_fallthru
        _
      %p2939 = scmp.le.s32.totalorder 2, %s30
      // Predicated region
      $region133: #{tpu_custom_call.1} parent=5 // pred_check
        %p2940 = pneg %p2939
      $region134: #{tpu_custom_call.1} parent=5 // pred_check_branch
        %2942 = sbr.rel (%p2940) target = $region136
      $region135: #{tpu_custom_call.1} parent=5 // pred_region
        %s2943 = ssub.s32 %s30, 2
      $region136: #{tpu_custom_call.1} parent=5 // pred_fallthru
        _
    $region6: #{tpu_custom_call.1} parent=1 // loop_footer
      %s34 = sadd.s32 1, %s30
    $region7: #{tpu_custom_call.1} parent=1 // loop_footer_branch
      %29 = sbr.rel target = $region3
    $region8: #{tpu_custom_call.1} parent=1 // loop_exit
      _
    %2944 = vsyncpa [#allocation3], 1
    %s2945 = scalar_lea.sflag [#allocation3], 1
    %2946 = vsyncpa %s2945, 1
    %2947 = vsyncpa [#allocation6], 1
    %2948 = vsyncpa [#allocation9], 1
    %2949 = vsyncpa [#allocation4], 1
    %s2950 = scalar_lea.sflag [#allocation4], 1
    %2951 = vsyncpa %s2950, 1

</llo_original>
